<compile_context>
chip_gen: v6e
topology: v6e:2x2x1
jax: 0.10.0
libtpu: 0.0.40
codegen_flags: <defaults>
</compile_context>

<pallas_src>
import functools

import jax
import jax.numpy as jnp
from jax.experimental import pallas as pl
from jax.experimental.pallas import tpu as pltpu


# ----------------------------- Pallas kernel -------------------------------
def rcnn_kernel(x_ref,       # (S*B, E)  time-major flattened embedded input
                win_ref,     # (E, 8H)   [fwd i,f,g,o | bwd i,f,g,o] input proj
                bin_ref,     # (1, 8H)   folded b_ih + b_hh, same column order
                whh_ref,     # (2H, 8H)  gate-major block-diag recurrent weights
                wfce_ref,    # (E, CP)   FC rows for the embed features (padded)
                wfch_ref,    # (2H, CP)  FC rows for [fwd | bwd] hidden (padded)
                bfc_ref,     # (1, CP)
                out_ref,     # (B, CP)
                *, S, B):
    E = x_ref.shape[1]
    H2 = whh_ref.shape[0]          # 2H (stacked fwd|bwd hidden width)
    H = H2 // 2

    x = x_ref[...]                                                     # (S*B, E)

    # Hoisted input projection: one MXU op covers every timestep and both
    # directions; only h @ W_hh remains inside the serial recurrence.
    gx = (jnp.dot(x, win_ref[...], preferred_element_type=jnp.float32)
          + bin_ref[...])                                              # (S*B, 8H)

    # Per-gate recurrent weights: static lane slices of a constant, once.
    whh = whh_ref[...]
    w_i = whh[:, 0 * H2:1 * H2]
    w_f = whh[:, 1 * H2:2 * H2]
    w_g = whh[:, 2 * H2:3 * H2]
    w_o = whh[:, 3 * H2:4 * H2]

    h = jnp.zeros((B, H2), jnp.float32)      # [h_fwd | h_bwd]
    c = jnp.zeros((B, H2), jnp.float32)
    mxh = jnp.zeros((B, H2), jnp.float32)    # running max; 0-init folds the ReLU
    mxe = jnp.zeros((B, E), jnp.float32)     # running max of relu(embed)

    # Fully-unrolled merged fwd/bwd recurrence (S static & small).  The gate
    # extraction below depends only on the precomputed gx, so it sits off the
    # h -> gates -> h critical path and can be scheduled alongside it.
    for t in range(S):
        tf, tb = t, S - 1 - t
        rows_f = gx[tf * B:(tf + 1) * B, :]          # (B, 8H) fwd-time rows
        rows_b = gx[tb * B:(tb + 1) * B, :]          # (B, 8H) bwd-time rows
        g_i = jnp.concatenate([rows_f[:, 0 * H:1 * H], rows_b[:, 4 * H:5 * H]], axis=1)
        g_f = jnp.concatenate([rows_f[:, 1 * H:2 * H], rows_b[:, 5 * H:6 * H]], axis=1)
        g_g = jnp.concatenate([rows_f[:, 2 * H:3 * H], rows_b[:, 6 * H:7 * H]], axis=1)
        g_o = jnp.concatenate([rows_f[:, 3 * H:4 * H], rows_b[:, 7 * H:8 * H]], axis=1)

        # Four independent tiny dots on h (block-diag per gate) -> already
        # gate-separated and lane-aligned with c/h; no post-matmul slicing.
        i_t = jax.nn.sigmoid(g_i + jnp.dot(h, w_i, preferred_element_type=jnp.float32))
        f_t = jax.nn.sigmoid(g_f + jnp.dot(h, w_f, preferred_element_type=jnp.float32))
        gg_t = jnp.tanh(g_g + jnp.dot(h, w_g, preferred_element_type=jnp.float32))
        o_t = jax.nn.sigmoid(g_o + jnp.dot(h, w_o, preferred_element_type=jnp.float32))

        c = f_t * c + i_t * gg_t
        h = o_t * jnp.tanh(c)
        mxh = jnp.maximum(mxh, h)                    # max over time (both dirs)
        mxe = jnp.maximum(mxe, x[tf * B:(tf + 1) * B, :])   # embed max-pool

    # relu(max) == max(relu); the 0-init of mxh/mxe already applied the ReLU.
    # Split FC avoids any feature concatenation; output is lane-dense (CP=128).
    out = (jnp.dot(mxe, wfce_ref[...], preferred_element_type=jnp.float32)
           + jnp.dot(mxh, wfch_ref[...], preferred_element_type=jnp.float32)
           + bfc_ref[...])
    out_ref[...] = out


# --------------------------- weight packing (once) --------------------------
def prepare_packed_params(raw, *, num_classes_padded=128):
    """Pack raw (PyTorch-layout, transposed-for-x@W) weights for the kernel.

    Done eagerly at setup time so no per-call packing ops are emitted.
    """
    E = raw["wih_f"].shape[0]
    H = raw["whh_f"].shape[0]
    C = raw["wfc"].shape[1]
    CP = num_classes_padded

    # input projection / bias: columns [fwd i,f,g,o | bwd i,f,g,o]
    w_in = jnp.concatenate([raw["wih_f"], raw["wih_b"]], axis=1)     # (E, 8H)
    b_in = jnp.concatenate([raw["b_f"], raw["b_b"]], axis=1)         # (1, 8H)

    # recurrent weights: per gate a (2H, 2H) block-diag [fwd; bwd], gate-major
    def blockdiag(k):
        wf = raw["whh_f"][:, k * H:(k + 1) * H]
        wb = raw["whh_b"][:, k * H:(k + 1) * H]
        z = jnp.zeros((H, H), jnp.float32)
        top = jnp.concatenate([wf, z], axis=1)
        bot = jnp.concatenate([z, wb], axis=1)
        return jnp.concatenate([top, bot], axis=0)                   # (2H, 2H)

    w_hh = jnp.concatenate([blockdiag(k) for k in range(4)], axis=1)  # (2H, 8H)

    # final FC: split into row blocks and zero-pad columns to CP (lane-dense)
    pad = CP - C
    wfc_p = jnp.pad(raw["wfc"], ((0, 0), (0, pad)))                  # (E+2H, CP)
    bfc_p = jnp.pad(raw["bfc"], ((0, 0), (0, pad)))                  # (1, CP)
    return {
        "w_in": w_in, "b_in": b_in, "w_hh": w_hh,
        "wfc_emb": wfc_p[:E], "wfc_h": wfc_p[E:], "bfc": bfc_p,
    }


# --------------------------------- wrapper -----------------------------------
def text_rcnn_forward(tokens, emb_table, packed, *, num_classes):
    """tokens: (B, S) int ids. Returns (B, num_classes) logits."""
    B, S = tokens.shape
    CP = packed["bfc"].shape[1]

    # Embedding gather produces the kernel's time-major flat layout directly
    # (row t*B + b = embed(tokens[b, t])): no separate transpose op.
    # TODO(synk): the gather itself could be folded into the kernel via
    # PrefetchScalarGridSpec scalar-prefetched token ids; kept as JAX glue.
    flat_ids = jnp.transpose(tokens).reshape(-1)                     # (S*B,)
    x = jnp.take(emb_table, flat_ids, axis=0)                        # (S*B, E)

    vmem = pl.BlockSpec(memory_space=pltpu.MemorySpace.VMEM)
    out_padded = pl.pallas_call(
        functools.partial(rcnn_kernel, S=S, B=B),
        out_shape=jax.ShapeDtypeStruct((B, CP), jnp.float32),
        in_specs=[vmem] * 7,
        out_specs=vmem,
    )(x, packed["w_in"], packed["b_in"], packed["w_hh"],
      packed["wfc_emb"], packed["wfc_h"], packed["bfc"])
    return out_padded[:, :num_classes]


# ----------------------------- pure-JAX reference ---------------------------
def lstm_dir_ref(emb_bse, wih, whh, b, reverse):
    B, S, E = emb_bse.shape
    H = whh.shape[0]
    h = jnp.zeros((B, H), jnp.float32)
    c = jnp.zeros((B, H), jnp.float32)
    outs = [None] * S
    order = range(S - 1, -1, -1) if reverse else range(S)
    for t in order:
        xx = emb_bse[:, t, :]
        gates = xx @ wih + h @ whh + b
        i = jax.nn.sigmoid(gates[:, :H])
        f = jax.nn.sigmoid(gates[:, H:2 * H])
        g = jnp.tanh(gates[:, 2 * H:3 * H])
        o = jax.nn.sigmoid(gates[:, 3 * H:])
        c = f * c + i * g
        h = o * jnp.tanh(c)
        outs[t] = h
    return jnp.stack(outs, axis=1)  # (B, S, H)


def text_rcnn_reference(emb_bse, params):
    fwd = lstm_dir_ref(emb_bse, params["wih_f"], params["whh_f"], params["b_f"], False)
    bwd = lstm_dir_ref(emb_bse, params["wih_b"], params["whh_b"], params["b_b"], True)
    out = jnp.concatenate([emb_bse, fwd, bwd], axis=2)      # (B, S, E+2H)
    out = jax.nn.relu(out)
    out = jnp.max(out, axis=1)                              # maxpool over seq
    return out @ params["wfc"] + params["bfc"]


# --------------------------------- main -------------------------------------
if __name__ == "__main__":
    V, E, H, S, B, C = 50, 32, 32, 8, 2, 10
    CP = 128  # lane-dense padded class dim

    key = jax.random.PRNGKey(0)
    ks = jax.random.split(key, 12)
    kscale = 1.0 / jnp.sqrt(H)

    def u(rng, shape):
        return jax.random.uniform(rng, shape, jnp.float32, -kscale, kscale)

    # embedding table (nn.Embedding.from_pretrained analogue, synthetic)
    emb_table = jax.random.normal(ks[0], (V, E), jnp.float32) * 0.1

    raw = {
        # forward direction (weights stored transposed: x @ W), gate order i,f,g,o
        "wih_f": u(ks[1], (E, 4 * H)),
        "whh_f": u(ks[2], (H, 4 * H)),
        "b_f":   u(ks[3], (1, 4 * H)) + u(ks[4], (1, 4 * H)),   # b_ih + b_hh
        # backward direction
        "wih_b": u(ks[5], (E, 4 * H)),
        "whh_b": u(ks[6], (H, 4 * H)),
        "b_b":   u(ks[7], (1, 4 * H)) + u(ks[8], (1, 4 * H)),
        # final linear: in = E + 2H, out = C
        "wfc":   u(ks[9], (2 * H + E, C)),
        "bfc":   u(ks[10], (1, C)),
    }

    packed = prepare_packed_params(raw, num_classes_padded=CP)
    tokens = jax.random.randint(ks[11], (B, S), 0, V)

    fwd_fn = jax.jit(functools.partial(text_rcnn_forward, num_classes=C))
    out = jax.block_until_ready(fwd_fn(tokens, emb_table, packed))

    emb_bse = jnp.take(emb_table, tokens, axis=0)            # (B, S, E)
    ref = text_rcnn_reference(emb_bse, raw)

    assert out.shape == (B, C)
    assert jnp.allclose(out, ref, atol=1e-4, rtol=1e-4), "kernel != reference"
    print("KERNEL_OK")
</pallas_src>

<mosaic_0001>
module attributes {stable_mosaic.version = 11 : i64} {
  func.func @rcnn_kernel(%arg0: memref<16x32xf32, #tpu.memory_space<vmem>>, %arg1: memref<32x256xf32, #tpu.memory_space<vmem>>, %arg2: memref<1x256xf32, #tpu.memory_space<vmem>>, %arg3: memref<64x256xf32, #tpu.memory_space<vmem>>, %arg4: memref<32x128xf32, #tpu.memory_space<vmem>>, %arg5: memref<64x128xf32, #tpu.memory_space<vmem>>, %arg6: memref<1x128xf32, #tpu.memory_space<vmem>>, %arg7: memref<2x128xf32, #tpu.memory_space<vmem>>) attributes {dimension_semantics = [], scalar_prefetch = 0 : i64, scratch_operands = 0 : i64, tpu.core_type = #tpu.core_type<tc>} {
    %c0 = arith.constant 0 : index
    %c0_0 = arith.constant 0 : index
    %0 = vector.load %arg0[%c0, %c0_0] : memref<16x32xf32, #tpu.memory_space<vmem>>, vector<16x32xf32>
    %c0_1 = arith.constant 0 : index
    %c0_2 = arith.constant 0 : index
    %1 = vector.load %arg1[%c0_1, %c0_2] : memref<32x256xf32, #tpu.memory_space<vmem>>, vector<32x256xf32>
    %cst = arith.constant dense<0.000000e+00> : vector<16x256xf32>
    %2 = tpu.matmul %0, %1, %cst {dimension_numbers = #tpu.dot_dimension_numbers<[1], [0], [0], [1], [0, 0, 1, 1], [], []>} : vector<16x32xf32>, vector<32x256xf32>, vector<16x256xf32> -> vector<16x256xf32>
    %c0_3 = arith.constant 0 : index
    %c0_4 = arith.constant 0 : index
    %3 = vector.load %arg2[%c0_3, %c0_4] : memref<1x256xf32, #tpu.memory_space<vmem>>, vector<1x256xf32>
    %4 = vector.broadcast %3 : vector<1x256xf32> to vector<16x256xf32>
    %5 = arith.addf %2, %4 : vector<16x256xf32>
    %c0_5 = arith.constant 0 : index
    %c0_6 = arith.constant 0 : index
    %6 = vector.load %arg3[%c0_5, %c0_6] : memref<64x256xf32, #tpu.memory_space<vmem>>, vector<64x256xf32>
    %7 = vector.extract_strided_slice %6 {offsets = [0, 0], sizes = [64, 64], strides = [1, 1]} : vector<64x256xf32> to vector<64x64xf32>
    %8 = vector.extract_strided_slice %6 {offsets = [0, 64], sizes = [64, 64], strides = [1, 1]} : vector<64x256xf32> to vector<64x64xf32>
    %9 = vector.extract_strided_slice %6 {offsets = [0, 128], sizes = [64, 64], strides = [1, 1]} : vector<64x256xf32> to vector<64x64xf32>
    %10 = vector.extract_strided_slice %6 {offsets = [0, 192], sizes = [64, 64], strides = [1, 1]} : vector<64x256xf32> to vector<64x64xf32>
    %cst_7 = arith.constant 0.000000e+00 : f32
    %11 = vector.broadcast %cst_7 : f32 to vector<2x64xf32>
    %cst_8 = arith.constant 0.000000e+00 : f32
    %12 = vector.broadcast %cst_8 : f32 to vector<2x64xf32>
    %cst_9 = arith.constant 0.000000e+00 : f32
    %13 = vector.broadcast %cst_9 : f32 to vector<2x64xf32>
    %cst_10 = arith.constant 0.000000e+00 : f32
    %14 = vector.broadcast %cst_10 : f32 to vector<2x32xf32>
    %15 = vector.extract_strided_slice %5 {offsets = [0, 0], sizes = [2, 256], strides = [1, 1]} : vector<16x256xf32> to vector<2x256xf32>
    %16 = vector.extract_strided_slice %5 {offsets = [14, 0], sizes = [2, 256], strides = [1, 1]} : vector<16x256xf32> to vector<2x256xf32>
    %17 = vector.extract_strided_slice %15 {offsets = [0, 0], sizes = [2, 32], strides = [1, 1]} : vector<2x256xf32> to vector<2x32xf32>
    %18 = vector.extract_strided_slice %16 {offsets = [0, 128], sizes = [2, 32], strides = [1, 1]} : vector<2x256xf32> to vector<2x32xf32>
    %19 = tpu.concatenate %17, %18 in 1 : vector<2x32xf32>, vector<2x32xf32> -> vector<2x64xf32>
    %20 = vector.extract_strided_slice %15 {offsets = [0, 32], sizes = [2, 32], strides = [1, 1]} : vector<2x256xf32> to vector<2x32xf32>
    %21 = vector.extract_strided_slice %16 {offsets = [0, 160], sizes = [2, 32], strides = [1, 1]} : vector<2x256xf32> to vector<2x32xf32>
    %22 = tpu.concatenate %20, %21 in 1 : vector<2x32xf32>, vector<2x32xf32> -> vector<2x64xf32>
    %23 = vector.extract_strided_slice %15 {offsets = [0, 64], sizes = [2, 32], strides = [1, 1]} : vector<2x256xf32> to vector<2x32xf32>
    %24 = vector.extract_strided_slice %16 {offsets = [0, 192], sizes = [2, 32], strides = [1, 1]} : vector<2x256xf32> to vector<2x32xf32>
    %25 = tpu.concatenate %23, %24 in 1 : vector<2x32xf32>, vector<2x32xf32> -> vector<2x64xf32>
    %26 = vector.extract_strided_slice %15 {offsets = [0, 96], sizes = [2, 32], strides = [1, 1]} : vector<2x256xf32> to vector<2x32xf32>
    %27 = vector.extract_strided_slice %16 {offsets = [0, 224], sizes = [2, 32], strides = [1, 1]} : vector<2x256xf32> to vector<2x32xf32>
    %28 = tpu.concatenate %26, %27 in 1 : vector<2x32xf32>, vector<2x32xf32> -> vector<2x64xf32>
    %cst_11 = arith.constant dense<0.000000e+00> : vector<2x64xf32>
    %29 = tpu.matmul %11, %7, %cst_11 {dimension_numbers = #tpu.dot_dimension_numbers<[1], [0], [0], [1], [0, 0, 1, 1], [], []>} : vector<2x64xf32>, vector<64x64xf32>, vector<2x64xf32> -> vector<2x64xf32>
    %30 = arith.addf %19, %29 : vector<2x64xf32>
    %31 = arith.negf %30 : vector<2x64xf32>
    %32 = math.exp %31 : vector<2x64xf32>
    %cst_12 = arith.constant 1.000000e+00 : f32
    %33 = vector.broadcast %cst_12 : f32 to vector<2x64xf32>
    %34 = arith.addf %33, %32 : vector<2x64xf32>
    %35 = arith.divf %33, %34 : vector<2x64xf32>
    %cst_13 = arith.constant dense<0.000000e+00> : vector<2x64xf32>
    %36 = tpu.matmul %11, %8, %cst_13 {dimension_numbers = #tpu.dot_dimension_numbers<[1], [0], [0], [1], [0, 0, 1, 1], [], []>} : vector<2x64xf32>, vector<64x64xf32>, vector<2x64xf32> -> vector<2x64xf32>
    %37 = arith.addf %22, %36 : vector<2x64xf32>
    %38 = arith.negf %37 : vector<2x64xf32>
    %39 = math.exp %38 : vector<2x64xf32>
    %cst_14 = arith.constant 1.000000e+00 : f32
    %40 = vector.broadcast %cst_14 : f32 to vector<2x64xf32>
    %41 = arith.addf %40, %39 : vector<2x64xf32>
    %42 = arith.divf %40, %41 : vector<2x64xf32>
    %cst_15 = arith.constant dense<0.000000e+00> : vector<2x64xf32>
    %43 = tpu.matmul %11, %9, %cst_15 {dimension_numbers = #tpu.dot_dimension_numbers<[1], [0], [0], [1], [0, 0, 1, 1], [], []>} : vector<2x64xf32>, vector<64x64xf32>, vector<2x64xf32> -> vector<2x64xf32>
    %44 = arith.addf %25, %43 : vector<2x64xf32>
    %45 = math.tanh %44 : vector<2x64xf32>
    %cst_16 = arith.constant dense<0.000000e+00> : vector<2x64xf32>
    %46 = tpu.matmul %11, %10, %cst_16 {dimension_numbers = #tpu.dot_dimension_numbers<[1], [0], [0], [1], [0, 0, 1, 1], [], []>} : vector<2x64xf32>, vector<64x64xf32>, vector<2x64xf32> -> vector<2x64xf32>
    %47 = arith.addf %28, %46 : vector<2x64xf32>
    %48 = arith.negf %47 : vector<2x64xf32>
    %49 = math.exp %48 : vector<2x64xf32>
    %cst_17 = arith.constant 1.000000e+00 : f32
    %50 = vector.broadcast %cst_17 : f32 to vector<2x64xf32>
    %51 = arith.addf %50, %49 : vector<2x64xf32>
    %52 = arith.divf %50, %51 : vector<2x64xf32>
    %53 = arith.mulf %42, %12 : vector<2x64xf32>
    %54 = arith.mulf %35, %45 : vector<2x64xf32>
    %55 = arith.addf %53, %54 : vector<2x64xf32>
    %56 = math.tanh %55 : vector<2x64xf32>
    %57 = arith.mulf %52, %56 : vector<2x64xf32>
    %58 = arith.maximumf %13, %57 : vector<2x64xf32>
    %59 = vector.extract_strided_slice %0 {offsets = [0, 0], sizes = [2, 32], strides = [1, 1]} : vector<16x32xf32> to vector<2x32xf32>
    %60 = arith.maximumf %14, %59 : vector<2x32xf32>
    %61 = vector.extract_strided_slice %5 {offsets = [2, 0], sizes = [2, 256], strides = [1, 1]} : vector<16x256xf32> to vector<2x256xf32>
    %62 = vector.extract_strided_slice %5 {offsets = [12, 0], sizes = [2, 256], strides = [1, 1]} : vector<16x256xf32> to vector<2x256xf32>
    %63 = vector.extract_strided_slice %61 {offsets = [0, 0], sizes = [2, 32], strides = [1, 1]} : vector<2x256xf32> to vector<2x32xf32>
    %64 = vector.extract_strided_slice %62 {offsets = [0, 128], sizes = [2, 32], strides = [1, 1]} : vector<2x256xf32> to vector<2x32xf32>
    %65 = tpu.concatenate %63, %64 in 1 : vector<2x32xf32>, vector<2x32xf32> -> vector<2x64xf32>
    %66 = vector.extract_strided_slice %61 {offsets = [0, 32], sizes = [2, 32], strides = [1, 1]} : vector<2x256xf32> to vector<2x32xf32>
    %67 = vector.extract_strided_slice %62 {offsets = [0, 160], sizes = [2, 32], strides = [1, 1]} : vector<2x256xf32> to vector<2x32xf32>
    %68 = tpu.concatenate %66, %67 in 1 : vector<2x32xf32>, vector<2x32xf32> -> vector<2x64xf32>
    %69 = vector.extract_strided_slice %61 {offsets = [0, 64], sizes = [2, 32], strides = [1, 1]} : vector<2x256xf32> to vector<2x32xf32>
    %70 = vector.extract_strided_slice %62 {offsets = [0, 192], sizes = [2, 32], strides = [1, 1]} : vector<2x256xf32> to vector<2x32xf32>
    %71 = tpu.concatenate %69, %70 in 1 : vector<2x32xf32>, vector<2x32xf32> -> vector<2x64xf32>
    %72 = vector.extract_strided_slice %61 {offsets = [0, 96], sizes = [2, 32], strides = [1, 1]} : vector<2x256xf32> to vector<2x32xf32>
    %73 = vector.extract_strided_slice %62 {offsets = [0, 224], sizes = [2, 32], strides = [1, 1]} : vector<2x256xf32> to vector<2x32xf32>
    %74 = tpu.concatenate %72, %73 in 1 : vector<2x32xf32>, vector<2x32xf32> -> vector<2x64xf32>
    %cst_18 = arith.constant dense<0.000000e+00> : vector<2x64xf32>
    %75 = tpu.matmul %57, %7, %cst_18 {dimension_numbers = #tpu.dot_dimension_numbers<[1], [0], [0], [1], [0, 0, 1, 1], [], []>} : vector<2x64xf32>, vector<64x64xf32>, vector<2x64xf32> -> vector<2x64xf32>
    %76 = arith.addf %65, %75 : vector<2x64xf32>
    %77 = arith.negf %76 : vector<2x64xf32>
    %78 = math.exp %77 : vector<2x64xf32>
    %cst_19 = arith.constant 1.000000e+00 : f32
    %79 = vector.broadcast %cst_19 : f32 to vector<2x64xf32>
    %80 = arith.addf %79, %78 : vector<2x64xf32>
    %81 = arith.divf %79, %80 : vector<2x64xf32>
    %cst_20 = arith.constant dense<0.000000e+00> : vector<2x64xf32>
    %82 = tpu.matmul %57, %8, %cst_20 {dimension_numbers = #tpu.dot_dimension_numbers<[1], [0], [0], [1], [0, 0, 1, 1], [], []>} : vector<2x64xf32>, vector<64x64xf32>, vector<2x64xf32> -> vector<2x64xf32>
    %83 = arith.addf %68, %82 : vector<2x64xf32>
    %84 = arith.negf %83 : vector<2x64xf32>
    %85 = math.exp %84 : vector<2x64xf32>
    %cst_21 = arith.constant 1.000000e+00 : f32
    %86 = vector.broadcast %cst_21 : f32 to vector<2x64xf32>
    %87 = arith.addf %86, %85 : vector<2x64xf32>
    %88 = arith.divf %86, %87 : vector<2x64xf32>
    %cst_22 = arith.constant dense<0.000000e+00> : vector<2x64xf32>
    %89 = tpu.matmul %57, %9, %cst_22 {dimension_numbers = #tpu.dot_dimension_numbers<[1], [0], [0], [1], [0, 0, 1, 1], [], []>} : vector<2x64xf32>, vector<64x64xf32>, vector<2x64xf32> -> vector<2x64xf32>
    %90 = arith.addf %71, %89 : vector<2x64xf32>
    %91 = math.tanh %90 : vector<2x64xf32>
    %cst_23 = arith.constant dense<0.000000e+00> : vector<2x64xf32>
    %92 = tpu.matmul %57, %10, %cst_23 {dimension_numbers = #tpu.dot_dimension_numbers<[1], [0], [0], [1], [0, 0, 1, 1], [], []>} : vector<2x64xf32>, vector<64x64xf32>, vector<2x64xf32> -> vector<2x64xf32>
    %93 = arith.addf %74, %92 : vector<2x64xf32>
    %94 = arith.negf %93 : vector<2x64xf32>
    %95 = math.exp %94 : vector<2x64xf32>
    %cst_24 = arith.constant 1.000000e+00 : f32
    %96 = vector.broadcast %cst_24 : f32 to vector<2x64xf32>
    %97 = arith.addf %96, %95 : vector<2x64xf32>
    %98 = arith.divf %96, %97 : vector<2x64xf32>
    %99 = arith.mulf %88, %55 : vector<2x64xf32>
    %100 = arith.mulf %81, %91 : vector<2x64xf32>
    %101 = arith.addf %99, %100 : vector<2x64xf32>
    %102 = math.tanh %101 : vector<2x64xf32>
    %103 = arith.mulf %98, %102 : vector<2x64xf32>
    %104 = arith.maximumf %58, %103 : vector<2x64xf32>
    %105 = vector.extract_strided_slice %0 {offsets = [2, 0], sizes = [2, 32], strides = [1, 1]} : vector<16x32xf32> to vector<2x32xf32>
    %106 = arith.maximumf %60, %105 : vector<2x32xf32>
    %107 = vector.extract_strided_slice %5 {offsets = [4, 0], sizes = [2, 256], strides = [1, 1]} : vector<16x256xf32> to vector<2x256xf32>
    %108 = vector.extract_strided_slice %5 {offsets = [10, 0], sizes = [2, 256], strides = [1, 1]} : vector<16x256xf32> to vector<2x256xf32>
    %109 = vector.extract_strided_slice %107 {offsets = [0, 0], sizes = [2, 32], strides = [1, 1]} : vector<2x256xf32> to vector<2x32xf32>
    %110 = vector.extract_strided_slice %108 {offsets = [0, 128], sizes = [2, 32], strides = [1, 1]} : vector<2x256xf32> to vector<2x32xf32>
    %111 = tpu.concatenate %109, %110 in 1 : vector<2x32xf32>, vector<2x32xf32> -> vector<2x64xf32>
    %112 = vector.extract_strided_slice %107 {offsets = [0, 32], sizes = [2, 32], strides = [1, 1]} : vector<2x256xf32> to vector<2x32xf32>
    %113 = vector.extract_strided_slice %108 {offsets = [0, 160], sizes = [2, 32], strides = [1, 1]} : vector<2x256xf32> to vector<2x32xf32>
    %114 = tpu.concatenate %112, %113 in 1 : vector<2x32xf32>, vector<2x32xf32> -> vector<2x64xf32>
    %115 = vector.extract_strided_slice %107 {offsets = [0, 64], sizes = [2, 32], strides = [1, 1]} : vector<2x256xf32> to vector<2x32xf32>
    %116 = vector.extract_strided_slice %108 {offsets = [0, 192], sizes = [2, 32], strides = [1, 1]} : vector<2x256xf32> to vector<2x32xf32>
    %117 = tpu.concatenate %115, %116 in 1 : vector<2x32xf32>, vector<2x32xf32> -> vector<2x64xf32>
    %118 = vector.extract_strided_slice %107 {offsets = [0, 96], sizes = [2, 32], strides = [1, 1]} : vector<2x256xf32> to vector<2x32xf32>
    %119 = vector.extract_strided_slice %108 {offsets = [0, 224], sizes = [2, 32], strides = [1, 1]} : vector<2x256xf32> to vector<2x32xf32>
    %120 = tpu.concatenate %118, %119 in 1 : vector<2x32xf32>, vector<2x32xf32> -> vector<2x64xf32>
    %cst_25 = arith.constant dense<0.000000e+00> : vector<2x64xf32>
    %121 = tpu.matmul %103, %7, %cst_25 {dimension_numbers = #tpu.dot_dimension_numbers<[1], [0], [0], [1], [0, 0, 1, 1], [], []>} : vector<2x64xf32>, vector<64x64xf32>, vector<2x64xf32> -> vector<2x64xf32>
    %122 = arith.addf %111, %121 : vector<2x64xf32>
    %123 = arith.negf %122 : vector<2x64xf32>
    %124 = math.exp %123 : vector<2x64xf32>
    %cst_26 = arith.constant 1.000000e+00 : f32
    %125 = vector.broadcast %cst_26 : f32 to vector<2x64xf32>
    %126 = arith.addf %125, %124 : vector<2x64xf32>
    %127 = arith.divf %125, %126 : vector<2x64xf32>
    %cst_27 = arith.constant dense<0.000000e+00> : vector<2x64xf32>
    %128 = tpu.matmul %103, %8, %cst_27 {dimension_numbers = #tpu.dot_dimension_numbers<[1], [0], [0], [1], [0, 0, 1, 1], [], []>} : vector<2x64xf32>, vector<64x64xf32>, vector<2x64xf32> -> vector<2x64xf32>
    %129 = arith.addf %114, %128 : vector<2x64xf32>
    %130 = arith.negf %129 : vector<2x64xf32>
    %131 = math.exp %130 : vector<2x64xf32>
    %cst_28 = arith.constant 1.000000e+00 : f32
    %132 = vector.broadcast %cst_28 : f32 to vector<2x64xf32>
    %133 = arith.addf %132, %131 : vector<2x64xf32>
    %134 = arith.divf %132, %133 : vector<2x64xf32>
    %cst_29 = arith.constant dense<0.000000e+00> : vector<2x64xf32>
    %135 = tpu.matmul %103, %9, %cst_29 {dimension_numbers = #tpu.dot_dimension_numbers<[1], [0], [0], [1], [0, 0, 1, 1], [], []>} : vector<2x64xf32>, vector<64x64xf32>, vector<2x64xf32> -> vector<2x64xf32>
    %136 = arith.addf %117, %135 : vector<2x64xf32>
    %137 = math.tanh %136 : vector<2x64xf32>
    %cst_30 = arith.constant dense<0.000000e+00> : vector<2x64xf32>
    %138 = tpu.matmul %103, %10, %cst_30 {dimension_numbers = #tpu.dot_dimension_numbers<[1], [0], [0], [1], [0, 0, 1, 1], [], []>} : vector<2x64xf32>, vector<64x64xf32>, vector<2x64xf32> -> vector<2x64xf32>
    %139 = arith.addf %120, %138 : vector<2x64xf32>
    %140 = arith.negf %139 : vector<2x64xf32>
    %141 = math.exp %140 : vector<2x64xf32>
    %cst_31 = arith.constant 1.000000e+00 : f32
    %142 = vector.broadcast %cst_31 : f32 to vector<2x64xf32>
    %143 = arith.addf %142, %141 : vector<2x64xf32>
    %144 = arith.divf %142, %143 : vector<2x64xf32>
    %145 = arith.mulf %134, %101 : vector<2x64xf32>
    %146 = arith.mulf %127, %137 : vector<2x64xf32>
    %147 = arith.addf %145, %146 : vector<2x64xf32>
    %148 = math.tanh %147 : vector<2x64xf32>
    %149 = arith.mulf %144, %148 : vector<2x64xf32>
    %150 = arith.maximumf %104, %149 : vector<2x64xf32>
    %151 = vector.extract_strided_slice %0 {offsets = [4, 0], sizes = [2, 32], strides = [1, 1]} : vector<16x32xf32> to vector<2x32xf32>
    %152 = arith.maximumf %106, %151 : vector<2x32xf32>
    %153 = vector.extract_strided_slice %5 {offsets = [6, 0], sizes = [2, 256], strides = [1, 1]} : vector<16x256xf32> to vector<2x256xf32>
    %154 = vector.extract_strided_slice %5 {offsets = [8, 0], sizes = [2, 256], strides = [1, 1]} : vector<16x256xf32> to vector<2x256xf32>
    %155 = vector.extract_strided_slice %153 {offsets = [0, 0], sizes = [2, 32], strides = [1, 1]} : vector<2x256xf32> to vector<2x32xf32>
    %156 = vector.extract_strided_slice %154 {offsets = [0, 128], sizes = [2, 32], strides = [1, 1]} : vector<2x256xf32> to vector<2x32xf32>
    %157 = tpu.concatenate %155, %156 in 1 : vector<2x32xf32>, vector<2x32xf32> -> vector<2x64xf32>
    %158 = vector.extract_strided_slice %153 {offsets = [0, 32], sizes = [2, 32], strides = [1, 1]} : vector<2x256xf32> to vector<2x32xf32>
    %159 = vector.extract_strided_slice %154 {offsets = [0, 160], sizes = [2, 32], strides = [1, 1]} : vector<2x256xf32> to vector<2x32xf32>
    %160 = tpu.concatenate %158, %159 in 1 : vector<2x32xf32>, vector<2x32xf32> -> vector<2x64xf32>
    %161 = vector.extract_strided_slice %153 {offsets = [0, 64], sizes = [2, 32], strides = [1, 1]} : vector<2x256xf32> to vector<2x32xf32>
    %162 = vector.extract_strided_slice %154 {offsets = [0, 192], sizes = [2, 32], strides = [1, 1]} : vector<2x256xf32> to vector<2x32xf32>
    %163 = tpu.concatenate %161, %162 in 1 : vector<2x32xf32>, vector<2x32xf32> -> vector<2x64xf32>
    %164 = vector.extract_strided_slice %153 {offsets = [0, 96], sizes = [2, 32], strides = [1, 1]} : vector<2x256xf32> to vector<2x32xf32>
    %165 = vector.extract_strided_slice %154 {offsets = [0, 224], sizes = [2, 32], strides = [1, 1]} : vector<2x256xf32> to vector<2x32xf32>
    %166 = tpu.concatenate %164, %165 in 1 : vector<2x32xf32>, vector<2x32xf32> -> vector<2x64xf32>
    %cst_32 = arith.constant dense<0.000000e+00> : vector<2x64xf32>
    %167 = tpu.matmul %149, %7, %cst_32 {dimension_numbers = #tpu.dot_dimension_numbers<[1], [0], [0], [1], [0, 0, 1, 1], [], []>} : vector<2x64xf32>, vector<64x64xf32>, vector<2x64xf32> -> vector<2x64xf32>
    %168 = arith.addf %157, %167 : vector<2x64xf32>
    %169 = arith.negf %168 : vector<2x64xf32>
    %170 = math.exp %169 : vector<2x64xf32>
    %cst_33 = arith.constant 1.000000e+00 : f32
    %171 = vector.broadcast %cst_33 : f32 to vector<2x64xf32>
    %172 = arith.addf %171, %170 : vector<2x64xf32>
    %173 = arith.divf %171, %172 : vector<2x64xf32>
    %cst_34 = arith.constant dense<0.000000e+00> : vector<2x64xf32>
    %174 = tpu.matmul %149, %8, %cst_34 {dimension_numbers = #tpu.dot_dimension_numbers<[1], [0], [0], [1], [0, 0, 1, 1], [], []>} : vector<2x64xf32>, vector<64x64xf32>, vector<2x64xf32> -> vector<2x64xf32>
    %175 = arith.addf %160, %174 : vector<2x64xf32>
    %176 = arith.negf %175 : vector<2x64xf32>
    %177 = math.exp %176 : vector<2x64xf32>
    %cst_35 = arith.constant 1.000000e+00 : f32
    %178 = vector.broadcast %cst_35 : f32 to vector<2x64xf32>
    %179 = arith.addf %178, %177 : vector<2x64xf32>
    %180 = arith.divf %178, %179 : vector<2x64xf32>
    %cst_36 = arith.constant dense<0.000000e+00> : vector<2x64xf32>
    %181 = tpu.matmul %149, %9, %cst_36 {dimension_numbers = #tpu.dot_dimension_numbers<[1], [0], [0], [1], [0, 0, 1, 1], [], []>} : vector<2x64xf32>, vector<64x64xf32>, vector<2x64xf32> -> vector<2x64xf32>
    %182 = arith.addf %163, %181 : vector<2x64xf32>
    %183 = math.tanh %182 : vector<2x64xf32>
    %cst_37 = arith.constant dense<0.000000e+00> : vector<2x64xf32>
    %184 = tpu.matmul %149, %10, %cst_37 {dimension_numbers = #tpu.dot_dimension_numbers<[1], [0], [0], [1], [0, 0, 1, 1], [], []>} : vector<2x64xf32>, vector<64x64xf32>, vector<2x64xf32> -> vector<2x64xf32>
    %185 = arith.addf %166, %184 : vector<2x64xf32>
    %186 = arith.negf %185 : vector<2x64xf32>
    %187 = math.exp %186 : vector<2x64xf32>
    %cst_38 = arith.constant 1.000000e+00 : f32
    %188 = vector.broadcast %cst_38 : f32 to vector<2x64xf32>
    %189 = arith.addf %188, %187 : vector<2x64xf32>
    %190 = arith.divf %188, %189 : vector<2x64xf32>
    %191 = arith.mulf %180, %147 : vector<2x64xf32>
    %192 = arith.mulf %173, %183 : vector<2x64xf32>
    %193 = arith.addf %191, %192 : vector<2x64xf32>
    %194 = math.tanh %193 : vector<2x64xf32>
    %195 = arith.mulf %190, %194 : vector<2x64xf32>
    %196 = arith.maximumf %150, %195 : vector<2x64xf32>
    %197 = vector.extract_strided_slice %0 {offsets = [6, 0], sizes = [2, 32], strides = [1, 1]} : vector<16x32xf32> to vector<2x32xf32>
    %198 = arith.maximumf %152, %197 : vector<2x32xf32>
    %199 = vector.extract_strided_slice %5 {offsets = [8, 0], sizes = [2, 256], strides = [1, 1]} : vector<16x256xf32> to vector<2x256xf32>
    %200 = vector.extract_strided_slice %5 {offsets = [6, 0], sizes = [2, 256], strides = [1, 1]} : vector<16x256xf32> to vector<2x256xf32>
    %201 = vector.extract_strided_slice %199 {offsets = [0, 0], sizes = [2, 32], strides = [1, 1]} : vector<2x256xf32> to vector<2x32xf32>
    %202 = vector.extract_strided_slice %200 {offsets = [0, 128], sizes = [2, 32], strides = [1, 1]} : vector<2x256xf32> to vector<2x32xf32>
    %203 = tpu.concatenate %201, %202 in 1 : vector<2x32xf32>, vector<2x32xf32> -> vector<2x64xf32>
    %204 = vector.extract_strided_slice %199 {offsets = [0, 32], sizes = [2, 32], strides = [1, 1]} : vector<2x256xf32> to vector<2x32xf32>
    %205 = vector.extract_strided_slice %200 {offsets = [0, 160], sizes = [2, 32], strides = [1, 1]} : vector<2x256xf32> to vector<2x32xf32>
    %206 = tpu.concatenate %204, %205 in 1 : vector<2x32xf32>, vector<2x32xf32> -> vector<2x64xf32>
    %207 = vector.extract_strided_slice %199 {offsets = [0, 64], sizes = [2, 32], strides = [1, 1]} : vector<2x256xf32> to vector<2x32xf32>
    %208 = vector.extract_strided_slice %200 {offsets = [0, 192], sizes = [2, 32], strides = [1, 1]} : vector<2x256xf32> to vector<2x32xf32>
    %209 = tpu.concatenate %207, %208 in 1 : vector<2x32xf32>, vector<2x32xf32> -> vector<2x64xf32>
    %210 = vector.extract_strided_slice %199 {offsets = [0, 96], sizes = [2, 32], strides = [1, 1]} : vector<2x256xf32> to vector<2x32xf32>
    %211 = vector.extract_strided_slice %200 {offsets = [0, 224], sizes = [2, 32], strides = [1, 1]} : vector<2x256xf32> to vector<2x32xf32>
    %212 = tpu.concatenate %210, %211 in 1 : vector<2x32xf32>, vector<2x32xf32> -> vector<2x64xf32>
    %cst_39 = arith.constant dense<0.000000e+00> : vector<2x64xf32>
    %213 = tpu.matmul %195, %7, %cst_39 {dimension_numbers = #tpu.dot_dimension_numbers<[1], [0], [0], [1], [0, 0, 1, 1], [], []>} : vector<2x64xf32>, vector<64x64xf32>, vector<2x64xf32> -> vector<2x64xf32>
    %214 = arith.addf %203, %213 : vector<2x64xf32>
    %215 = arith.negf %214 : vector<2x64xf32>
    %216 = math.exp %215 : vector<2x64xf32>
    %cst_40 = arith.constant 1.000000e+00 : f32
    %217 = vector.broadcast %cst_40 : f32 to vector<2x64xf32>
    %218 = arith.addf %217, %216 : vector<2x64xf32>
    %219 = arith.divf %217, %218 : vector<2x64xf32>
    %cst_41 = arith.constant dense<0.000000e+00> : vector<2x64xf32>
    %220 = tpu.matmul %195, %8, %cst_41 {dimension_numbers = #tpu.dot_dimension_numbers<[1], [0], [0], [1], [0, 0, 1, 1], [], []>} : vector<2x64xf32>, vector<64x64xf32>, vector<2x64xf32> -> vector<2x64xf32>
    %221 = arith.addf %206, %220 : vector<2x64xf32>
    %222 = arith.negf %221 : vector<2x64xf32>
    %223 = math.exp %222 : vector<2x64xf32>
    %cst_42 = arith.constant 1.000000e+00 : f32
    %224 = vector.broadcast %cst_42 : f32 to vector<2x64xf32>
    %225 = arith.addf %224, %223 : vector<2x64xf32>
    %226 = arith.divf %224, %225 : vector<2x64xf32>
    %cst_43 = arith.constant dense<0.000000e+00> : vector<2x64xf32>
    %227 = tpu.matmul %195, %9, %cst_43 {dimension_numbers = #tpu.dot_dimension_numbers<[1], [0], [0], [1], [0, 0, 1, 1], [], []>} : vector<2x64xf32>, vector<64x64xf32>, vector<2x64xf32> -> vector<2x64xf32>
    %228 = arith.addf %209, %227 : vector<2x64xf32>
    %229 = math.tanh %228 : vector<2x64xf32>
    %cst_44 = arith.constant dense<0.000000e+00> : vector<2x64xf32>
    %230 = tpu.matmul %195, %10, %cst_44 {dimension_numbers = #tpu.dot_dimension_numbers<[1], [0], [0], [1], [0, 0, 1, 1], [], []>} : vector<2x64xf32>, vector<64x64xf32>, vector<2x64xf32> -> vector<2x64xf32>
    %231 = arith.addf %212, %230 : vector<2x64xf32>
    %232 = arith.negf %231 : vector<2x64xf32>
    %233 = math.exp %232 : vector<2x64xf32>
    %cst_45 = arith.constant 1.000000e+00 : f32
    %234 = vector.broadcast %cst_45 : f32 to vector<2x64xf32>
    %235 = arith.addf %234, %233 : vector<2x64xf32>
    %236 = arith.divf %234, %235 : vector<2x64xf32>
    %237 = arith.mulf %226, %193 : vector<2x64xf32>
    %238 = arith.mulf %219, %229 : vector<2x64xf32>
    %239 = arith.addf %237, %238 : vector<2x64xf32>
    %240 = math.tanh %239 : vector<2x64xf32>
    %241 = arith.mulf %236, %240 : vector<2x64xf32>
    %242 = arith.maximumf %196, %241 : vector<2x64xf32>
    %243 = vector.extract_strided_slice %0 {offsets = [8, 0], sizes = [2, 32], strides = [1, 1]} : vector<16x32xf32> to vector<2x32xf32>
    %244 = arith.maximumf %198, %243 : vector<2x32xf32>
    %245 = vector.extract_strided_slice %5 {offsets = [10, 0], sizes = [2, 256], strides = [1, 1]} : vector<16x256xf32> to vector<2x256xf32>
    %246 = vector.extract_strided_slice %5 {offsets = [4, 0], sizes = [2, 256], strides = [1, 1]} : vector<16x256xf32> to vector<2x256xf32>
    %247 = vector.extract_strided_slice %245 {offsets = [0, 0], sizes = [2, 32], strides = [1, 1]} : vector<2x256xf32> to vector<2x32xf32>
    %248 = vector.extract_strided_slice %246 {offsets = [0, 128], sizes = [2, 32], strides = [1, 1]} : vector<2x256xf32> to vector<2x32xf32>
    %249 = tpu.concatenate %247, %248 in 1 : vector<2x32xf32>, vector<2x32xf32> -> vector<2x64xf32>
    %250 = vector.extract_strided_slice %245 {offsets = [0, 32], sizes = [2, 32], strides = [1, 1]} : vector<2x256xf32> to vector<2x32xf32>
    %251 = vector.extract_strided_slice %246 {offsets = [0, 160], sizes = [2, 32], strides = [1, 1]} : vector<2x256xf32> to vector<2x32xf32>
    %252 = tpu.concatenate %250, %251 in 1 : vector<2x32xf32>, vector<2x32xf32> -> vector<2x64xf32>
    %253 = vector.extract_strided_slice %245 {offsets = [0, 64], sizes = [2, 32], strides = [1, 1]} : vector<2x256xf32> to vector<2x32xf32>
    %254 = vector.extract_strided_slice %246 {offsets = [0, 192], sizes = [2, 32], strides = [1, 1]} : vector<2x256xf32> to vector<2x32xf32>
    %255 = tpu.concatenate %253, %254 in 1 : vector<2x32xf32>, vector<2x32xf32> -> vector<2x64xf32>
    %256 = vector.extract_strided_slice %245 {offsets = [0, 96], sizes = [2, 32], strides = [1, 1]} : vector<2x256xf32> to vector<2x32xf32>
    %257 = vector.extract_strided_slice %246 {offsets = [0, 224], sizes = [2, 32], strides = [1, 1]} : vector<2x256xf32> to vector<2x32xf32>
    %258 = tpu.concatenate %256, %257 in 1 : vector<2x32xf32>, vector<2x32xf32> -> vector<2x64xf32>
    %cst_46 = arith.constant dense<0.000000e+00> : vector<2x64xf32>
    %259 = tpu.matmul %241, %7, %cst_46 {dimension_numbers = #tpu.dot_dimension_numbers<[1], [0], [0], [1], [0, 0, 1, 1], [], []>} : vector<2x64xf32>, vector<64x64xf32>, vector<2x64xf32> -> vector<2x64xf32>
    %260 = arith.addf %249, %259 : vector<2x64xf32>
    %261 = arith.negf %260 : vector<2x64xf32>
    %262 = math.exp %261 : vector<2x64xf32>
    %cst_47 = arith.constant 1.000000e+00 : f32
    %263 = vector.broadcast %cst_47 : f32 to vector<2x64xf32>
    %264 = arith.addf %263, %262 : vector<2x64xf32>
    %265 = arith.divf %263, %264 : vector<2x64xf32>
    %cst_48 = arith.constant dense<0.000000e+00> : vector<2x64xf32>
    %266 = tpu.matmul %241, %8, %cst_48 {dimension_numbers = #tpu.dot_dimension_numbers<[1], [0], [0], [1], [0, 0, 1, 1], [], []>} : vector<2x64xf32>, vector<64x64xf32>, vector<2x64xf32> -> vector<2x64xf32>
    %267 = arith.addf %252, %266 : vector<2x64xf32>
    %268 = arith.negf %267 : vector<2x64xf32>
    %269 = math.exp %268 : vector<2x64xf32>
    %cst_49 = arith.constant 1.000000e+00 : f32
    %270 = vector.broadcast %cst_49 : f32 to vector<2x64xf32>
    %271 = arith.addf %270, %269 : vector<2x64xf32>
    %272 = arith.divf %270, %271 : vector<2x64xf32>
    %cst_50 = arith.constant dense<0.000000e+00> : vector<2x64xf32>
    %273 = tpu.matmul %241, %9, %cst_50 {dimension_numbers = #tpu.dot_dimension_numbers<[1], [0], [0], [1], [0, 0, 1, 1], [], []>} : vector<2x64xf32>, vector<64x64xf32>, vector<2x64xf32> -> vector<2x64xf32>
    %274 = arith.addf %255, %273 : vector<2x64xf32>
    %275 = math.tanh %274 : vector<2x64xf32>
    %cst_51 = arith.constant dense<0.000000e+00> : vector<2x64xf32>
    %276 = tpu.matmul %241, %10, %cst_51 {dimension_numbers = #tpu.dot_dimension_numbers<[1], [0], [0], [1], [0, 0, 1, 1], [], []>} : vector<2x64xf32>, vector<64x64xf32>, vector<2x64xf32> -> vector<2x64xf32>
    %277 = arith.addf %258, %276 : vector<2x64xf32>
    %278 = arith.negf %277 : vector<2x64xf32>
    %279 = math.exp %278 : vector<2x64xf32>
    %cst_52 = arith.constant 1.000000e+00 : f32
    %280 = vector.broadcast %cst_52 : f32 to vector<2x64xf32>
    %281 = arith.addf %280, %279 : vector<2x64xf32>
    %282 = arith.divf %280, %281 : vector<2x64xf32>
    %283 = arith.mulf %272, %239 : vector<2x64xf32>
    %284 = arith.mulf %265, %275 : vector<2x64xf32>
    %285 = arith.addf %283, %284 : vector<2x64xf32>
    %286 = math.tanh %285 : vector<2x64xf32>
    %287 = arith.mulf %282, %286 : vector<2x64xf32>
    %288 = arith.maximumf %242, %287 : vector<2x64xf32>
    %289 = vector.extract_strided_slice %0 {offsets = [10, 0], sizes = [2, 32], strides = [1, 1]} : vector<16x32xf32> to vector<2x32xf32>
    %290 = arith.maximumf %244, %289 : vector<2x32xf32>
    %291 = vector.extract_strided_slice %5 {offsets = [12, 0], sizes = [2, 256], strides = [1, 1]} : vector<16x256xf32> to vector<2x256xf32>
    %292 = vector.extract_strided_slice %5 {offsets = [2, 0], sizes = [2, 256], strides = [1, 1]} : vector<16x256xf32> to vector<2x256xf32>
    %293 = vector.extract_strided_slice %291 {offsets = [0, 0], sizes = [2, 32], strides = [1, 1]} : vector<2x256xf32> to vector<2x32xf32>
    %294 = vector.extract_strided_slice %292 {offsets = [0, 128], sizes = [2, 32], strides = [1, 1]} : vector<2x256xf32> to vector<2x32xf32>
    %295 = tpu.concatenate %293, %294 in 1 : vector<2x32xf32>, vector<2x32xf32> -> vector<2x64xf32>
    %296 = vector.extract_strided_slice %291 {offsets = [0, 32], sizes = [2, 32], strides = [1, 1]} : vector<2x256xf32> to vector<2x32xf32>
    %297 = vector.extract_strided_slice %292 {offsets = [0, 160], sizes = [2, 32], strides = [1, 1]} : vector<2x256xf32> to vector<2x32xf32>
    %298 = tpu.concatenate %296, %297 in 1 : vector<2x32xf32>, vector<2x32xf32> -> vector<2x64xf32>
    %299 = vector.extract_strided_slice %291 {offsets = [0, 64], sizes = [2, 32], strides = [1, 1]} : vector<2x256xf32> to vector<2x32xf32>
    %300 = vector.extract_strided_slice %292 {offsets = [0, 192], sizes = [2, 32], strides = [1, 1]} : vector<2x256xf32> to vector<2x32xf32>
    %301 = tpu.concatenate %299, %300 in 1 : vector<2x32xf32>, vector<2x32xf32> -> vector<2x64xf32>
    %302 = vector.extract_strided_slice %291 {offsets = [0, 96], sizes = [2, 32], strides = [1, 1]} : vector<2x256xf32> to vector<2x32xf32>
    %303 = vector.extract_strided_slice %292 {offsets = [0, 224], sizes = [2, 32], strides = [1, 1]} : vector<2x256xf32> to vector<2x32xf32>
    %304 = tpu.concatenate %302, %303 in 1 : vector<2x32xf32>, vector<2x32xf32> -> vector<2x64xf32>
    %cst_53 = arith.constant dense<0.000000e+00> : vector<2x64xf32>
    %305 = tpu.matmul %287, %7, %cst_53 {dimension_numbers = #tpu.dot_dimension_numbers<[1], [0], [0], [1], [0, 0, 1, 1], [], []>} : vector<2x64xf32>, vector<64x64xf32>, vector<2x64xf32> -> vector<2x64xf32>
    %306 = arith.addf %295, %305 : vector<2x64xf32>
    %307 = arith.negf %306 : vector<2x64xf32>
    %308 = math.exp %307 : vector<2x64xf32>
    %cst_54 = arith.constant 1.000000e+00 : f32
    %309 = vector.broadcast %cst_54 : f32 to vector<2x64xf32>
    %310 = arith.addf %309, %308 : vector<2x64xf32>
    %311 = arith.divf %309, %310 : vector<2x64xf32>
    %cst_55 = arith.constant dense<0.000000e+00> : vector<2x64xf32>
    %312 = tpu.matmul %287, %8, %cst_55 {dimension_numbers = #tpu.dot_dimension_numbers<[1], [0], [0], [1], [0, 0, 1, 1], [], []>} : vector<2x64xf32>, vector<64x64xf32>, vector<2x64xf32> -> vector<2x64xf32>
    %313 = arith.addf %298, %312 : vector<2x64xf32>
    %314 = arith.negf %313 : vector<2x64xf32>
    %315 = math.exp %314 : vector<2x64xf32>
    %cst_56 = arith.constant 1.000000e+00 : f32
    %316 = vector.broadcast %cst_56 : f32 to vector<2x64xf32>
    %317 = arith.addf %316, %315 : vector<2x64xf32>
    %318 = arith.divf %316, %317 : vector<2x64xf32>
    %cst_57 = arith.constant dense<0.000000e+00> : vector<2x64xf32>
    %319 = tpu.matmul %287, %9, %cst_57 {dimension_numbers = #tpu.dot_dimension_numbers<[1], [0], [0], [1], [0, 0, 1, 1], [], []>} : vector<2x64xf32>, vector<64x64xf32>, vector<2x64xf32> -> vector<2x64xf32>
    %320 = arith.addf %301, %319 : vector<2x64xf32>
    %321 = math.tanh %320 : vector<2x64xf32>
    %cst_58 = arith.constant dense<0.000000e+00> : vector<2x64xf32>
    %322 = tpu.matmul %287, %10, %cst_58 {dimension_numbers = #tpu.dot_dimension_numbers<[1], [0], [0], [1], [0, 0, 1, 1], [], []>} : vector<2x64xf32>, vector<64x64xf32>, vector<2x64xf32> -> vector<2x64xf32>
    %323 = arith.addf %304, %322 : vector<2x64xf32>
    %324 = arith.negf %323 : vector<2x64xf32>
    %325 = math.exp %324 : vector<2x64xf32>
    %cst_59 = arith.constant 1.000000e+00 : f32
    %326 = vector.broadcast %cst_59 : f32 to vector<2x64xf32>
    %327 = arith.addf %326, %325 : vector<2x64xf32>
    %328 = arith.divf %326, %327 : vector<2x64xf32>
    %329 = arith.mulf %318, %285 : vector<2x64xf32>
    %330 = arith.mulf %311, %321 : vector<2x64xf32>
    %331 = arith.addf %329, %330 : vector<2x64xf32>
    %332 = math.tanh %331 : vector<2x64xf32>
    %333 = arith.mulf %328, %332 : vector<2x64xf32>
    %334 = arith.maximumf %288, %333 : vector<2x64xf32>
    %335 = vector.extract_strided_slice %0 {offsets = [12, 0], sizes = [2, 32], strides = [1, 1]} : vector<16x32xf32> to vector<2x32xf32>
    %336 = arith.maximumf %290, %335 : vector<2x32xf32>
    %337 = vector.extract_strided_slice %5 {offsets = [14, 0], sizes = [2, 256], strides = [1, 1]} : vector<16x256xf32> to vector<2x256xf32>
    %338 = vector.extract_strided_slice %5 {offsets = [0, 0], sizes = [2, 256], strides = [1, 1]} : vector<16x256xf32> to vector<2x256xf32>
    %339 = vector.extract_strided_slice %337 {offsets = [0, 0], sizes = [2, 32], strides = [1, 1]} : vector<2x256xf32> to vector<2x32xf32>
    %340 = vector.extract_strided_slice %338 {offsets = [0, 128], sizes = [2, 32], strides = [1, 1]} : vector<2x256xf32> to vector<2x32xf32>
    %341 = tpu.concatenate %339, %340 in 1 : vector<2x32xf32>, vector<2x32xf32> -> vector<2x64xf32>
    %342 = vector.extract_strided_slice %337 {offsets = [0, 32], sizes = [2, 32], strides = [1, 1]} : vector<2x256xf32> to vector<2x32xf32>
    %343 = vector.extract_strided_slice %338 {offsets = [0, 160], sizes = [2, 32], strides = [1, 1]} : vector<2x256xf32> to vector<2x32xf32>
    %344 = tpu.concatenate %342, %343 in 1 : vector<2x32xf32>, vector<2x32xf32> -> vector<2x64xf32>
    %345 = vector.extract_strided_slice %337 {offsets = [0, 64], sizes = [2, 32], strides = [1, 1]} : vector<2x256xf32> to vector<2x32xf32>
    %346 = vector.extract_strided_slice %338 {offsets = [0, 192], sizes = [2, 32], strides = [1, 1]} : vector<2x256xf32> to vector<2x32xf32>
    %347 = tpu.concatenate %345, %346 in 1 : vector<2x32xf32>, vector<2x32xf32> -> vector<2x64xf32>
    %348 = vector.extract_strided_slice %337 {offsets = [0, 96], sizes = [2, 32], strides = [1, 1]} : vector<2x256xf32> to vector<2x32xf32>
    %349 = vector.extract_strided_slice %338 {offsets = [0, 224], sizes = [2, 32], strides = [1, 1]} : vector<2x256xf32> to vector<2x32xf32>
    %350 = tpu.concatenate %348, %349 in 1 : vector<2x32xf32>, vector<2x32xf32> -> vector<2x64xf32>
    %cst_60 = arith.constant dense<0.000000e+00> : vector<2x64xf32>
    %351 = tpu.matmul %333, %7, %cst_60 {dimension_numbers = #tpu.dot_dimension_numbers<[1], [0], [0], [1], [0, 0, 1, 1], [], []>} : vector<2x64xf32>, vector<64x64xf32>, vector<2x64xf32> -> vector<2x64xf32>
    %352 = arith.addf %341, %351 : vector<2x64xf32>
    %353 = arith.negf %352 : vector<2x64xf32>
    %354 = math.exp %353 : vector<2x64xf32>
    %cst_61 = arith.constant 1.000000e+00 : f32
    %355 = vector.broadcast %cst_61 : f32 to vector<2x64xf32>
    %356 = arith.addf %355, %354 : vector<2x64xf32>
    %357 = arith.divf %355, %356 : vector<2x64xf32>
    %cst_62 = arith.constant dense<0.000000e+00> : vector<2x64xf32>
    %358 = tpu.matmul %333, %8, %cst_62 {dimension_numbers = #tpu.dot_dimension_numbers<[1], [0], [0], [1], [0, 0, 1, 1], [], []>} : vector<2x64xf32>, vector<64x64xf32>, vector<2x64xf32> -> vector<2x64xf32>
    %359 = arith.addf %344, %358 : vector<2x64xf32>
    %360 = arith.negf %359 : vector<2x64xf32>
    %361 = math.exp %360 : vector<2x64xf32>
    %cst_63 = arith.constant 1.000000e+00 : f32
    %362 = vector.broadcast %cst_63 : f32 to vector<2x64xf32>
    %363 = arith.addf %362, %361 : vector<2x64xf32>
    %364 = arith.divf %362, %363 : vector<2x64xf32>
    %cst_64 = arith.constant dense<0.000000e+00> : vector<2x64xf32>
    %365 = tpu.matmul %333, %9, %cst_64 {dimension_numbers = #tpu.dot_dimension_numbers<[1], [0], [0], [1], [0, 0, 1, 1], [], []>} : vector<2x64xf32>, vector<64x64xf32>, vector<2x64xf32> -> vector<2x64xf32>
    %366 = arith.addf %347, %365 : vector<2x64xf32>
    %367 = math.tanh %366 : vector<2x64xf32>
    %cst_65 = arith.constant dense<0.000000e+00> : vector<2x64xf32>
    %368 = tpu.matmul %333, %10, %cst_65 {dimension_numbers = #tpu.dot_dimension_numbers<[1], [0], [0], [1], [0, 0, 1, 1], [], []>} : vector<2x64xf32>, vector<64x64xf32>, vector<2x64xf32> -> vector<2x64xf32>
    %369 = arith.addf %350, %368 : vector<2x64xf32>
    %370 = arith.negf %369 : vector<2x64xf32>
    %371 = math.exp %370 : vector<2x64xf32>
    %cst_66 = arith.constant 1.000000e+00 : f32
    %372 = vector.broadcast %cst_66 : f32 to vector<2x64xf32>
    %373 = arith.addf %372, %371 : vector<2x64xf32>
    %374 = arith.divf %372, %373 : vector<2x64xf32>
    %375 = arith.mulf %364, %331 : vector<2x64xf32>
    %376 = arith.mulf %357, %367 : vector<2x64xf32>
    %377 = arith.addf %375, %376 : vector<2x64xf32>
    %378 = math.tanh %377 : vector<2x64xf32>
    %379 = arith.mulf %374, %378 : vector<2x64xf32>
    %380 = arith.maximumf %334, %379 : vector<2x64xf32>
    %381 = vector.extract_strided_slice %0 {offsets = [14, 0], sizes = [2, 32], strides = [1, 1]} : vector<16x32xf32> to vector<2x32xf32>
    %382 = arith.maximumf %336, %381 : vector<2x32xf32>
    %c0_67 = arith.constant 0 : index
    %c0_68 = arith.constant 0 : index
    %383 = vector.load %arg4[%c0_67, %c0_68] : memref<32x128xf32, #tpu.memory_space<vmem>>, vector<32x128xf32>
    %cst_69 = arith.constant dense<0.000000e+00> : vector<2x128xf32>
    %384 = tpu.matmul %382, %383, %cst_69 {dimension_numbers = #tpu.dot_dimension_numbers<[1], [0], [0], [1], [0, 0, 1, 1], [], []>} : vector<2x32xf32>, vector<32x128xf32>, vector<2x128xf32> -> vector<2x128xf32>
    %c0_70 = arith.constant 0 : index
    %c0_71 = arith.constant 0 : index
    %385 = vector.load %arg5[%c0_70, %c0_71] : memref<64x128xf32, #tpu.memory_space<vmem>>, vector<64x128xf32>
    %cst_72 = arith.constant dense<0.000000e+00> : vector<2x128xf32>
    %386 = tpu.matmul %380, %385, %cst_72 {dimension_numbers = #tpu.dot_dimension_numbers<[1], [0], [0], [1], [0, 0, 1, 1], [], []>} : vector<2x64xf32>, vector<64x128xf32>, vector<2x128xf32> -> vector<2x128xf32>
    %387 = arith.addf %384, %386 : vector<2x128xf32>
    %c0_73 = arith.constant 0 : index
    %c0_74 = arith.constant 0 : index
    %388 = vector.load %arg6[%c0_73, %c0_74] : memref<1x128xf32, #tpu.memory_space<vmem>>, vector<1x128xf32>
    %389 = vector.broadcast %388 : vector<1x128xf32> to vector<2x128xf32>
    %390 = arith.addf %387, %389 : vector<2x128xf32>
    %c0_75 = arith.constant 0 : index
    %c0_76 = arith.constant 0 : index
    %391 = vector.load %arg7[%c0_75, %c0_76] : memref<2x128xf32, #tpu.memory_space<vmem>>, vector<2x128xf32>
    tpu.vector_store %arg7[%c0_75, %c0_76], %390 {strides = array<i32>} : memref<2x128xf32, #tpu.memory_space<vmem>>, vector<2x128xf32>,
    return
  }
}

</mosaic_0001>

<llo_original>
// kernel: text_rcnn_forward.1
$region0: #{text_rcnn_forward.1}
  #allocation0 [shape = 'u32[]', space=smem, size = 0x4, offset = 0x4, fixed_abs, tag = 'smem constant byte address 0x4 - core index']
  #allocation1 [shape = 'u32[144,128]{1,0:T(1,128)}', space=vmem, size = 0x12000, scoped, tag = 'internal scratch']
  %s0 = inlined_call_operand.vmem [shape: f32[16,32], index: 0, kind: input, shape index: {}]
  %s1 = inlined_call_operand.vmem [shape: f32[32,256], index: 1, kind: input, shape index: {}]
  %s2 = inlined_call_operand.vmem [shape: f32[1,256], index: 2, kind: input, shape index: {}]
  %s3 = inlined_call_operand.vmem [shape: f32[64,256], index: 3, kind: input, shape index: {}]
  %s4 = inlined_call_operand.hbm [shape: f32[32,128], index: 4, kind: input, shape index: {}]
  %s5 = inlined_call_operand.vmem [shape: f32[64,128], index: 5, kind: input, shape index: {}]
  %s6 = inlined_call_operand.vmem [shape: f32[1,128], index: 6, kind: input, shape index: {}]
  %s7 = inlined_call_operand.hbm [shape: f32[2,128], index: 7, kind: output, shape index: {}]
  %s8 = sld [smem:[#allocation0]]
  $region42: #{text_rcnn_forward.1} parent=0
    _
  %s10 = ssub.s32 1, %s8
  %s11 = scalar_select 0, %s10, %s8
  $region1: #{text_rcnn_forward.1} parent=0
    #allocation2 [shape = 'u8[16384]{0}', space=vmem, size = 0x4000, scoped, tag = 'input window, operand 4, single buffered']
    #allocation3 [shape = 's32[1]{0}', space=sflag, size = 0x4, scoped, tag = 'scoped memory for text_rcnn_forward.1']
    #allocation4 [shape = 's32[1]{0}', space=sflag, size = 0x4, scoped, tag = 'scoped memory for text_rcnn_forward.1']
    #allocation5 [shape = 'u8[1024]{0}', space=vmem, size = 0x400, scoped, tag = 'output window, operand 0, single buffered']
    %12 = vsyncpa [#allocation3], 0
    %13 = vsyncpa [#allocation4], 0
    // Predicated region
    $region2: #{text_rcnn_forward.1} parent=1 // pred_check
      _
    $region3: #{text_rcnn_forward.1} parent=1 // pred_check_branch
      %15 = sbr.rel (0) target = $region5
    $region4: #{text_rcnn_forward.1} parent=1 // pred_region
      _
    $region5: #{text_rcnn_forward.1} parent=1 // pred_fallthru
      _
    // Predicated region
    $region6: #{text_rcnn_forward.1} parent=1 // pred_check
      _
    $region7: #{text_rcnn_forward.1} parent=1 // pred_check_branch
      %17 = sbr.rel (0) target = $region9
    $region8: #{text_rcnn_forward.1} parent=1 // pred_region
      _
    $region9: #{text_rcnn_forward.1} parent=1 // pred_fallthru
      _
    // Predicated region
    $region10: #{text_rcnn_forward.1} parent=1 // pred_check
      _
    $region11: #{text_rcnn_forward.1} parent=1 // pred_check_branch
      %19 = sbr.rel (0) target = $region13
    $region12: #{text_rcnn_forward.1} parent=1 // pred_region
      _
    $region13: #{text_rcnn_forward.1} parent=1 // pred_fallthru
      _
    // Predicated region
    $region14: #{text_rcnn_forward.1} parent=1 // pred_check
      _
    $region15: #{text_rcnn_forward.1} parent=1 // pred_check_branch
      %21 = sbr.rel (0) target = $region17
    $region16: #{text_rcnn_forward.1} parent=1 // pred_region
      _
    $region17: #{text_rcnn_forward.1} parent=1 // pred_fallthru
      _
    // Predicated region
    $region18: #{text_rcnn_forward.1} parent=1 // pred_check
      _
    $region19: #{text_rcnn_forward.1} parent=1 // pred_check_branch
      %23 = sbr.rel (0) target = $region21
    $region20: #{text_rcnn_forward.1} parent=1 // pred_region
      %s25 = ssub.s32 512, 512
      %26 = vsyncadd [#allocation3], %s25
      %s27 = sshll.u32 [#allocation2], 4
      %s28 = int_to_ptr.vmem [resolvable:$true] %s27
      %33 = dma.hbm_to_vmem [thread:$0]  %s4, 512, %s28, [#allocation3], 128, 128, 8
    $region21: #{text_rcnn_forward.1} parent=1 // pred_fallthru
      _
    // Predicated region
    $region22: #{text_rcnn_forward.1} parent=1 // pred_check
      _
    $region23: #{text_rcnn_forward.1} parent=1 // pred_check_branch
      %35 = sbr.rel (0) target = $region25
    $region24: #{text_rcnn_forward.1} parent=1 // pred_region
      _
    $region25: #{text_rcnn_forward.1} parent=1 // pred_fallthru
      _
    // Predicated region
    $region26: #{text_rcnn_forward.1} parent=1 // pred_check
      _
    $region27: #{text_rcnn_forward.1} parent=1 // pred_check_branch
      %37 = sbr.rel (0) target = $region29
    $region28: #{text_rcnn_forward.1} parent=1 // pred_region
      _
    $region29: #{text_rcnn_forward.1} parent=1 // pred_fallthru
      _
    // Predicated region
    $region30: #{text_rcnn_forward.1} parent=1 // pred_check
      _
    $region31: #{text_rcnn_forward.1} parent=1 // pred_check_branch
      %39 = sbr.rel (0) target = $region33
    $region32: #{text_rcnn_forward.1} parent=1 // pred_region
      %40 = dma.done [#allocation3], 512
    $region33: #{text_rcnn_forward.1} parent=1 // pred_fallthru
      _
    %v41 = vld [vmem:[%s0] sm:$0xff]
    %v42 = vld [vmem:[%s0 + $0x8] sm:$0xff]
    %v43 = vld [vmem:[%s1] sm:$0xff]
    %v44 = vld [vmem:[%s1 + $0x8] sm:$0xff]
    %v45 = vld [vmem:[%s1 + $0x10] sm:$0xff]
    %v46 = vld [vmem:[%s1 + $0x18] sm:$0xff]
    %v47 = vld [vmem:[%s1 + $0x20] sm:$0xff]
    %v48 = vld [vmem:[%s1 + $0x28] sm:$0xff]
    %v49 = vld [vmem:[%s1 + $0x30] sm:$0xff]
    %v50 = vld [vmem:[%s1 + $0x38] sm:$0xff]
    %v51 = vld [vmem:[%s2] sm:$0x3]
    %v53 = vlaneseq
    %v54 = vshrl.u32 %v53, 7
    %v55 = vsub.s32 0, %v54
    %v56 = vrot.slane %v51, %v55
    %v57 = vlaneseq
    %v58 = vshrl.u32 %v57, 7
    %v59 = vsub.s32 1, %v58
    %v60 = vrot.slane %v51, %v59
    %vm63 = vcmask 261120
    %v65 = vsel %vm63, %v41, 0
    %v68 = vsel %vm63, %v42, 0
    %70 = vmatprep.subr.mxu0 0.0
    %71 = vmatpush1.msra.mxu0 0.0
    %72 = vmatprep.subr.mxu0 0.0
    %73 = vmatpush1.msra.mxu0 0.0
    %74 = vmatprep.subr.mxu0 0.0
    %75 = vmatpush1.msra.mxu0 0.0
    %76 = vmatprep.subr.mxu0 0.0
    %77 = vmatpush1.msra.mxu0 0.0
    %78 = vmatprep.subr.mxu0 0.0
    %79 = vmatpush1.msra.mxu0 0.0
    %80 = vmatprep.subr.mxu0 0.0
    %81 = vmatpush1.msra.mxu0 0.0
    %82 = vmatprep.subr.mxu0 0.0
    %83 = vmatpush1.msra.mxu0 0.0
    %84 = vmatprep.subr.mxu0 0.0
    %85 = vmatpush1.msra.mxu0 0.0
    %86 = vmatprep.subr.mxu0 0.0
    %87 = vmatpush1.msra.mxu0 0.0
    %88 = vmatprep.subr.mxu0 0.0
    %89 = vmatpush1.msra.mxu0 0.0
    %90 = vmatprep.subr.mxu0 0.0
    %91 = vmatpush1.msra.mxu0 0.0
    %92 = vmatprep.subr.mxu0 0.0
    %93 = vmatpush1.msra.mxu0 0.0
    %94 = vmatprep.subr.mxu0 %v50
    %95 = vmatpush1.msra.mxu0 %v49
    %96 = vmatprep.subr.mxu0 %v48
    %97 = vmatpush1.msra.mxu0 %v47
    %98 = vmatprep.subr.mxu0 %v46
    %99 = vmatpush1.msra.mxu0 %v45
    %100 = vmatprep.subr.mxu0 %v44
    %101 = vmatpush1.msra.mxu0 %v43
    %102 = vmatprep.subr.mxu0 0.0
    %103 = vmatpush2.msra.mxu0 0.0
    %104 = vmatprep.subr.mxu0 0.0
    %105 = vmatpush2.msra.mxu0 0.0
    %106 = vmatprep.subr.mxu0 0.0
    %107 = vmatpush2.msra.mxu0 0.0
    %108 = vmatprep.subr.mxu0 0.0
    %109 = vmatpush2.msra.mxu0 0.0
    %110 = vmatprep.subr.mxu0 0.0
    %111 = vmatpush2.msra.mxu0 0.0
    %112 = vmatprep.subr.mxu0 0.0
    %113 = vmatpush2.msra.mxu0 0.0
    %114 = vmatprep.subr.mxu0 0.0
    %115 = vmatpush2.msra.mxu0 0.0
    %116 = vmatprep.subr.mxu0 0.0
    %117 = vmatpush2.msra.mxu0 0.0
    %118 = vmatprep.subr.mxu0 0.0
    %119 = vmatpush2.msra.mxu0 0.0
    %120 = vmatprep.subr.mxu0 0.0
    %121 = vmatpush2.msra.mxu0 0.0
    %122 = vmatprep.subr.mxu0 0.0
    %123 = vmatpush2.msra.mxu0 0.0
    %124 = vmatprep.subr.mxu0 0.0
    %125 = vmatpush2.msra.mxu0 0.0
    %126 = vmatprep.subr.mxu0 0.0
    %127 = vmatpush2.msra.mxu0 0.0
    %128 = vmatprep.subr.mxu0 0.0
    %129 = vmatpush2.msra.mxu0 0.0
    %130 = vmatprep.subr.mxu0 0.0
    %131 = vmatpush2.msra.mxu0 0.0
    %132 = vmatprep.subr.mxu0 0.0
    %133 = vmatpush2.msra.mxu0 0.0
    %134 = vmatprep.mubr.f32.mxu0 0.0
    %135 = vmatmul.mubr.f32.gmra.mxu0 %v65
    %v136 = vpop.f32.mrf.mxu0
    %v137 = vadd.f32 %v56, %v136
    %v138 = vpop.f32.mrf.mxu0
    %v139 = vadd.f32 %v60, %v138
    %140 = vmatprep.mubr.f32.mxu0 0.0
    %141 = vmatmul.mubr.f32.gmra.mxu0 %v68
    %v142 = vpop.f32.mrf.mxu0
    %v143 = vadd.f32 %v56, %v142
    %v144 = vpop.f32.mrf.mxu0
    %v145 = vadd.f32 %v60, %v144
    %146 = vdwg.mxu0
    %v147 = vld [vmem:[%s3] sm:$0xff]
    %v148 = vld [vmem:[%s3 + $0x8] sm:$0xff]
    %v149 = vld [vmem:[%s3 + $0x10] sm:$0xff]
    %v150 = vld [vmem:[%s3 + $0x18] sm:$0xff]
    %v151 = vld [vmem:[%s3 + $0x20] sm:$0xff]
    %v152 = vld [vmem:[%s3 + $0x28] sm:$0xff]
    %v153 = vld [vmem:[%s3 + $0x30] sm:$0xff]
    %v154 = vld [vmem:[%s3 + $0x38] sm:$0xff]
    %v155 = vld [vmem:[%s3 + $0x40] sm:$0xff]
    %v156 = vld [vmem:[%s3 + $0x48] sm:$0xff]
    %v157 = vld [vmem:[%s3 + $0x50] sm:$0xff]
    %v158 = vld [vmem:[%s3 + $0x58] sm:$0xff]
    %v159 = vld [vmem:[%s3 + $0x60] sm:$0xff]
    %v160 = vld [vmem:[%s3 + $0x68] sm:$0xff]
    %v161 = vld [vmem:[%s3 + $0x70] sm:$0xff]
    %v162 = vld [vmem:[%s3 + $0x78] sm:$0xff]
    %v164 = vrot.slane %v145, 6
    %165 = vrot.lane.b32.xlu0 %v164, 32
    %v166 = vpop.permute.xlu0 %165
    %v168 = vsel %vm63, %v137, %v166
    %170 = vrot.lane.b32.xlu0 %v137, 96
    %v171 = vpop.permute.xlu0 %170
    %v174 = vsel %vm63, %v171, %v164
    %175 = vrot.lane.b32.xlu0 %v137, 64
    %v176 = vpop.permute.xlu0 %175
    %178 = vrot.lane.b32.xlu0 %v164, 96
    %v179 = vpop.permute.xlu0 %178
    %v181 = vsel %vm63, %v176, %v179
    %182 = vrot.lane.b32.xlu0 %v137, 32
    %v183 = vpop.permute.xlu0 %182
    %185 = vrot.lane.b32.xlu0 %v164, 64
    %v186 = vpop.permute.xlu0 %185
    %v188 = vsel %vm63, %v183, %v186
    %vm189 = vcmask 523264
    %v191 = vsel %vm189, 0.0, 0
    %193 = vmatprep.subr.mxu0 0.0
    %194 = vmatpush1.msra.mxu0 0.0
    %195 = vmatprep.subr.mxu0 0.0
    %196 = vmatpush1.msra.mxu0 0.0
    %197 = vmatprep.subr.mxu0 0.0
    %198 = vmatpush1.msra.mxu0 0.0
    %199 = vmatprep.subr.mxu0 0.0
    %200 = vmatpush1.msra.mxu0 0.0
    %201 = vmatprep.subr.mxu0 0.0
    %202 = vmatpush1.msra.mxu0 0.0
    %203 = vmatprep.subr.mxu0 0.0
    %204 = vmatpush1.msra.mxu0 0.0
    %205 = vmatprep.subr.mxu0 0.0
    %206 = vmatpush1.msra.mxu0 0.0
    %207 = vmatprep.subr.mxu0 0.0
    %208 = vmatpush1.msra.mxu0 0.0
    %209 = vmatprep.subr.mxu0 0.0
    %210 = vmatpush1.msra.mxu0 %v161
    %211 = vmatprep.subr.mxu0 0.0
    %212 = vmatpush1.msra.mxu0 %v159
    %213 = vmatprep.subr.mxu0 0.0
    %214 = vmatpush1.msra.mxu0 %v157
    %215 = vmatprep.subr.mxu0 0.0
    %216 = vmatpush1.msra.mxu0 %v155
    %217 = vmatprep.subr.mxu0 0.0
    %218 = vmatpush1.msra.mxu0 %v153
    %219 = vmatprep.subr.mxu0 0.0
    %220 = vmatpush1.msra.mxu0 %v151
    %221 = vmatprep.subr.mxu0 0.0
    %222 = vmatpush1.msra.mxu0 %v149
    %223 = vmatprep.subr.mxu0 0.0
    %224 = vmatpush1.msra.mxu0 %v147
    %225 = vmatprep.subr.mxu0 0.0
    %226 = vmatpush2.msra.mxu0 0.0
    %227 = vmatprep.subr.mxu0 0.0
    %228 = vmatpush2.msra.mxu0 0.0
    %229 = vmatprep.subr.mxu0 0.0
    %230 = vmatpush2.msra.mxu0 0.0
    %231 = vmatprep.subr.mxu0 0.0
    %232 = vmatpush2.msra.mxu0 0.0
    %233 = vmatprep.subr.mxu0 0.0
    %234 = vmatpush2.msra.mxu0 0.0
    %235 = vmatprep.subr.mxu0 0.0
    %236 = vmatpush2.msra.mxu0 0.0
    %237 = vmatprep.subr.mxu0 0.0
    %238 = vmatpush2.msra.mxu0 0.0
    %239 = vmatprep.subr.mxu0 0.0
    %240 = vmatpush2.msra.mxu0 0.0
    %241 = vmatprep.subr.mxu0 0.0
    %242 = vmatpush2.msra.mxu0 0.0
    %243 = vmatprep.subr.mxu0 0.0
    %244 = vmatpush2.msra.mxu0 0.0
    %245 = vmatprep.subr.mxu0 0.0
    %246 = vmatpush2.msra.mxu0 0.0
    %247 = vmatprep.subr.mxu0 0.0
    %248 = vmatpush2.msra.mxu0 0.0
    %249 = vmatprep.subr.mxu0 0.0
    %250 = vmatpush2.msra.mxu0 0.0
    %251 = vmatprep.subr.mxu0 0.0
    %252 = vmatpush2.msra.mxu0 0.0
    %253 = vmatprep.subr.mxu0 0.0
    %254 = vmatpush2.msra.mxu0 0.0
    %255 = vmatprep.subr.mxu0 0.0
    %256 = vmatpush2.msra.mxu0 0.0
    %257 = vmatprep.mubr.f32.mxu0 0.0
    %258 = vmatmul.mubr.f32.gmra.mxu0 %v191
    %v259 = vpop.f32.mrf.mxu0
    %v260 = vadd.f32 0.0, %v259
    %v261 = vpop.f32.mrf.mxu0
    %262 = vdwg.mxu0
    %v263 = vadd.f32 %v168, %v260
    %v264 = vxor.u32 %v263, 2147483648
    %v265 = vmul.f32 %v264, 1.442695
    %v266 = vpow.pop %v265
    %v267 = vadd.f32 %v266, 1.0
    %v268 = vrcp.pop %v267
    %v269 = vmul.f32 1.0, %v268
    %278 = vrot.lane.b32.xlu0 %v147, 64
    %v279 = vpop.permute.xlu0 %278
    %280 = vrot.lane.b32.xlu0 %v149, 64
    %v281 = vpop.permute.xlu0 %280
    %282 = vrot.lane.b32.xlu0 %v151, 64
    %v283 = vpop.permute.xlu0 %282
    %284 = vrot.lane.b32.xlu0 %v153, 64
    %v285 = vpop.permute.xlu0 %284
    %286 = vrot.lane.b32.xlu0 %v155, 64
    %v287 = vpop.permute.xlu0 %286
    %288 = vrot.lane.b32.xlu0 %v157, 64
    %v289 = vpop.permute.xlu0 %288
    %290 = vrot.lane.b32.xlu0 %v159, 64
    %v291 = vpop.permute.xlu0 %290
    %292 = vrot.lane.b32.xlu0 %v161, 64
    %v293 = vpop.permute.xlu0 %292
    %302 = vmatprep.subr.mxu0 0.0
    %303 = vmatpush1.msra.mxu0 0.0
    %304 = vmatprep.subr.mxu0 0.0
    %305 = vmatpush1.msra.mxu0 0.0
    %306 = vmatprep.subr.mxu0 0.0
    %307 = vmatpush1.msra.mxu0 0.0
    %308 = vmatprep.subr.mxu0 0.0
    %309 = vmatpush1.msra.mxu0 0.0
    %310 = vmatprep.subr.mxu0 0.0
    %311 = vmatpush1.msra.mxu0 0.0
    %312 = vmatprep.subr.mxu0 0.0
    %313 = vmatpush1.msra.mxu0 0.0
    %314 = vmatprep.subr.mxu0 0.0
    %315 = vmatpush1.msra.mxu0 0.0
    %316 = vmatprep.subr.mxu0 0.0
    %317 = vmatpush1.msra.mxu0 0.0
    %318 = vmatprep.subr.mxu0 0.0
    %319 = vmatpush1.msra.mxu0 %v293
    %320 = vmatprep.subr.mxu0 0.0
    %321 = vmatpush1.msra.mxu0 %v291
    %322 = vmatprep.subr.mxu0 0.0
    %323 = vmatpush1.msra.mxu0 %v289
    %324 = vmatprep.subr.mxu0 0.0
    %325 = vmatpush1.msra.mxu0 %v287
    %326 = vmatprep.subr.mxu0 0.0
    %327 = vmatpush1.msra.mxu0 %v285
    %328 = vmatprep.subr.mxu0 0.0
    %329 = vmatpush1.msra.mxu0 %v283
    %330 = vmatprep.subr.mxu0 0.0
    %331 = vmatpush1.msra.mxu0 %v281
    %332 = vmatprep.subr.mxu0 0.0
    %333 = vmatpush1.msra.mxu0 %v279
    %334 = vmatprep.subr.mxu0 0.0
    %335 = vmatpush2.msra.mxu0 0.0
    %336 = vmatprep.subr.mxu0 0.0
    %337 = vmatpush2.msra.mxu0 0.0
    %338 = vmatprep.subr.mxu0 0.0
    %339 = vmatpush2.msra.mxu0 0.0
    %340 = vmatprep.subr.mxu0 0.0
    %341 = vmatpush2.msra.mxu0 0.0
    %342 = vmatprep.subr.mxu0 0.0
    %343 = vmatpush2.msra.mxu0 0.0
    %344 = vmatprep.subr.mxu0 0.0
    %345 = vmatpush2.msra.mxu0 0.0
    %346 = vmatprep.subr.mxu0 0.0
    %347 = vmatpush2.msra.mxu0 0.0
    %348 = vmatprep.subr.mxu0 0.0
    %349 = vmatpush2.msra.mxu0 0.0
    %350 = vmatprep.subr.mxu0 0.0
    %351 = vmatpush2.msra.mxu0 0.0
    %352 = vmatprep.subr.mxu0 0.0
    %353 = vmatpush2.msra.mxu0 0.0
    %354 = vmatprep.subr.mxu0 0.0
    %355 = vmatpush2.msra.mxu0 0.0
    %356 = vmatprep.subr.mxu0 0.0
    %357 = vmatpush2.msra.mxu0 0.0
    %358 = vmatprep.subr.mxu0 0.0
    %359 = vmatpush2.msra.mxu0 0.0
    %360 = vmatprep.subr.mxu0 0.0
    %361 = vmatpush2.msra.mxu0 0.0
    %362 = vmatprep.subr.mxu0 0.0
    %363 = vmatpush2.msra.mxu0 0.0
    %364 = vmatprep.subr.mxu0 0.0
    %365 = vmatpush2.msra.mxu0 0.0
    %366 = vmatprep.mubr.f32.mxu0 0.0
    %367 = vmatmul.mubr.f32.gmra.mxu0 %v191
    %v368 = vpop.f32.mrf.mxu0
    %v369 = vadd.f32 0.0, %v368
    %v370 = vpop.f32.mrf.mxu0
    %371 = vdwg.mxu0
    %v372 = vadd.f32 %v174, %v369
    %v373 = vxor.u32 %v372, 2147483648
    %v374 = vmul.f32 %v373, 1.442695
    %v375 = vpow.pop %v374
    %v376 = vadd.f32 %v375, 1.0
    %v377 = vrcp.pop %v376
    %v378 = vmul.f32 1.0, %v377
    %379 = vmatprep.subr.mxu0 0.0
    %380 = vmatpush1.msra.mxu0 0.0
    %381 = vmatprep.subr.mxu0 0.0
    %382 = vmatpush1.msra.mxu0 0.0
    %383 = vmatprep.subr.mxu0 0.0
    %384 = vmatpush1.msra.mxu0 0.0
    %385 = vmatprep.subr.mxu0 0.0
    %386 = vmatpush1.msra.mxu0 0.0
    %387 = vmatprep.subr.mxu0 0.0
    %388 = vmatpush1.msra.mxu0 0.0
    %389 = vmatprep.subr.mxu0 0.0
    %390 = vmatpush1.msra.mxu0 0.0
    %391 = vmatprep.subr.mxu0 0.0
    %392 = vmatpush1.msra.mxu0 0.0
    %393 = vmatprep.subr.mxu0 0.0
    %394 = vmatpush1.msra.mxu0 0.0
    %395 = vmatprep.subr.mxu0 0.0
    %396 = vmatpush1.msra.mxu0 %v162
    %397 = vmatprep.subr.mxu0 0.0
    %398 = vmatpush1.msra.mxu0 %v160
    %399 = vmatprep.subr.mxu0 0.0
    %400 = vmatpush1.msra.mxu0 %v158
    %401 = vmatprep.subr.mxu0 0.0
    %402 = vmatpush1.msra.mxu0 %v156
    %403 = vmatprep.subr.mxu0 0.0
    %404 = vmatpush1.msra.mxu0 %v154
    %405 = vmatprep.subr.mxu0 0.0
    %406 = vmatpush1.msra.mxu0 %v152
    %407 = vmatprep.subr.mxu0 0.0
    %408 = vmatpush1.msra.mxu0 %v150
    %409 = vmatprep.subr.mxu0 0.0
    %410 = vmatpush1.msra.mxu0 %v148
    %411 = vmatprep.subr.mxu0 0.0
    %412 = vmatpush2.msra.mxu0 0.0
    %413 = vmatprep.subr.mxu0 0.0
    %414 = vmatpush2.msra.mxu0 0.0
    %415 = vmatprep.subr.mxu0 0.0
    %416 = vmatpush2.msra.mxu0 0.0
    %417 = vmatprep.subr.mxu0 0.0
    %418 = vmatpush2.msra.mxu0 0.0
    %419 = vmatprep.subr.mxu0 0.0
    %420 = vmatpush2.msra.mxu0 0.0
    %421 = vmatprep.subr.mxu0 0.0
    %422 = vmatpush2.msra.mxu0 0.0
    %423 = vmatprep.subr.mxu0 0.0
    %424 = vmatpush2.msra.mxu0 0.0
    %425 = vmatprep.subr.mxu0 0.0
    %426 = vmatpush2.msra.mxu0 0.0
    %427 = vmatprep.subr.mxu0 0.0
    %428 = vmatpush2.msra.mxu0 0.0
    %429 = vmatprep.subr.mxu0 0.0
    %430 = vmatpush2.msra.mxu0 0.0
    %431 = vmatprep.subr.mxu0 0.0
    %432 = vmatpush2.msra.mxu0 0.0
    %433 = vmatprep.subr.mxu0 0.0
    %434 = vmatpush2.msra.mxu0 0.0
    %435 = vmatprep.subr.mxu0 0.0
    %436 = vmatpush2.msra.mxu0 0.0
    %437 = vmatprep.subr.mxu0 0.0
    %438 = vmatpush2.msra.mxu0 0.0
    %439 = vmatprep.subr.mxu0 0.0
    %440 = vmatpush2.msra.mxu0 0.0
    %441 = vmatprep.subr.mxu0 0.0
    %442 = vmatpush2.msra.mxu0 0.0
    %443 = vmatprep.mubr.f32.mxu0 0.0
    %444 = vmatmul.mubr.f32.gmra.mxu0 %v191
    %v445 = vpop.f32.mrf.mxu0
    %v446 = vadd.f32 0.0, %v445
    %v447 = vpop.f32.mrf.mxu0
    %448 = vdwg.mxu0
    %v449 = vadd.f32 %v181, %v446
    %v450 = vtanh.pop %v449
    %459 = vrot.lane.b32.xlu0 %v148, 64
    %v460 = vpop.permute.xlu0 %459
    %461 = vrot.lane.b32.xlu0 %v150, 64
    %v462 = vpop.permute.xlu0 %461
    %463 = vrot.lane.b32.xlu0 %v152, 64
    %v464 = vpop.permute.xlu0 %463
    %465 = vrot.lane.b32.xlu0 %v154, 64
    %v466 = vpop.permute.xlu0 %465
    %467 = vrot.lane.b32.xlu0 %v156, 64
    %v468 = vpop.permute.xlu0 %467
    %469 = vrot.lane.b32.xlu0 %v158, 64
    %v470 = vpop.permute.xlu0 %469
    %471 = vrot.lane.b32.xlu0 %v160, 64
    %v472 = vpop.permute.xlu0 %471
    %473 = vrot.lane.b32.xlu0 %v162, 64
    %v474 = vpop.permute.xlu0 %473
    %483 = vmatprep.subr.mxu0 0.0
    %484 = vmatpush1.msra.mxu0 0.0
    %485 = vmatprep.subr.mxu0 0.0
    %486 = vmatpush1.msra.mxu0 0.0
    %487 = vmatprep.subr.mxu0 0.0
    %488 = vmatpush1.msra.mxu0 0.0
    %489 = vmatprep.subr.mxu0 0.0
    %490 = vmatpush1.msra.mxu0 0.0
    %491 = vmatprep.subr.mxu0 0.0
    %492 = vmatpush1.msra.mxu0 0.0
    %493 = vmatprep.subr.mxu0 0.0
    %494 = vmatpush1.msra.mxu0 0.0
    %495 = vmatprep.subr.mxu0 0.0
    %496 = vmatpush1.msra.mxu0 0.0
    %497 = vmatprep.subr.mxu0 0.0
    %498 = vmatpush1.msra.mxu0 0.0
    %499 = vmatprep.subr.mxu0 0.0
    %500 = vmatpush1.msra.mxu0 %v474
    %501 = vmatprep.subr.mxu0 0.0
    %502 = vmatpush1.msra.mxu0 %v472
    %503 = vmatprep.subr.mxu0 0.0
    %504 = vmatpush1.msra.mxu0 %v470
    %505 = vmatprep.subr.mxu0 0.0
    %506 = vmatpush1.msra.mxu0 %v468
    %507 = vmatprep.subr.mxu0 0.0
    %508 = vmatpush1.msra.mxu0 %v466
    %509 = vmatprep.subr.mxu0 0.0
    %510 = vmatpush1.msra.mxu0 %v464
    %511 = vmatprep.subr.mxu0 0.0
    %512 = vmatpush1.msra.mxu0 %v462
    %513 = vmatprep.subr.mxu0 0.0
    %514 = vmatpush1.msra.mxu0 %v460
    %515 = vmatprep.subr.mxu0 0.0
    %516 = vmatpush2.msra.mxu0 0.0
    %517 = vmatprep.subr.mxu0 0.0
    %518 = vmatpush2.msra.mxu0 0.0
    %519 = vmatprep.subr.mxu0 0.0
    %520 = vmatpush2.msra.mxu0 0.0
    %521 = vmatprep.subr.mxu0 0.0
    %522 = vmatpush2.msra.mxu0 0.0
    %523 = vmatprep.subr.mxu0 0.0
    %524 = vmatpush2.msra.mxu0 0.0
    %525 = vmatprep.subr.mxu0 0.0
    %526 = vmatpush2.msra.mxu0 0.0
    %527 = vmatprep.subr.mxu0 0.0
    %528 = vmatpush2.msra.mxu0 0.0
    %529 = vmatprep.subr.mxu0 0.0
    %530 = vmatpush2.msra.mxu0 0.0
    %531 = vmatprep.subr.mxu0 0.0
    %532 = vmatpush2.msra.mxu0 0.0
    %533 = vmatprep.subr.mxu0 0.0
    %534 = vmatpush2.msra.mxu0 0.0
    %535 = vmatprep.subr.mxu0 0.0
    %536 = vmatpush2.msra.mxu0 0.0
    %537 = vmatprep.subr.mxu0 0.0
    %538 = vmatpush2.msra.mxu0 0.0
    %539 = vmatprep.subr.mxu0 0.0
    %540 = vmatpush2.msra.mxu0 0.0
    %541 = vmatprep.subr.mxu0 0.0
    %542 = vmatpush2.msra.mxu0 0.0
    %543 = vmatprep.subr.mxu0 0.0
    %544 = vmatpush2.msra.mxu0 0.0
    %545 = vmatprep.subr.mxu0 0.0
    %546 = vmatpush2.msra.mxu0 0.0
    %547 = vmatprep.mubr.f32.mxu0 0.0
    %548 = vmatmul.mubr.f32.gmra.mxu0 %v191
    %v549 = vpop.f32.mrf.mxu0
    %v550 = vadd.f32 0.0, %v549
    %v551 = vpop.f32.mrf.mxu0
    %552 = vdwg.mxu0
    %v553 = vadd.f32 %v188, %v550
    %v554 = vxor.u32 %v553, 2147483648
    %v555 = vmul.f32 %v554, 1.442695
    %v556 = vpow.pop %v555
    %v557 = vadd.f32 %v556, 1.0
    %v558 = vrcp.pop %v557
    %v559 = vmul.f32 1.0, %v558
    %v560 = vmul.f32 %v378, 0.0
    %v561 = vmul.f32 %v269, %v450
    %v562 = vadd.f32 %v560, %v561
    %v563 = vtanh.pop %v562
    %v564 = vmul.f32 %v559, %v563
    %v565 = vmax.f32 %v564, 0.0
    %v566 = vmax.f32 %v41, 0.0
    %v567 = vrot.slane %v145, 2
    %568 = vrot.lane.b32.xlu0 %v567, 32
    %v569 = vpop.permute.xlu0 %568
    %v571 = vsel %vm63, %v137, %v569
    %v573 = vsel %vm63, %v171, %v567
    %574 = vrot.lane.b32.xlu0 %v567, 96
    %v575 = vpop.permute.xlu0 %574
    %v577 = vsel %vm63, %v176, %v575
    %578 = vrot.lane.b32.xlu0 %v567, 64
    %v579 = vpop.permute.xlu0 %578
    %v581 = vsel %vm63, %v183, %v579
    %v583 = vsel %vm189, %v564, 0
    %585 = vmatprep.subr.mxu0 0.0
    %586 = vmatpush1.msra.mxu0 0.0
    %587 = vmatprep.subr.mxu0 0.0
    %588 = vmatpush1.msra.mxu0 0.0
    %589 = vmatprep.subr.mxu0 0.0
    %590 = vmatpush1.msra.mxu0 0.0
    %591 = vmatprep.subr.mxu0 0.0
    %592 = vmatpush1.msra.mxu0 0.0
    %593 = vmatprep.subr.mxu0 0.0
    %594 = vmatpush1.msra.mxu0 0.0
    %595 = vmatprep.subr.mxu0 0.0
    %596 = vmatpush1.msra.mxu0 0.0
    %597 = vmatprep.subr.mxu0 0.0
    %598 = vmatpush1.msra.mxu0 0.0
    %599 = vmatprep.subr.mxu0 0.0
    %600 = vmatpush1.msra.mxu0 0.0
    %601 = vmatprep.subr.mxu0 0.0
    %602 = vmatpush1.msra.mxu0 %v161
    %603 = vmatprep.subr.mxu0 0.0
    %604 = vmatpush1.msra.mxu0 %v159
    %605 = vmatprep.subr.mxu0 0.0
    %606 = vmatpush1.msra.mxu0 %v157
    %607 = vmatprep.subr.mxu0 0.0
    %608 = vmatpush1.msra.mxu0 %v155
    %609 = vmatprep.subr.mxu0 0.0
    %610 = vmatpush1.msra.mxu0 %v153
    %611 = vmatprep.subr.mxu0 0.0
    %612 = vmatpush1.msra.mxu0 %v151
    %613 = vmatprep.subr.mxu0 0.0
    %614 = vmatpush1.msra.mxu0 %v149
    %615 = vmatprep.subr.mxu0 0.0
    %616 = vmatpush1.msra.mxu0 %v147
    %617 = vmatprep.subr.mxu0 0.0
    %618 = vmatpush2.msra.mxu0 0.0
    %619 = vmatprep.subr.mxu0 0.0
    %620 = vmatpush2.msra.mxu0 0.0
    %621 = vmatprep.subr.mxu0 0.0
    %622 = vmatpush2.msra.mxu0 0.0
    %623 = vmatprep.subr.mxu0 0.0
    %624 = vmatpush2.msra.mxu0 0.0
    %625 = vmatprep.subr.mxu0 0.0
    %626 = vmatpush2.msra.mxu0 0.0
    %627 = vmatprep.subr.mxu0 0.0
    %628 = vmatpush2.msra.mxu0 0.0
    %629 = vmatprep.subr.mxu0 0.0
    %630 = vmatpush2.msra.mxu0 0.0
    %631 = vmatprep.subr.mxu0 0.0
    %632 = vmatpush2.msra.mxu0 0.0
    %633 = vmatprep.subr.mxu0 0.0
    %634 = vmatpush2.msra.mxu0 0.0
    %635 = vmatprep.subr.mxu0 0.0
    %636 = vmatpush2.msra.mxu0 0.0
    %637 = vmatprep.subr.mxu0 0.0
    %638 = vmatpush2.msra.mxu0 0.0
    %639 = vmatprep.subr.mxu0 0.0
    %640 = vmatpush2.msra.mxu0 0.0
    %641 = vmatprep.subr.mxu0 0.0
    %642 = vmatpush2.msra.mxu0 0.0
    %643 = vmatprep.subr.mxu0 0.0
    %644 = vmatpush2.msra.mxu0 0.0
    %645 = vmatprep.subr.mxu0 0.0
    %646 = vmatpush2.msra.mxu0 0.0
    %647 = vmatprep.subr.mxu0 0.0
    %648 = vmatpush2.msra.mxu0 0.0
    %649 = vmatprep.mubr.f32.mxu0 0.0
    %650 = vmatmul.mubr.f32.gmra.mxu0 %v583
    %v651 = vpop.f32.mrf.mxu0
    %v652 = vadd.f32 0.0, %v651
    %v653 = vpop.f32.mrf.mxu0
    %654 = vdwg.mxu0
    %v656 = vrot.slane %v652, 6
    %v658 = vadd.f32 %v571, %v656
    %v659 = vxor.u32 %v658, 2147483648
    %v660 = vmul.f32 %v659, 1.442695
    %v661 = vpow.pop %v660
    %v662 = vadd.f32 %v661, 1.0
    %v663 = vrcp.pop %v662
    %v664 = vmul.f32 1.0, %v663
    %665 = vmatprep.subr.mxu0 0.0
    %666 = vmatpush1.msra.mxu0 0.0
    %667 = vmatprep.subr.mxu0 0.0
    %668 = vmatpush1.msra.mxu0 0.0
    %669 = vmatprep.subr.mxu0 0.0
    %670 = vmatpush1.msra.mxu0 0.0
    %671 = vmatprep.subr.mxu0 0.0
    %672 = vmatpush1.msra.mxu0 0.0
    %673 = vmatprep.subr.mxu0 0.0
    %674 = vmatpush1.msra.mxu0 0.0
    %675 = vmatprep.subr.mxu0 0.0
    %676 = vmatpush1.msra.mxu0 0.0
    %677 = vmatprep.subr.mxu0 0.0
    %678 = vmatpush1.msra.mxu0 0.0
    %679 = vmatprep.subr.mxu0 0.0
    %680 = vmatpush1.msra.mxu0 0.0
    %681 = vmatprep.subr.mxu0 0.0
    %682 = vmatpush1.msra.mxu0 %v293
    %683 = vmatprep.subr.mxu0 0.0
    %684 = vmatpush1.msra.mxu0 %v291
    %685 = vmatprep.subr.mxu0 0.0
    %686 = vmatpush1.msra.mxu0 %v289
    %687 = vmatprep.subr.mxu0 0.0
    %688 = vmatpush1.msra.mxu0 %v287
    %689 = vmatprep.subr.mxu0 0.0
    %690 = vmatpush1.msra.mxu0 %v285
    %691 = vmatprep.subr.mxu0 0.0
    %692 = vmatpush1.msra.mxu0 %v283
    %693 = vmatprep.subr.mxu0 0.0
    %694 = vmatpush1.msra.mxu0 %v281
    %695 = vmatprep.subr.mxu0 0.0
    %696 = vmatpush1.msra.mxu0 %v279
    %697 = vmatprep.subr.mxu0 0.0
    %698 = vmatpush2.msra.mxu0 0.0
    %699 = vmatprep.subr.mxu0 0.0
    %700 = vmatpush2.msra.mxu0 0.0
    %701 = vmatprep.subr.mxu0 0.0
    %702 = vmatpush2.msra.mxu0 0.0
    %703 = vmatprep.subr.mxu0 0.0
    %704 = vmatpush2.msra.mxu0 0.0
    %705 = vmatprep.subr.mxu0 0.0
    %706 = vmatpush2.msra.mxu0 0.0
    %707 = vmatprep.subr.mxu0 0.0
    %708 = vmatpush2.msra.mxu0 0.0
    %709 = vmatprep.subr.mxu0 0.0
    %710 = vmatpush2.msra.mxu0 0.0
    %711 = vmatprep.subr.mxu0 0.0
    %712 = vmatpush2.msra.mxu0 0.0
    %713 = vmatprep.subr.mxu0 0.0
    %714 = vmatpush2.msra.mxu0 0.0
    %715 = vmatprep.subr.mxu0 0.0
    %716 = vmatpush2.msra.mxu0 0.0
    %717 = vmatprep.subr.mxu0 0.0
    %718 = vmatpush2.msra.mxu0 0.0
    %719 = vmatprep.subr.mxu0 0.0
    %720 = vmatpush2.msra.mxu0 0.0
    %721 = vmatprep.subr.mxu0 0.0
    %722 = vmatpush2.msra.mxu0 0.0
    %723 = vmatprep.subr.mxu0 0.0
    %724 = vmatpush2.msra.mxu0 0.0
    %725 = vmatprep.subr.mxu0 0.0
    %726 = vmatpush2.msra.mxu0 0.0
    %727 = vmatprep.subr.mxu0 0.0
    %728 = vmatpush2.msra.mxu0 0.0
    %729 = vmatprep.mubr.f32.mxu0 0.0
    %730 = vmatmul.mubr.f32.gmra.mxu0 %v583
    %v731 = vpop.f32.mrf.mxu0
    %v732 = vadd.f32 0.0, %v731
    %v733 = vpop.f32.mrf.mxu0
    %734 = vdwg.mxu0
    %v736 = vrot.slane %v732, 6
    %v738 = vadd.f32 %v573, %v736
    %v739 = vxor.u32 %v738, 2147483648
    %v740 = vmul.f32 %v739, 1.442695
    %v741 = vpow.pop %v740
    %v742 = vadd.f32 %v741, 1.0
    %v743 = vrcp.pop %v742
    %v744 = vmul.f32 1.0, %v743
    %745 = vmatprep.subr.mxu0 0.0
    %746 = vmatpush1.msra.mxu0 0.0
    %747 = vmatprep.subr.mxu0 0.0
    %748 = vmatpush1.msra.mxu0 0.0
    %749 = vmatprep.subr.mxu0 0.0
    %750 = vmatpush1.msra.mxu0 0.0
    %751 = vmatprep.subr.mxu0 0.0
    %752 = vmatpush1.msra.mxu0 0.0
    %753 = vmatprep.subr.mxu0 0.0
    %754 = vmatpush1.msra.mxu0 0.0
    %755 = vmatprep.subr.mxu0 0.0
    %756 = vmatpush1.msra.mxu0 0.0
    %757 = vmatprep.subr.mxu0 0.0
    %758 = vmatpush1.msra.mxu0 0.0
    %759 = vmatprep.subr.mxu0 0.0
    %760 = vmatpush1.msra.mxu0 0.0
    %761 = vmatprep.subr.mxu0 0.0
    %762 = vmatpush1.msra.mxu0 %v162
    %763 = vmatprep.subr.mxu0 0.0
    %764 = vmatpush1.msra.mxu0 %v160
    %765 = vmatprep.subr.mxu0 0.0
    %766 = vmatpush1.msra.mxu0 %v158
    %767 = vmatprep.subr.mxu0 0.0
    %768 = vmatpush1.msra.mxu0 %v156
    %769 = vmatprep.subr.mxu0 0.0
    %770 = vmatpush1.msra.mxu0 %v154
    %771 = vmatprep.subr.mxu0 0.0
    %772 = vmatpush1.msra.mxu0 %v152
    %773 = vmatprep.subr.mxu0 0.0
    %774 = vmatpush1.msra.mxu0 %v150
    %775 = vmatprep.subr.mxu0 0.0
    %776 = vmatpush1.msra.mxu0 %v148
    %777 = vmatprep.subr.mxu0 0.0
    %778 = vmatpush2.msra.mxu0 0.0
    %779 = vmatprep.subr.mxu0 0.0
    %780 = vmatpush2.msra.mxu0 0.0
    %781 = vmatprep.subr.mxu0 0.0
    %782 = vmatpush2.msra.mxu0 0.0
    %783 = vmatprep.subr.mxu0 0.0
    %784 = vmatpush2.msra.mxu0 0.0
    %785 = vmatprep.subr.mxu0 0.0
    %786 = vmatpush2.msra.mxu0 0.0
    %787 = vmatprep.subr.mxu0 0.0
    %788 = vmatpush2.msra.mxu0 0.0
    %789 = vmatprep.subr.mxu0 0.0
    %790 = vmatpush2.msra.mxu0 0.0
    %791 = vmatprep.subr.mxu0 0.0
    %792 = vmatpush2.msra.mxu0 0.0
    %793 = vmatprep.subr.mxu0 0.0
    %794 = vmatpush2.msra.mxu0 0.0
    %795 = vmatprep.subr.mxu0 0.0
    %796 = vmatpush2.msra.mxu0 0.0
    %797 = vmatprep.subr.mxu0 0.0
    %798 = vmatpush2.msra.mxu0 0.0
    %799 = vmatprep.subr.mxu0 0.0
    %800 = vmatpush2.msra.mxu0 0.0
    %801 = vmatprep.subr.mxu0 0.0
    %802 = vmatpush2.msra.mxu0 0.0
    %803 = vmatprep.subr.mxu0 0.0
    %804 = vmatpush2.msra.mxu0 0.0
    %805 = vmatprep.subr.mxu0 0.0
    %806 = vmatpush2.msra.mxu0 0.0
    %807 = vmatprep.subr.mxu0 0.0
    %808 = vmatpush2.msra.mxu0 0.0
    %809 = vmatprep.mubr.f32.mxu0 0.0
    %810 = vmatmul.mubr.f32.gmra.mxu0 %v583
    %v811 = vpop.f32.mrf.mxu0
    %v812 = vadd.f32 0.0, %v811
    %v813 = vpop.f32.mrf.mxu0
    %814 = vdwg.mxu0
    %v816 = vrot.slane %v812, 6
    %v818 = vadd.f32 %v577, %v816
    %v819 = vtanh.pop %v818
    %820 = vmatprep.subr.mxu0 0.0
    %821 = vmatpush1.msra.mxu0 0.0
    %822 = vmatprep.subr.mxu0 0.0
    %823 = vmatpush1.msra.mxu0 0.0
    %824 = vmatprep.subr.mxu0 0.0
    %825 = vmatpush1.msra.mxu0 0.0
    %826 = vmatprep.subr.mxu0 0.0
    %827 = vmatpush1.msra.mxu0 0.0
    %828 = vmatprep.subr.mxu0 0.0
    %829 = vmatpush1.msra.mxu0 0.0
    %830 = vmatprep.subr.mxu0 0.0
    %831 = vmatpush1.msra.mxu0 0.0
    %832 = vmatprep.subr.mxu0 0.0
    %833 = vmatpush1.msra.mxu0 0.0
    %834 = vmatprep.subr.mxu0 0.0
    %835 = vmatpush1.msra.mxu0 0.0
    %836 = vmatprep.subr.mxu0 0.0
    %837 = vmatpush1.msra.mxu0 %v474
    %838 = vmatprep.subr.mxu0 0.0
    %839 = vmatpush1.msra.mxu0 %v472
    %840 = vmatprep.subr.mxu0 0.0
    %841 = vmatpush1.msra.mxu0 %v470
    %842 = vmatprep.subr.mxu0 0.0
    %843 = vmatpush1.msra.mxu0 %v468
    %844 = vmatprep.subr.mxu0 0.0
    %845 = vmatpush1.msra.mxu0 %v466
    %846 = vmatprep.subr.mxu0 0.0
    %847 = vmatpush1.msra.mxu0 %v464
    %848 = vmatprep.subr.mxu0 0.0
    %849 = vmatpush1.msra.mxu0 %v462
    %850 = vmatprep.subr.mxu0 0.0
    %851 = vmatpush1.msra.mxu0 %v460
    %852 = vmatprep.subr.mxu0 0.0
    %853 = vmatpush2.msra.mxu0 0.0
    %854 = vmatprep.subr.mxu0 0.0
    %855 = vmatpush2.msra.mxu0 0.0
    %856 = vmatprep.subr.mxu0 0.0
    %857 = vmatpush2.msra.mxu0 0.0
    %858 = vmatprep.subr.mxu0 0.0
    %859 = vmatpush2.msra.mxu0 0.0
    %860 = vmatprep.subr.mxu0 0.0
    %861 = vmatpush2.msra.mxu0 0.0
    %862 = vmatprep.subr.mxu0 0.0
    %863 = vmatpush2.msra.mxu0 0.0
    %864 = vmatprep.subr.mxu0 0.0
    %865 = vmatpush2.msra.mxu0 0.0
    %866 = vmatprep.subr.mxu0 0.0
    %867 = vmatpush2.msra.mxu0 0.0
    %868 = vmatprep.subr.mxu0 0.0
    %869 = vmatpush2.msra.mxu0 0.0
    %870 = vmatprep.subr.mxu0 0.0
    %871 = vmatpush2.msra.mxu0 0.0
    %872 = vmatprep.subr.mxu0 0.0
    %873 = vmatpush2.msra.mxu0 0.0
    %874 = vmatprep.subr.mxu0 0.0
    %875 = vmatpush2.msra.mxu0 0.0
    %876 = vmatprep.subr.mxu0 0.0
    %877 = vmatpush2.msra.mxu0 0.0
    %878 = vmatprep.subr.mxu0 0.0
    %879 = vmatpush2.msra.mxu0 0.0
    %880 = vmatprep.subr.mxu0 0.0
    %881 = vmatpush2.msra.mxu0 0.0
    %882 = vmatprep.subr.mxu0 0.0
    %883 = vmatpush2.msra.mxu0 0.0
    %884 = vmatprep.mubr.f32.mxu0 0.0
    %885 = vmatmul.mubr.f32.gmra.mxu0 %v583
    %v886 = vpop.f32.mrf.mxu0
    %v887 = vadd.f32 0.0, %v886
    %v888 = vpop.f32.mrf.mxu0
    %889 = vdwg.mxu0
    %v891 = vrot.slane %v887, 6
    %v893 = vadd.f32 %v581, %v891
    %v894 = vxor.u32 %v893, 2147483648
    %v895 = vmul.f32 %v894, 1.442695
    %v896 = vpow.pop %v895
    %v897 = vadd.f32 %v896, 1.0
    %v898 = vrcp.pop %v897
    %v899 = vmul.f32 1.0, %v898
    %v901 = vrot.slane %v562, 6
    %v903 = vmul.f32 %v744, %v901
    %v904 = vmul.f32 %v664, %v819
    %v905 = vadd.f32 %v903, %v904
    %v906 = vtanh.pop %v905
    %v907 = vmul.f32 %v899, %v906
    %v909 = vrot.slane %v907, 2
    %v911 = vmax.f32 %v565, %v909
    %v912 = vrot.slane %v41, 2
    %v914 = vmax.f32 %v566, %v912
    %v915 = vsel %vm189, %v909, 0
    %917 = vmatprep.subr.mxu0 0.0
    %918 = vmatpush1.msra.mxu0 0.0
    %919 = vmatprep.subr.mxu0 0.0
    %920 = vmatpush1.msra.mxu0 0.0
    %921 = vmatprep.subr.mxu0 0.0
    %922 = vmatpush1.msra.mxu0 0.0
    %923 = vmatprep.subr.mxu0 0.0
    %924 = vmatpush1.msra.mxu0 0.0
    %925 = vmatprep.subr.mxu0 0.0
    %926 = vmatpush1.msra.mxu0 0.0
    %927 = vmatprep.subr.mxu0 0.0
    %928 = vmatpush1.msra.mxu0 0.0
    %929 = vmatprep.subr.mxu0 0.0
    %930 = vmatpush1.msra.mxu0 0.0
    %931 = vmatprep.subr.mxu0 0.0
    %932 = vmatpush1.msra.mxu0 0.0
    %933 = vmatprep.subr.mxu0 0.0
    %934 = vmatpush1.msra.mxu0 %v161
    %935 = vmatprep.subr.mxu0 0.0
    %936 = vmatpush1.msra.mxu0 %v159
    %937 = vmatprep.subr.mxu0 0.0
    %938 = vmatpush1.msra.mxu0 %v157
    %939 = vmatprep.subr.mxu0 0.0
    %940 = vmatpush1.msra.mxu0 %v155
    %941 = vmatprep.subr.mxu0 0.0
    %942 = vmatpush1.msra.mxu0 %v153
    %943 = vmatprep.subr.mxu0 0.0
    %944 = vmatpush1.msra.mxu0 %v151
    %945 = vmatprep.subr.mxu0 0.0
    %946 = vmatpush1.msra.mxu0 %v149
    %947 = vmatprep.subr.mxu0 0.0
    %948 = vmatpush1.msra.mxu0 %v147
    %949 = vmatprep.subr.mxu0 0.0
    %950 = vmatpush2.msra.mxu0 0.0
    %951 = vmatprep.subr.mxu0 0.0
    %952 = vmatpush2.msra.mxu0 0.0
    %953 = vmatprep.subr.mxu0 0.0
    %954 = vmatpush2.msra.mxu0 0.0
    %955 = vmatprep.subr.mxu0 0.0
    %956 = vmatpush2.msra.mxu0 0.0
    %957 = vmatprep.subr.mxu0 0.0
    %958 = vmatpush2.msra.mxu0 0.0
    %959 = vmatprep.subr.mxu0 0.0
    %960 = vmatpush2.msra.mxu0 0.0
    %961 = vmatprep.subr.mxu0 0.0
    %962 = vmatpush2.msra.mxu0 0.0
    %963 = vmatprep.subr.mxu0 0.0
    %964 = vmatpush2.msra.mxu0 0.0
    %965 = vmatprep.subr.mxu0 0.0
    %966 = vmatpush2.msra.mxu0 0.0
    %967 = vmatprep.subr.mxu0 0.0
    %968 = vmatpush2.msra.mxu0 0.0
    %969 = vmatprep.subr.mxu0 0.0
    %970 = vmatpush2.msra.mxu0 0.0
    %971 = vmatprep.subr.mxu0 0.0
    %972 = vmatpush2.msra.mxu0 0.0
    %973 = vmatprep.subr.mxu0 0.0
    %974 = vmatpush2.msra.mxu0 0.0
    %975 = vmatprep.subr.mxu0 0.0
    %976 = vmatpush2.msra.mxu0 0.0
    %977 = vmatprep.subr.mxu0 0.0
    %978 = vmatpush2.msra.mxu0 0.0
    %979 = vmatprep.subr.mxu0 0.0
    %980 = vmatpush2.msra.mxu0 0.0
    %981 = vmatprep.mubr.f32.mxu0 0.0
    %982 = vmatmul.mubr.f32.gmra.mxu0 %v915
    %v983 = vpop.f32.mrf.mxu0
    %v984 = vadd.f32 0.0, %v983
    %v985 = vpop.f32.mrf.mxu0
    %986 = vdwg.mxu0
    %v988 = vrot.slane %v984, 4
    %v990 = vadd.f32 %v168, %v988
    %v991 = vxor.u32 %v990, 2147483648
    %v992 = vmul.f32 %v991, 1.442695
    %v993 = vpow.pop %v992
    %v994 = vadd.f32 %v993, 1.0
    %v995 = vrcp.pop %v994
    %v996 = vmul.f32 1.0, %v995
    %997 = vmatprep.subr.mxu0 0.0
    %998 = vmatpush1.msra.mxu0 0.0
    %999 = vmatprep.subr.mxu0 0.0
    %1000 = vmatpush1.msra.mxu0 0.0
    %1001 = vmatprep.subr.mxu0 0.0
    %1002 = vmatpush1.msra.mxu0 0.0
    %1003 = vmatprep.subr.mxu0 0.0
    %1004 = vmatpush1.msra.mxu0 0.0
    %1005 = vmatprep.subr.mxu0 0.0
    %1006 = vmatpush1.msra.mxu0 0.0
    %1007 = vmatprep.subr.mxu0 0.0
    %1008 = vmatpush1.msra.mxu0 0.0
    %1009 = vmatprep.subr.mxu0 0.0
    %1010 = vmatpush1.msra.mxu0 0.0
    %1011 = vmatprep.subr.mxu0 0.0
    %1012 = vmatpush1.msra.mxu0 0.0
    %1013 = vmatprep.subr.mxu0 0.0
    %1014 = vmatpush1.msra.mxu0 %v293
    %1015 = vmatprep.subr.mxu0 0.0
    %1016 = vmatpush1.msra.mxu0 %v291
    %1017 = vmatprep.subr.mxu0 0.0
    %1018 = vmatpush1.msra.mxu0 %v289
    %1019 = vmatprep.subr.mxu0 0.0
    %1020 = vmatpush1.msra.mxu0 %v287
    %1021 = vmatprep.subr.mxu0 0.0
    %1022 = vmatpush1.msra.mxu0 %v285
    %1023 = vmatprep.subr.mxu0 0.0
    %1024 = vmatpush1.msra.mxu0 %v283
    %1025 = vmatprep.subr.mxu0 0.0
    %1026 = vmatpush1.msra.mxu0 %v281
    %1027 = vmatprep.subr.mxu0 0.0
    %1028 = vmatpush1.msra.mxu0 %v279
    %1029 = vmatprep.subr.mxu0 0.0
    %1030 = vmatpush2.msra.mxu0 0.0
    %1031 = vmatprep.subr.mxu0 0.0
    %1032 = vmatpush2.msra.mxu0 0.0
    %1033 = vmatprep.subr.mxu0 0.0
    %1034 = vmatpush2.msra.mxu0 0.0
    %1035 = vmatprep.subr.mxu0 0.0
    %1036 = vmatpush2.msra.mxu0 0.0
    %1037 = vmatprep.subr.mxu0 0.0
    %1038 = vmatpush2.msra.mxu0 0.0
    %1039 = vmatprep.subr.mxu0 0.0
    %1040 = vmatpush2.msra.mxu0 0.0
    %1041 = vmatprep.subr.mxu0 0.0
    %1042 = vmatpush2.msra.mxu0 0.0
    %1043 = vmatprep.subr.mxu0 0.0
    %1044 = vmatpush2.msra.mxu0 0.0
    %1045 = vmatprep.subr.mxu0 0.0
    %1046 = vmatpush2.msra.mxu0 0.0
    %1047 = vmatprep.subr.mxu0 0.0
    %1048 = vmatpush2.msra.mxu0 0.0
    %1049 = vmatprep.subr.mxu0 0.0
    %1050 = vmatpush2.msra.mxu0 0.0
    %1051 = vmatprep.subr.mxu0 0.0
    %1052 = vmatpush2.msra.mxu0 0.0
    %1053 = vmatprep.subr.mxu0 0.0
    %1054 = vmatpush2.msra.mxu0 0.0
    %1055 = vmatprep.subr.mxu0 0.0
    %1056 = vmatpush2.msra.mxu0 0.0
    %1057 = vmatprep.subr.mxu0 0.0
    %1058 = vmatpush2.msra.mxu0 0.0
    %1059 = vmatprep.subr.mxu0 0.0
    %1060 = vmatpush2.msra.mxu0 0.0
    %1061 = vmatprep.mubr.f32.mxu0 0.0
    %1062 = vmatmul.mubr.f32.gmra.mxu0 %v915
    %v1063 = vpop.f32.mrf.mxu0
    %v1064 = vadd.f32 0.0, %v1063
    %v1065 = vpop.f32.mrf.mxu0
    %1066 = vdwg.mxu0
    %v1068 = vrot.slane %v1064, 4
    %v1070 = vadd.f32 %v174, %v1068
    %v1071 = vxor.u32 %v1070, 2147483648
    %v1072 = vmul.f32 %v1071, 1.442695
    %v1073 = vpow.pop %v1072
    %v1074 = vadd.f32 %v1073, 1.0
    %v1075 = vrcp.pop %v1074
    %v1076 = vmul.f32 1.0, %v1075
    %1077 = vmatprep.subr.mxu0 0.0
    %1078 = vmatpush1.msra.mxu0 0.0
    %1079 = vmatprep.subr.mxu0 0.0
    %1080 = vmatpush1.msra.mxu0 0.0
    %1081 = vmatprep.subr.mxu0 0.0
    %1082 = vmatpush1.msra.mxu0 0.0
    %1083 = vmatprep.subr.mxu0 0.0
    %1084 = vmatpush1.msra.mxu0 0.0
    %1085 = vmatprep.subr.mxu0 0.0
    %1086 = vmatpush1.msra.mxu0 0.0
    %1087 = vmatprep.subr.mxu0 0.0
    %1088 = vmatpush1.msra.mxu0 0.0
    %1089 = vmatprep.subr.mxu0 0.0
    %1090 = vmatpush1.msra.mxu0 0.0
    %1091 = vmatprep.subr.mxu0 0.0
    %1092 = vmatpush1.msra.mxu0 0.0
    %1093 = vmatprep.subr.mxu0 0.0
    %1094 = vmatpush1.msra.mxu0 %v162
    %1095 = vmatprep.subr.mxu0 0.0
    %1096 = vmatpush1.msra.mxu0 %v160
    %1097 = vmatprep.subr.mxu0 0.0
    %1098 = vmatpush1.msra.mxu0 %v158
    %1099 = vmatprep.subr.mxu0 0.0
    %1100 = vmatpush1.msra.mxu0 %v156
    %1101 = vmatprep.subr.mxu0 0.0
    %1102 = vmatpush1.msra.mxu0 %v154
    %1103 = vmatprep.subr.mxu0 0.0
    %1104 = vmatpush1.msra.mxu0 %v152
    %1105 = vmatprep.subr.mxu0 0.0
    %1106 = vmatpush1.msra.mxu0 %v150
    %1107 = vmatprep.subr.mxu0 0.0
    %1108 = vmatpush1.msra.mxu0 %v148
    %1109 = vmatprep.subr.mxu0 0.0
    %1110 = vmatpush2.msra.mxu0 0.0
    %1111 = vmatprep.subr.mxu0 0.0
    %1112 = vmatpush2.msra.mxu0 0.0
    %1113 = vmatprep.subr.mxu0 0.0
    %1114 = vmatpush2.msra.mxu0 0.0
    %1115 = vmatprep.subr.mxu0 0.0
    %1116 = vmatpush2.msra.mxu0 0.0
    %1117 = vmatprep.subr.mxu0 0.0
    %1118 = vmatpush2.msra.mxu0 0.0
    %1119 = vmatprep.subr.mxu0 0.0
    %1120 = vmatpush2.msra.mxu0 0.0
    %1121 = vmatprep.subr.mxu0 0.0
    %1122 = vmatpush2.msra.mxu0 0.0
    %1123 = vmatprep.subr.mxu0 0.0
    %1124 = vmatpush2.msra.mxu0 0.0
    %1125 = vmatprep.subr.mxu0 0.0
    %1126 = vmatpush2.msra.mxu0 0.0
    %1127 = vmatprep.subr.mxu0 0.0
    %1128 = vmatpush2.msra.mxu0 0.0
    %1129 = vmatprep.subr.mxu0 0.0
    %1130 = vmatpush2.msra.mxu0 0.0
    %1131 = vmatprep.subr.mxu0 0.0
    %1132 = vmatpush2.msra.mxu0 0.0
    %1133 = vmatprep.subr.mxu0 0.0
    %1134 = vmatpush2.msra.mxu0 0.0
    %1135 = vmatprep.subr.mxu0 0.0
    %1136 = vmatpush2.msra.mxu0 0.0
    %1137 = vmatprep.subr.mxu0 0.0
    %1138 = vmatpush2.msra.mxu0 0.0
    %1139 = vmatprep.subr.mxu0 0.0
    %1140 = vmatpush2.msra.mxu0 0.0
    %1141 = vmatprep.mubr.f32.mxu0 0.0
    %1142 = vmatmul.mubr.f32.gmra.mxu0 %v915
    %v1143 = vpop.f32.mrf.mxu0
    %v1144 = vadd.f32 0.0, %v1143
    %v1145 = vpop.f32.mrf.mxu0
    %1146 = vdwg.mxu0
    %v1148 = vrot.slane %v1144, 4
    %v1150 = vadd.f32 %v181, %v1148
    %v1151 = vtanh.pop %v1150
    %1152 = vmatprep.subr.mxu0 0.0
    %1153 = vmatpush1.msra.mxu0 0.0
    %1154 = vmatprep.subr.mxu0 0.0
    %1155 = vmatpush1.msra.mxu0 0.0
    %1156 = vmatprep.subr.mxu0 0.0
    %1157 = vmatpush1.msra.mxu0 0.0
    %1158 = vmatprep.subr.mxu0 0.0
    %1159 = vmatpush1.msra.mxu0 0.0
    %1160 = vmatprep.subr.mxu0 0.0
    %1161 = vmatpush1.msra.mxu0 0.0
    %1162 = vmatprep.subr.mxu0 0.0
    %1163 = vmatpush1.msra.mxu0 0.0
    %1164 = vmatprep.subr.mxu0 0.0
    %1165 = vmatpush1.msra.mxu0 0.0
    %1166 = vmatprep.subr.mxu0 0.0
    %1167 = vmatpush1.msra.mxu0 0.0
    %1168 = vmatprep.subr.mxu0 0.0
    %1169 = vmatpush1.msra.mxu0 %v474
    %1170 = vmatprep.subr.mxu0 0.0
    %1171 = vmatpush1.msra.mxu0 %v472
    %1172 = vmatprep.subr.mxu0 0.0
    %1173 = vmatpush1.msra.mxu0 %v470
    %1174 = vmatprep.subr.mxu0 0.0
    %1175 = vmatpush1.msra.mxu0 %v468
    %1176 = vmatprep.subr.mxu0 0.0
    %1177 = vmatpush1.msra.mxu0 %v466
    %1178 = vmatprep.subr.mxu0 0.0
    %1179 = vmatpush1.msra.mxu0 %v464
    %1180 = vmatprep.subr.mxu0 0.0
    %1181 = vmatpush1.msra.mxu0 %v462
    %1182 = vmatprep.subr.mxu0 0.0
    %1183 = vmatpush1.msra.mxu0 %v460
    %1184 = vmatprep.subr.mxu0 0.0
    %1185 = vmatpush2.msra.mxu0 0.0
    %1186 = vmatprep.subr.mxu0 0.0
    %1187 = vmatpush2.msra.mxu0 0.0
    %1188 = vmatprep.subr.mxu0 0.0
    %1189 = vmatpush2.msra.mxu0 0.0
    %1190 = vmatprep.subr.mxu0 0.0
    %1191 = vmatpush2.msra.mxu0 0.0
    %1192 = vmatprep.subr.mxu0 0.0
    %1193 = vmatpush2.msra.mxu0 0.0
    %1194 = vmatprep.subr.mxu0 0.0
    %1195 = vmatpush2.msra.mxu0 0.0
    %1196 = vmatprep.subr.mxu0 0.0
    %1197 = vmatpush2.msra.mxu0 0.0
    %1198 = vmatprep.subr.mxu0 0.0
    %1199 = vmatpush2.msra.mxu0 0.0
    %1200 = vmatprep.subr.mxu0 0.0
    %1201 = vmatpush2.msra.mxu0 0.0
    %1202 = vmatprep.subr.mxu0 0.0
    %1203 = vmatpush2.msra.mxu0 0.0
    %1204 = vmatprep.subr.mxu0 0.0
    %1205 = vmatpush2.msra.mxu0 0.0
    %1206 = vmatprep.subr.mxu0 0.0
    %1207 = vmatpush2.msra.mxu0 0.0
    %1208 = vmatprep.subr.mxu0 0.0
    %1209 = vmatpush2.msra.mxu0 0.0
    %1210 = vmatprep.subr.mxu0 0.0
    %1211 = vmatpush2.msra.mxu0 0.0
    %1212 = vmatprep.subr.mxu0 0.0
    %1213 = vmatpush2.msra.mxu0 0.0
    %1214 = vmatprep.subr.mxu0 0.0
    %1215 = vmatpush2.msra.mxu0 0.0
    %1216 = vmatprep.mubr.f32.mxu0 0.0
    %1217 = vmatmul.mubr.f32.gmra.mxu0 %v915
    %v1218 = vpop.f32.mrf.mxu0
    %v1219 = vadd.f32 0.0, %v1218
    %v1220 = vpop.f32.mrf.mxu0
    %1221 = vdwg.mxu0
    %v1223 = vrot.slane %v1219, 4
    %v1225 = vadd.f32 %v188, %v1223
    %v1226 = vxor.u32 %v1225, 2147483648
    %v1227 = vmul.f32 %v1226, 1.442695
    %v1228 = vpow.pop %v1227
    %v1229 = vadd.f32 %v1228, 1.0
    %v1230 = vrcp.pop %v1229
    %v1231 = vmul.f32 1.0, %v1230
    %v1233 = vrot.slane %v905, 6
    %v1235 = vmul.f32 %v1076, %v1233
    %v1236 = vmul.f32 %v996, %v1151
    %v1237 = vadd.f32 %v1235, %v1236
    %v1238 = vtanh.pop %v1237
    %v1239 = vmul.f32 %v1231, %v1238
    %v1241 = vrot.slane %v1239, 4
    %v1243 = vmax.f32 %v911, %v1241
    %v1244 = vrot.slane %v41, 4
    %v1246 = vmax.f32 %v914, %v1244
    %v1247 = vsel %vm189, %v1241, 0
    %1249 = vmatprep.subr.mxu0 0.0
    %1250 = vmatpush1.msra.mxu0 0.0
    %1251 = vmatprep.subr.mxu0 0.0
    %1252 = vmatpush1.msra.mxu0 0.0
    %1253 = vmatprep.subr.mxu0 0.0
    %1254 = vmatpush1.msra.mxu0 0.0
    %1255 = vmatprep.subr.mxu0 0.0
    %1256 = vmatpush1.msra.mxu0 0.0
    %1257 = vmatprep.subr.mxu0 0.0
    %1258 = vmatpush1.msra.mxu0 0.0
    %1259 = vmatprep.subr.mxu0 0.0
    %1260 = vmatpush1.msra.mxu0 0.0
    %1261 = vmatprep.subr.mxu0 0.0
    %1262 = vmatpush1.msra.mxu0 0.0
    %1263 = vmatprep.subr.mxu0 0.0
    %1264 = vmatpush1.msra.mxu0 0.0
    %1265 = vmatprep.subr.mxu0 0.0
    %1266 = vmatpush1.msra.mxu0 %v161
    %1267 = vmatprep.subr.mxu0 0.0
    %1268 = vmatpush1.msra.mxu0 %v159
    %1269 = vmatprep.subr.mxu0 0.0
    %1270 = vmatpush1.msra.mxu0 %v157
    %1271 = vmatprep.subr.mxu0 0.0
    %1272 = vmatpush1.msra.mxu0 %v155
    %1273 = vmatprep.subr.mxu0 0.0
    %1274 = vmatpush1.msra.mxu0 %v153
    %1275 = vmatprep.subr.mxu0 0.0
    %1276 = vmatpush1.msra.mxu0 %v151
    %1277 = vmatprep.subr.mxu0 0.0
    %1278 = vmatpush1.msra.mxu0 %v149
    %1279 = vmatprep.subr.mxu0 0.0
    %1280 = vmatpush1.msra.mxu0 %v147
    %1281 = vmatprep.subr.mxu0 0.0
    %1282 = vmatpush2.msra.mxu0 0.0
    %1283 = vmatprep.subr.mxu0 0.0
    %1284 = vmatpush2.msra.mxu0 0.0
    %1285 = vmatprep.subr.mxu0 0.0
    %1286 = vmatpush2.msra.mxu0 0.0
    %1287 = vmatprep.subr.mxu0 0.0
    %1288 = vmatpush2.msra.mxu0 0.0
    %1289 = vmatprep.subr.mxu0 0.0
    %1290 = vmatpush2.msra.mxu0 0.0
    %1291 = vmatprep.subr.mxu0 0.0
    %1292 = vmatpush2.msra.mxu0 0.0
    %1293 = vmatprep.subr.mxu0 0.0
    %1294 = vmatpush2.msra.mxu0 0.0
    %1295 = vmatprep.subr.mxu0 0.0
    %1296 = vmatpush2.msra.mxu0 0.0
    %1297 = vmatprep.subr.mxu0 0.0
    %1298 = vmatpush2.msra.mxu0 0.0
    %1299 = vmatprep.subr.mxu0 0.0
    %1300 = vmatpush2.msra.mxu0 0.0
    %1301 = vmatprep.subr.mxu0 0.0
    %1302 = vmatpush2.msra.mxu0 0.0
    %1303 = vmatprep.subr.mxu0 0.0
    %1304 = vmatpush2.msra.mxu0 0.0
    %1305 = vmatprep.subr.mxu0 0.0
    %1306 = vmatpush2.msra.mxu0 0.0
    %1307 = vmatprep.subr.mxu0 0.0
    %1308 = vmatpush2.msra.mxu0 0.0
    %1309 = vmatprep.subr.mxu0 0.0
    %1310 = vmatpush2.msra.mxu0 0.0
    %1311 = vmatprep.subr.mxu0 0.0
    %1312 = vmatpush2.msra.mxu0 0.0
    %1313 = vmatprep.mubr.f32.mxu0 0.0
    %1314 = vmatmul.mubr.f32.gmra.mxu0 %v1247
    %v1315 = vpop.f32.mrf.mxu0
    %v1316 = vadd.f32 0.0, %v1315
    %v1317 = vpop.f32.mrf.mxu0
    %1318 = vdwg.mxu0
    %v1320 = vrot.slane %v1316, 2
    %v1322 = vadd.f32 %v571, %v1320
    %v1323 = vxor.u32 %v1322, 2147483648
    %v1324 = vmul.f32 %v1323, 1.442695
    %v1325 = vpow.pop %v1324
    %v1326 = vadd.f32 %v1325, 1.0
    %v1327 = vrcp.pop %v1326
    %v1328 = vmul.f32 1.0, %v1327
    %1329 = vmatprep.subr.mxu0 0.0
    %1330 = vmatpush1.msra.mxu0 0.0
    %1331 = vmatprep.subr.mxu0 0.0
    %1332 = vmatpush1.msra.mxu0 0.0
    %1333 = vmatprep.subr.mxu0 0.0
    %1334 = vmatpush1.msra.mxu0 0.0
    %1335 = vmatprep.subr.mxu0 0.0
    %1336 = vmatpush1.msra.mxu0 0.0
    %1337 = vmatprep.subr.mxu0 0.0
    %1338 = vmatpush1.msra.mxu0 0.0
    %1339 = vmatprep.subr.mxu0 0.0
    %1340 = vmatpush1.msra.mxu0 0.0
    %1341 = vmatprep.subr.mxu0 0.0
    %1342 = vmatpush1.msra.mxu0 0.0
    %1343 = vmatprep.subr.mxu0 0.0
    %1344 = vmatpush1.msra.mxu0 0.0
    %1345 = vmatprep.subr.mxu0 0.0
    %1346 = vmatpush1.msra.mxu0 %v293
    %1347 = vmatprep.subr.mxu0 0.0
    %1348 = vmatpush1.msra.mxu0 %v291
    %1349 = vmatprep.subr.mxu0 0.0
    %1350 = vmatpush1.msra.mxu0 %v289
    %1351 = vmatprep.subr.mxu0 0.0
    %1352 = vmatpush1.msra.mxu0 %v287
    %1353 = vmatprep.subr.mxu0 0.0
    %1354 = vmatpush1.msra.mxu0 %v285
    %1355 = vmatprep.subr.mxu0 0.0
    %1356 = vmatpush1.msra.mxu0 %v283
    %1357 = vmatprep.subr.mxu0 0.0
    %1358 = vmatpush1.msra.mxu0 %v281
    %1359 = vmatprep.subr.mxu0 0.0
    %1360 = vmatpush1.msra.mxu0 %v279
    %1361 = vmatprep.subr.mxu0 0.0
    %1362 = vmatpush2.msra.mxu0 0.0
    %1363 = vmatprep.subr.mxu0 0.0
    %1364 = vmatpush2.msra.mxu0 0.0
    %1365 = vmatprep.subr.mxu0 0.0
    %1366 = vmatpush2.msra.mxu0 0.0
    %1367 = vmatprep.subr.mxu0 0.0
    %1368 = vmatpush2.msra.mxu0 0.0
    %1369 = vmatprep.subr.mxu0 0.0
    %1370 = vmatpush2.msra.mxu0 0.0
    %1371 = vmatprep.subr.mxu0 0.0
    %1372 = vmatpush2.msra.mxu0 0.0
    %1373 = vmatprep.subr.mxu0 0.0
    %1374 = vmatpush2.msra.mxu0 0.0
    %1375 = vmatprep.subr.mxu0 0.0
    %1376 = vmatpush2.msra.mxu0 0.0
    %1377 = vmatprep.subr.mxu0 0.0
    %1378 = vmatpush2.msra.mxu0 0.0
    %1379 = vmatprep.subr.mxu0 0.0
    %1380 = vmatpush2.msra.mxu0 0.0
    %1381 = vmatprep.subr.mxu0 0.0
    %1382 = vmatpush2.msra.mxu0 0.0
    %1383 = vmatprep.subr.mxu0 0.0
    %1384 = vmatpush2.msra.mxu0 0.0
    %1385 = vmatprep.subr.mxu0 0.0
    %1386 = vmatpush2.msra.mxu0 0.0
    %1387 = vmatprep.subr.mxu0 0.0
    %1388 = vmatpush2.msra.mxu0 0.0
    %1389 = vmatprep.subr.mxu0 0.0
    %1390 = vmatpush2.msra.mxu0 0.0
    %1391 = vmatprep.subr.mxu0 0.0
    %1392 = vmatpush2.msra.mxu0 0.0
    %1393 = vmatprep.mubr.f32.mxu0 0.0
    %1394 = vmatmul.mubr.f32.gmra.mxu0 %v1247
    %v1395 = vpop.f32.mrf.mxu0
    %v1396 = vadd.f32 0.0, %v1395
    %v1397 = vpop.f32.mrf.mxu0
    %1398 = vdwg.mxu0
    %v1400 = vrot.slane %v1396, 2
    %v1402 = vadd.f32 %v573, %v1400
    %v1403 = vxor.u32 %v1402, 2147483648
    %v1404 = vmul.f32 %v1403, 1.442695
    %v1405 = vpow.pop %v1404
    %v1406 = vadd.f32 %v1405, 1.0
    %v1407 = vrcp.pop %v1406
    %v1408 = vmul.f32 1.0, %v1407
    %1409 = vmatprep.subr.mxu0 0.0
    %1410 = vmatpush1.msra.mxu0 0.0
    %1411 = vmatprep.subr.mxu0 0.0
    %1412 = vmatpush1.msra.mxu0 0.0
    %1413 = vmatprep.subr.mxu0 0.0
    %1414 = vmatpush1.msra.mxu0 0.0
    %1415 = vmatprep.subr.mxu0 0.0
    %1416 = vmatpush1.msra.mxu0 0.0
    %1417 = vmatprep.subr.mxu0 0.0
    %1418 = vmatpush1.msra.mxu0 0.0
    %1419 = vmatprep.subr.mxu0 0.0
    %1420 = vmatpush1.msra.mxu0 0.0
    %1421 = vmatprep.subr.mxu0 0.0
    %1422 = vmatpush1.msra.mxu0 0.0
    %1423 = vmatprep.subr.mxu0 0.0
    %1424 = vmatpush1.msra.mxu0 0.0
    %1425 = vmatprep.subr.mxu0 0.0
    %1426 = vmatpush1.msra.mxu0 %v162
    %1427 = vmatprep.subr.mxu0 0.0
    %1428 = vmatpush1.msra.mxu0 %v160
    %1429 = vmatprep.subr.mxu0 0.0
    %1430 = vmatpush1.msra.mxu0 %v158
    %1431 = vmatprep.subr.mxu0 0.0
    %1432 = vmatpush1.msra.mxu0 %v156
    %1433 = vmatprep.subr.mxu0 0.0
    %1434 = vmatpush1.msra.mxu0 %v154
    %1435 = vmatprep.subr.mxu0 0.0
    %1436 = vmatpush1.msra.mxu0 %v152
    %1437 = vmatprep.subr.mxu0 0.0
    %1438 = vmatpush1.msra.mxu0 %v150
    %1439 = vmatprep.subr.mxu0 0.0
    %1440 = vmatpush1.msra.mxu0 %v148
    %1441 = vmatprep.subr.mxu0 0.0
    %1442 = vmatpush2.msra.mxu0 0.0
    %1443 = vmatprep.subr.mxu0 0.0
    %1444 = vmatpush2.msra.mxu0 0.0
    %1445 = vmatprep.subr.mxu0 0.0
    %1446 = vmatpush2.msra.mxu0 0.0
    %1447 = vmatprep.subr.mxu0 0.0
    %1448 = vmatpush2.msra.mxu0 0.0
    %1449 = vmatprep.subr.mxu0 0.0
    %1450 = vmatpush2.msra.mxu0 0.0
    %1451 = vmatprep.subr.mxu0 0.0
    %1452 = vmatpush2.msra.mxu0 0.0
    %1453 = vmatprep.subr.mxu0 0.0
    %1454 = vmatpush2.msra.mxu0 0.0
    %1455 = vmatprep.subr.mxu0 0.0
    %1456 = vmatpush2.msra.mxu0 0.0
    %1457 = vmatprep.subr.mxu0 0.0
    %1458 = vmatpush2.msra.mxu0 0.0
    %1459 = vmatprep.subr.mxu0 0.0
    %1460 = vmatpush2.msra.mxu0 0.0
    %1461 = vmatprep.subr.mxu0 0.0
    %1462 = vmatpush2.msra.mxu0 0.0
    %1463 = vmatprep.subr.mxu0 0.0
    %1464 = vmatpush2.msra.mxu0 0.0
    %1465 = vmatprep.subr.mxu0 0.0
    %1466 = vmatpush2.msra.mxu0 0.0
    %1467 = vmatprep.subr.mxu0 0.0
    %1468 = vmatpush2.msra.mxu0 0.0
    %1469 = vmatprep.subr.mxu0 0.0
    %1470 = vmatpush2.msra.mxu0 0.0
    %1471 = vmatprep.subr.mxu0 0.0
    %1472 = vmatpush2.msra.mxu0 0.0
    %1473 = vmatprep.mubr.f32.mxu0 0.0
    %1474 = vmatmul.mubr.f32.gmra.mxu0 %v1247
    %v1475 = vpop.f32.mrf.mxu0
    %v1476 = vadd.f32 0.0, %v1475
    %v1477 = vpop.f32.mrf.mxu0
    %1478 = vdwg.mxu0
    %v1480 = vrot.slane %v1476, 2
    %v1482 = vadd.f32 %v577, %v1480
    %v1483 = vtanh.pop %v1482
    %1484 = vmatprep.subr.mxu0 0.0
    %1485 = vmatpush1.msra.mxu0 0.0
    %1486 = vmatprep.subr.mxu0 0.0
    %1487 = vmatpush1.msra.mxu0 0.0
    %1488 = vmatprep.subr.mxu0 0.0
    %1489 = vmatpush1.msra.mxu0 0.0
    %1490 = vmatprep.subr.mxu0 0.0
    %1491 = vmatpush1.msra.mxu0 0.0
    %1492 = vmatprep.subr.mxu0 0.0
    %1493 = vmatpush1.msra.mxu0 0.0
    %1494 = vmatprep.subr.mxu0 0.0
    %1495 = vmatpush1.msra.mxu0 0.0
    %1496 = vmatprep.subr.mxu0 0.0
    %1497 = vmatpush1.msra.mxu0 0.0
    %1498 = vmatprep.subr.mxu0 0.0
    %1499 = vmatpush1.msra.mxu0 0.0
    %1500 = vmatprep.subr.mxu0 0.0
    %1501 = vmatpush1.msra.mxu0 %v474
    %1502 = vmatprep.subr.mxu0 0.0
    %1503 = vmatpush1.msra.mxu0 %v472
    %1504 = vmatprep.subr.mxu0 0.0
    %1505 = vmatpush1.msra.mxu0 %v470
    %1506 = vmatprep.subr.mxu0 0.0
    %1507 = vmatpush1.msra.mxu0 %v468
    %1508 = vmatprep.subr.mxu0 0.0
    %1509 = vmatpush1.msra.mxu0 %v466
    %1510 = vmatprep.subr.mxu0 0.0
    %1511 = vmatpush1.msra.mxu0 %v464
    %1512 = vmatprep.subr.mxu0 0.0
    %1513 = vmatpush1.msra.mxu0 %v462
    %1514 = vmatprep.subr.mxu0 0.0
    %1515 = vmatpush1.msra.mxu0 %v460
    %1516 = vmatprep.subr.mxu0 0.0
    %1517 = vmatpush2.msra.mxu0 0.0
    %1518 = vmatprep.subr.mxu0 0.0
    %1519 = vmatpush2.msra.mxu0 0.0
    %1520 = vmatprep.subr.mxu0 0.0
    %1521 = vmatpush2.msra.mxu0 0.0
    %1522 = vmatprep.subr.mxu0 0.0
    %1523 = vmatpush2.msra.mxu0 0.0
    %1524 = vmatprep.subr.mxu0 0.0
    %1525 = vmatpush2.msra.mxu0 0.0
    %1526 = vmatprep.subr.mxu0 0.0
    %1527 = vmatpush2.msra.mxu0 0.0
    %1528 = vmatprep.subr.mxu0 0.0
    %1529 = vmatpush2.msra.mxu0 0.0
    %1530 = vmatprep.subr.mxu0 0.0
    %1531 = vmatpush2.msra.mxu0 0.0
    %1532 = vmatprep.subr.mxu0 0.0
    %1533 = vmatpush2.msra.mxu0 0.0
    %1534 = vmatprep.subr.mxu0 0.0
    %1535 = vmatpush2.msra.mxu0 0.0
    %1536 = vmatprep.subr.mxu0 0.0
    %1537 = vmatpush2.msra.mxu0 0.0
    %1538 = vmatprep.subr.mxu0 0.0
    %1539 = vmatpush2.msra.mxu0 0.0
    %1540 = vmatprep.subr.mxu0 0.0
    %1541 = vmatpush2.msra.mxu0 0.0
    %1542 = vmatprep.subr.mxu0 0.0
    %1543 = vmatpush2.msra.mxu0 0.0
    %1544 = vmatprep.subr.mxu0 0.0
    %1545 = vmatpush2.msra.mxu0 0.0
    %1546 = vmatprep.subr.mxu0 0.0
    %1547 = vmatpush2.msra.mxu0 0.0
    %1548 = vmatprep.mubr.f32.mxu0 0.0
    %1549 = vmatmul.mubr.f32.gmra.mxu0 %v1247
    %v1550 = vpop.f32.mrf.mxu0
    %v1551 = vadd.f32 0.0, %v1550
    %v1552 = vpop.f32.mrf.mxu0
    %1553 = vdwg.mxu0
    %v1555 = vrot.slane %v1551, 2
    %v1557 = vadd.f32 %v581, %v1555
    %v1558 = vxor.u32 %v1557, 2147483648
    %v1559 = vmul.f32 %v1558, 1.442695
    %v1560 = vpow.pop %v1559
    %v1561 = vadd.f32 %v1560, 1.0
    %v1562 = vrcp.pop %v1561
    %v1563 = vmul.f32 1.0, %v1562
    %v1565 = vrot.slane %v1237, 6
    %v1567 = vmul.f32 %v1408, %v1565
    %v1568 = vmul.f32 %v1328, %v1483
    %v1569 = vadd.f32 %v1567, %v1568
    %v1570 = vtanh.pop %v1569
    %v1571 = vmul.f32 %v1563, %v1570
    %v1573 = vrot.slane %v1571, 6
    %v1575 = vmax.f32 %v1243, %v1573
    %v1576 = vrot.slane %v41, 6
    %v1578 = vmax.f32 %v1246, %v1576
    %v1580 = vrot.slane %v139, 6
    %1581 = vrot.lane.b32.xlu0 %v1580, 32
    %v1582 = vpop.permute.xlu0 %1581
    %v1584 = vsel %vm63, %v143, %v1582
    %1586 = vrot.lane.b32.xlu0 %v143, 96
    %v1587 = vpop.permute.xlu0 %1586
    %v1590 = vsel %vm63, %v1587, %v1580
    %1591 = vrot.lane.b32.xlu0 %v143, 64
    %v1592 = vpop.permute.xlu0 %1591
    %1594 = vrot.lane.b32.xlu0 %v1580, 96
    %v1595 = vpop.permute.xlu0 %1594
    %v1597 = vsel %vm63, %v1592, %v1595
    %1598 = vrot.lane.b32.xlu0 %v143, 32
    %v1599 = vpop.permute.xlu0 %1598
    %1601 = vrot.lane.b32.xlu0 %v1580, 64
    %v1602 = vpop.permute.xlu0 %1601
    %v1604 = vsel %vm63, %v1599, %v1602
    %v1605 = vsel %vm189, %v1573, 0
    %1607 = vmatprep.subr.mxu0 0.0
    %1608 = vmatpush1.msra.mxu0 0.0
    %1609 = vmatprep.subr.mxu0 0.0
    %1610 = vmatpush1.msra.mxu0 0.0
    %1611 = vmatprep.subr.mxu0 0.0
    %1612 = vmatpush1.msra.mxu0 0.0
    %1613 = vmatprep.subr.mxu0 0.0
    %1614 = vmatpush1.msra.mxu0 0.0
    %1615 = vmatprep.subr.mxu0 0.0
    %1616 = vmatpush1.msra.mxu0 0.0
    %1617 = vmatprep.subr.mxu0 0.0
    %1618 = vmatpush1.msra.mxu0 0.0
    %1619 = vmatprep.subr.mxu0 0.0
    %1620 = vmatpush1.msra.mxu0 0.0
    %1621 = vmatprep.subr.mxu0 0.0
    %1622 = vmatpush1.msra.mxu0 0.0
    %1623 = vmatprep.subr.mxu0 0.0
    %1624 = vmatpush1.msra.mxu0 %v161
    %1625 = vmatprep.subr.mxu0 0.0
    %1626 = vmatpush1.msra.mxu0 %v159
    %1627 = vmatprep.subr.mxu0 0.0
    %1628 = vmatpush1.msra.mxu0 %v157
    %1629 = vmatprep.subr.mxu0 0.0
    %1630 = vmatpush1.msra.mxu0 %v155
    %1631 = vmatprep.subr.mxu0 0.0
    %1632 = vmatpush1.msra.mxu0 %v153
    %1633 = vmatprep.subr.mxu0 0.0
    %1634 = vmatpush1.msra.mxu0 %v151
    %1635 = vmatprep.subr.mxu0 0.0
    %1636 = vmatpush1.msra.mxu0 %v149
    %1637 = vmatprep.subr.mxu0 0.0
    %1638 = vmatpush1.msra.mxu0 %v147
    %1639 = vmatprep.subr.mxu0 0.0
    %1640 = vmatpush2.msra.mxu0 0.0
    %1641 = vmatprep.subr.mxu0 0.0
    %1642 = vmatpush2.msra.mxu0 0.0
    %1643 = vmatprep.subr.mxu0 0.0
    %1644 = vmatpush2.msra.mxu0 0.0
    %1645 = vmatprep.subr.mxu0 0.0
    %1646 = vmatpush2.msra.mxu0 0.0
    %1647 = vmatprep.subr.mxu0 0.0
    %1648 = vmatpush2.msra.mxu0 0.0
    %1649 = vmatprep.subr.mxu0 0.0
    %1650 = vmatpush2.msra.mxu0 0.0
    %1651 = vmatprep.subr.mxu0 0.0
    %1652 = vmatpush2.msra.mxu0 0.0
    %1653 = vmatprep.subr.mxu0 0.0
    %1654 = vmatpush2.msra.mxu0 0.0
    %1655 = vmatprep.subr.mxu0 0.0
    %1656 = vmatpush2.msra.mxu0 0.0
    %1657 = vmatprep.subr.mxu0 0.0
    %1658 = vmatpush2.msra.mxu0 0.0
    %1659 = vmatprep.subr.mxu0 0.0
    %1660 = vmatpush2.msra.mxu0 0.0
    %1661 = vmatprep.subr.mxu0 0.0
    %1662 = vmatpush2.msra.mxu0 0.0
    %1663 = vmatprep.subr.mxu0 0.0
    %1664 = vmatpush2.msra.mxu0 0.0
    %1665 = vmatprep.subr.mxu0 0.0
    %1666 = vmatpush2.msra.mxu0 0.0
    %1667 = vmatprep.subr.mxu0 0.0
    %1668 = vmatpush2.msra.mxu0 0.0
    %1669 = vmatprep.subr.mxu0 0.0
    %1670 = vmatpush2.msra.mxu0 0.0
    %1671 = vmatprep.mubr.f32.mxu0 0.0
    %1672 = vmatmul.mubr.f32.gmra.mxu0 %v1605
    %v1673 = vpop.f32.mrf.mxu0
    %v1674 = vadd.f32 0.0, %v1673
    %v1675 = vpop.f32.mrf.mxu0
    %1676 = vdwg.mxu0
    %v1677 = vadd.f32 %v1584, %v1674
    %v1678 = vxor.u32 %v1677, 2147483648
    %v1679 = vmul.f32 %v1678, 1.442695
    %v1680 = vpow.pop %v1679
    %v1681 = vadd.f32 %v1680, 1.0
    %v1682 = vrcp.pop %v1681
    %v1683 = vmul.f32 1.0, %v1682
    %1684 = vmatprep.subr.mxu0 0.0
    %1685 = vmatpush1.msra.mxu0 0.0
    %1686 = vmatprep.subr.mxu0 0.0
    %1687 = vmatpush1.msra.mxu0 0.0
    %1688 = vmatprep.subr.mxu0 0.0
    %1689 = vmatpush1.msra.mxu0 0.0
    %1690 = vmatprep.subr.mxu0 0.0
    %1691 = vmatpush1.msra.mxu0 0.0
    %1692 = vmatprep.subr.mxu0 0.0
    %1693 = vmatpush1.msra.mxu0 0.0
    %1694 = vmatprep.subr.mxu0 0.0
    %1695 = vmatpush1.msra.mxu0 0.0
    %1696 = vmatprep.subr.mxu0 0.0
    %1697 = vmatpush1.msra.mxu0 0.0
    %1698 = vmatprep.subr.mxu0 0.0
    %1699 = vmatpush1.msra.mxu0 0.0
    %1700 = vmatprep.subr.mxu0 0.0
    %1701 = vmatpush1.msra.mxu0 %v293
    %1702 = vmatprep.subr.mxu0 0.0
    %1703 = vmatpush1.msra.mxu0 %v291
    %1704 = vmatprep.subr.mxu0 0.0
    %1705 = vmatpush1.msra.mxu0 %v289
    %1706 = vmatprep.subr.mxu0 0.0
    %1707 = vmatpush1.msra.mxu0 %v287
    %1708 = vmatprep.subr.mxu0 0.0
    %1709 = vmatpush1.msra.mxu0 %v285
    %1710 = vmatprep.subr.mxu0 0.0
    %1711 = vmatpush1.msra.mxu0 %v283
    %1712 = vmatprep.subr.mxu0 0.0
    %1713 = vmatpush1.msra.mxu0 %v281
    %1714 = vmatprep.subr.mxu0 0.0
    %1715 = vmatpush1.msra.mxu0 %v279
    %1716 = vmatprep.subr.mxu0 0.0
    %1717 = vmatpush2.msra.mxu0 0.0
    %1718 = vmatprep.subr.mxu0 0.0
    %1719 = vmatpush2.msra.mxu0 0.0
    %1720 = vmatprep.subr.mxu0 0.0
    %1721 = vmatpush2.msra.mxu0 0.0
    %1722 = vmatprep.subr.mxu0 0.0
    %1723 = vmatpush2.msra.mxu0 0.0
    %1724 = vmatprep.subr.mxu0 0.0
    %1725 = vmatpush2.msra.mxu0 0.0
    %1726 = vmatprep.subr.mxu0 0.0
    %1727 = vmatpush2.msra.mxu0 0.0
    %1728 = vmatprep.subr.mxu0 0.0
    %1729 = vmatpush2.msra.mxu0 0.0
    %1730 = vmatprep.subr.mxu0 0.0
    %1731 = vmatpush2.msra.mxu0 0.0
    %1732 = vmatprep.subr.mxu0 0.0
    %1733 = vmatpush2.msra.mxu0 0.0
    %1734 = vmatprep.subr.mxu0 0.0
    %1735 = vmatpush2.msra.mxu0 0.0
    %1736 = vmatprep.subr.mxu0 0.0
    %1737 = vmatpush2.msra.mxu0 0.0
    %1738 = vmatprep.subr.mxu0 0.0
    %1739 = vmatpush2.msra.mxu0 0.0
    %1740 = vmatprep.subr.mxu0 0.0
    %1741 = vmatpush2.msra.mxu0 0.0
    %1742 = vmatprep.subr.mxu0 0.0
    %1743 = vmatpush2.msra.mxu0 0.0
    %1744 = vmatprep.subr.mxu0 0.0
    %1745 = vmatpush2.msra.mxu0 0.0
    %1746 = vmatprep.subr.mxu0 0.0
    %1747 = vmatpush2.msra.mxu0 0.0
    %1748 = vmatprep.mubr.f32.mxu0 0.0
    %1749 = vmatmul.mubr.f32.gmra.mxu0 %v1605
    %v1750 = vpop.f32.mrf.mxu0
    %v1751 = vadd.f32 0.0, %v1750
    %v1752 = vpop.f32.mrf.mxu0
    %1753 = vdwg.mxu0
    %v1754 = vadd.f32 %v1590, %v1751
    %v1755 = vxor.u32 %v1754, 2147483648
    %v1756 = vmul.f32 %v1755, 1.442695
    %v1757 = vpow.pop %v1756
    %v1758 = vadd.f32 %v1757, 1.0
    %v1759 = vrcp.pop %v1758
    %v1760 = vmul.f32 1.0, %v1759
    %1761 = vmatprep.subr.mxu0 0.0
    %1762 = vmatpush1.msra.mxu0 0.0
    %1763 = vmatprep.subr.mxu0 0.0
    %1764 = vmatpush1.msra.mxu0 0.0
    %1765 = vmatprep.subr.mxu0 0.0
    %1766 = vmatpush1.msra.mxu0 0.0
    %1767 = vmatprep.subr.mxu0 0.0
    %1768 = vmatpush1.msra.mxu0 0.0
    %1769 = vmatprep.subr.mxu0 0.0
    %1770 = vmatpush1.msra.mxu0 0.0
    %1771 = vmatprep.subr.mxu0 0.0
    %1772 = vmatpush1.msra.mxu0 0.0
    %1773 = vmatprep.subr.mxu0 0.0
    %1774 = vmatpush1.msra.mxu0 0.0
    %1775 = vmatprep.subr.mxu0 0.0
    %1776 = vmatpush1.msra.mxu0 0.0
    %1777 = vmatprep.subr.mxu0 0.0
    %1778 = vmatpush1.msra.mxu0 %v162
    %1779 = vmatprep.subr.mxu0 0.0
    %1780 = vmatpush1.msra.mxu0 %v160
    %1781 = vmatprep.subr.mxu0 0.0
    %1782 = vmatpush1.msra.mxu0 %v158
    %1783 = vmatprep.subr.mxu0 0.0
    %1784 = vmatpush1.msra.mxu0 %v156
    %1785 = vmatprep.subr.mxu0 0.0
    %1786 = vmatpush1.msra.mxu0 %v154
    %1787 = vmatprep.subr.mxu0 0.0
    %1788 = vmatpush1.msra.mxu0 %v152
    %1789 = vmatprep.subr.mxu0 0.0
    %1790 = vmatpush1.msra.mxu0 %v150
    %1791 = vmatprep.subr.mxu0 0.0
    %1792 = vmatpush1.msra.mxu0 %v148
    %1793 = vmatprep.subr.mxu0 0.0
    %1794 = vmatpush2.msra.mxu0 0.0
    %1795 = vmatprep.subr.mxu0 0.0
    %1796 = vmatpush2.msra.mxu0 0.0
    %1797 = vmatprep.subr.mxu0 0.0
    %1798 = vmatpush2.msra.mxu0 0.0
    %1799 = vmatprep.subr.mxu0 0.0
    %1800 = vmatpush2.msra.mxu0 0.0
    %1801 = vmatprep.subr.mxu0 0.0
    %1802 = vmatpush2.msra.mxu0 0.0
    %1803 = vmatprep.subr.mxu0 0.0
    %1804 = vmatpush2.msra.mxu0 0.0
    %1805 = vmatprep.subr.mxu0 0.0
    %1806 = vmatpush2.msra.mxu0 0.0
    %1807 = vmatprep.subr.mxu0 0.0
    %1808 = vmatpush2.msra.mxu0 0.0
    %1809 = vmatprep.subr.mxu0 0.0
    %1810 = vmatpush2.msra.mxu0 0.0
    %1811 = vmatprep.subr.mxu0 0.0
    %1812 = vmatpush2.msra.mxu0 0.0
    %1813 = vmatprep.subr.mxu0 0.0
    %1814 = vmatpush2.msra.mxu0 0.0
    %1815 = vmatprep.subr.mxu0 0.0
    %1816 = vmatpush2.msra.mxu0 0.0
    %1817 = vmatprep.subr.mxu0 0.0
    %1818 = vmatpush2.msra.mxu0 0.0
    %1819 = vmatprep.subr.mxu0 0.0
    %1820 = vmatpush2.msra.mxu0 0.0
    %1821 = vmatprep.subr.mxu0 0.0
    %1822 = vmatpush2.msra.mxu0 0.0
    %1823 = vmatprep.subr.mxu0 0.0
    %1824 = vmatpush2.msra.mxu0 0.0
    %1825 = vmatprep.mubr.f32.mxu0 0.0
    %1826 = vmatmul.mubr.f32.gmra.mxu0 %v1605
    %v1827 = vpop.f32.mrf.mxu0
    %v1828 = vadd.f32 0.0, %v1827
    %v1829 = vpop.f32.mrf.mxu0
    %1830 = vdwg.mxu0
    %v1831 = vadd.f32 %v1597, %v1828
    %v1832 = vtanh.pop %v1831
    %1833 = vmatprep.subr.mxu0 0.0
    %1834 = vmatpush1.msra.mxu0 0.0
    %1835 = vmatprep.subr.mxu0 0.0
    %1836 = vmatpush1.msra.mxu0 0.0
    %1837 = vmatprep.subr.mxu0 0.0
    %1838 = vmatpush1.msra.mxu0 0.0
    %1839 = vmatprep.subr.mxu0 0.0
    %1840 = vmatpush1.msra.mxu0 0.0
    %1841 = vmatprep.subr.mxu0 0.0
    %1842 = vmatpush1.msra.mxu0 0.0
    %1843 = vmatprep.subr.mxu0 0.0
    %1844 = vmatpush1.msra.mxu0 0.0
    %1845 = vmatprep.subr.mxu0 0.0
    %1846 = vmatpush1.msra.mxu0 0.0
    %1847 = vmatprep.subr.mxu0 0.0
    %1848 = vmatpush1.msra.mxu0 0.0
    %1849 = vmatprep.subr.mxu0 0.0
    %1850 = vmatpush1.msra.mxu0 %v474
    %1851 = vmatprep.subr.mxu0 0.0
    %1852 = vmatpush1.msra.mxu0 %v472
    %1853 = vmatprep.subr.mxu0 0.0
    %1854 = vmatpush1.msra.mxu0 %v470
    %1855 = vmatprep.subr.mxu0 0.0
    %1856 = vmatpush1.msra.mxu0 %v468
    %1857 = vmatprep.subr.mxu0 0.0
    %1858 = vmatpush1.msra.mxu0 %v466
    %1859 = vmatprep.subr.mxu0 0.0
    %1860 = vmatpush1.msra.mxu0 %v464
    %1861 = vmatprep.subr.mxu0 0.0
    %1862 = vmatpush1.msra.mxu0 %v462
    %1863 = vmatprep.subr.mxu0 0.0
    %1864 = vmatpush1.msra.mxu0 %v460
    %1865 = vmatprep.subr.mxu0 0.0
    %1866 = vmatpush2.msra.mxu0 0.0
    %1867 = vmatprep.subr.mxu0 0.0
    %1868 = vmatpush2.msra.mxu0 0.0
    %1869 = vmatprep.subr.mxu0 0.0
    %1870 = vmatpush2.msra.mxu0 0.0
    %1871 = vmatprep.subr.mxu0 0.0
    %1872 = vmatpush2.msra.mxu0 0.0
    %1873 = vmatprep.subr.mxu0 0.0
    %1874 = vmatpush2.msra.mxu0 0.0
    %1875 = vmatprep.subr.mxu0 0.0
    %1876 = vmatpush2.msra.mxu0 0.0
    %1877 = vmatprep.subr.mxu0 0.0
    %1878 = vmatpush2.msra.mxu0 0.0
    %1879 = vmatprep.subr.mxu0 0.0
    %1880 = vmatpush2.msra.mxu0 0.0
    %1881 = vmatprep.subr.mxu0 0.0
    %1882 = vmatpush2.msra.mxu0 0.0
    %1883 = vmatprep.subr.mxu0 0.0
    %1884 = vmatpush2.msra.mxu0 0.0
    %1885 = vmatprep.subr.mxu0 0.0
    %1886 = vmatpush2.msra.mxu0 0.0
    %1887 = vmatprep.subr.mxu0 0.0
    %1888 = vmatpush2.msra.mxu0 0.0
    %1889 = vmatprep.subr.mxu0 0.0
    %1890 = vmatpush2.msra.mxu0 0.0
    %1891 = vmatprep.subr.mxu0 0.0
    %1892 = vmatpush2.msra.mxu0 0.0
    %1893 = vmatprep.subr.mxu0 0.0
    %1894 = vmatpush2.msra.mxu0 0.0
    %1895 = vmatprep.subr.mxu0 0.0
    %1896 = vmatpush2.msra.mxu0 0.0
    %1897 = vmatprep.mubr.f32.mxu0 0.0
    %1898 = vmatmul.mubr.f32.gmra.mxu0 %v1605
    %v1899 = vpop.f32.mrf.mxu0
    %v1900 = vadd.f32 0.0, %v1899
    %v1901 = vpop.f32.mrf.mxu0
    %1902 = vdwg.mxu0
    %v1903 = vadd.f32 %v1604, %v1900
    %v1904 = vxor.u32 %v1903, 2147483648
    %v1905 = vmul.f32 %v1904, 1.442695
    %v1906 = vpow.pop %v1905
    %v1907 = vadd.f32 %v1906, 1.0
    %v1908 = vrcp.pop %v1907
    %v1909 = vmul.f32 1.0, %v1908
    %v1911 = vrot.slane %v1569, 6
    %v1913 = vmul.f32 %v1760, %v1911
    %v1914 = vmul.f32 %v1683, %v1832
    %v1915 = vadd.f32 %v1913, %v1914
    %v1916 = vtanh.pop %v1915
    %v1917 = vmul.f32 %v1909, %v1916
    %v1918 = vmax.f32 %v1575, %v1917
    %v1919 = vmax.f32 %v1578, %v42
    %v1920 = vrot.slane %v139, 2
    %1921 = vrot.lane.b32.xlu0 %v1920, 32
    %v1922 = vpop.permute.xlu0 %1921
    %v1924 = vsel %vm63, %v143, %v1922
    %v1926 = vsel %vm63, %v1587, %v1920
    %1927 = vrot.lane.b32.xlu0 %v1920, 96
    %v1928 = vpop.permute.xlu0 %1927
    %v1930 = vsel %vm63, %v1592, %v1928
    %1931 = vrot.lane.b32.xlu0 %v1920, 64
    %v1932 = vpop.permute.xlu0 %1931
    %v1934 = vsel %vm63, %v1599, %v1932
    %v1936 = vsel %vm189, %v1917, 0
    %1938 = vmatprep.subr.mxu0 0.0
    %1939 = vmatpush1.msra.mxu0 0.0
    %1940 = vmatprep.subr.mxu0 0.0
    %1941 = vmatpush1.msra.mxu0 0.0
    %1942 = vmatprep.subr.mxu0 0.0
    %1943 = vmatpush1.msra.mxu0 0.0
    %1944 = vmatprep.subr.mxu0 0.0
    %1945 = vmatpush1.msra.mxu0 0.0
    %1946 = vmatprep.subr.mxu0 0.0
    %1947 = vmatpush1.msra.mxu0 0.0
    %1948 = vmatprep.subr.mxu0 0.0
    %1949 = vmatpush1.msra.mxu0 0.0
    %1950 = vmatprep.subr.mxu0 0.0
    %1951 = vmatpush1.msra.mxu0 0.0
    %1952 = vmatprep.subr.mxu0 0.0
    %1953 = vmatpush1.msra.mxu0 0.0
    %1954 = vmatprep.subr.mxu0 0.0
    %1955 = vmatpush1.msra.mxu0 %v161
    %1956 = vmatprep.subr.mxu0 0.0
    %1957 = vmatpush1.msra.mxu0 %v159
    %1958 = vmatprep.subr.mxu0 0.0
    %1959 = vmatpush1.msra.mxu0 %v157
    %1960 = vmatprep.subr.mxu0 0.0
    %1961 = vmatpush1.msra.mxu0 %v155
    %1962 = vmatprep.subr.mxu0 0.0
    %1963 = vmatpush1.msra.mxu0 %v153
    %1964 = vmatprep.subr.mxu0 0.0
    %1965 = vmatpush1.msra.mxu0 %v151
    %1966 = vmatprep.subr.mxu0 0.0
    %1967 = vmatpush1.msra.mxu0 %v149
    %1968 = vmatprep.subr.mxu0 0.0
    %1969 = vmatpush1.msra.mxu0 %v147
    %1970 = vmatprep.subr.mxu0 0.0
    %1971 = vmatpush2.msra.mxu0 0.0
    %1972 = vmatprep.subr.mxu0 0.0
    %1973 = vmatpush2.msra.mxu0 0.0
    %1974 = vmatprep.subr.mxu0 0.0
    %1975 = vmatpush2.msra.mxu0 0.0
    %1976 = vmatprep.subr.mxu0 0.0
    %1977 = vmatpush2.msra.mxu0 0.0
    %1978 = vmatprep.subr.mxu0 0.0
    %1979 = vmatpush2.msra.mxu0 0.0
    %1980 = vmatprep.subr.mxu0 0.0
    %1981 = vmatpush2.msra.mxu0 0.0
    %1982 = vmatprep.subr.mxu0 0.0
    %1983 = vmatpush2.msra.mxu0 0.0
    %1984 = vmatprep.subr.mxu0 0.0
    %1985 = vmatpush2.msra.mxu0 0.0
    %1986 = vmatprep.subr.mxu0 0.0
    %1987 = vmatpush2.msra.mxu0 0.0
    %1988 = vmatprep.subr.mxu0 0.0
    %1989 = vmatpush2.msra.mxu0 0.0
    %1990 = vmatprep.subr.mxu0 0.0
    %1991 = vmatpush2.msra.mxu0 0.0
    %1992 = vmatprep.subr.mxu0 0.0
    %1993 = vmatpush2.msra.mxu0 0.0
    %1994 = vmatprep.subr.mxu0 0.0
    %1995 = vmatpush2.msra.mxu0 0.0
    %1996 = vmatprep.subr.mxu0 0.0
    %1997 = vmatpush2.msra.mxu0 0.0
    %1998 = vmatprep.subr.mxu0 0.0
    %1999 = vmatpush2.msra.mxu0 0.0
    %2000 = vmatprep.subr.mxu0 0.0
    %2001 = vmatpush2.msra.mxu0 0.0
    %2002 = vmatprep.mubr.f32.mxu0 0.0
    %2003 = vmatmul.mubr.f32.gmra.mxu0 %v1936
    %v2004 = vpop.f32.mrf.mxu0
    %v2005 = vadd.f32 0.0, %v2004
    %v2006 = vpop.f32.mrf.mxu0
    %2007 = vdwg.mxu0
    %v2009 = vrot.slane %v2005, 6
    %v2011 = vadd.f32 %v1924, %v2009
    %v2012 = vxor.u32 %v2011, 2147483648
    %v2013 = vmul.f32 %v2012, 1.442695
    %v2014 = vpow.pop %v2013
    %v2015 = vadd.f32 %v2014, 1.0
    %v2016 = vrcp.pop %v2015
    %v2017 = vmul.f32 1.0, %v2016
    %2018 = vmatprep.subr.mxu0 0.0
    %2019 = vmatpush1.msra.mxu0 0.0
    %2020 = vmatprep.subr.mxu0 0.0
    %2021 = vmatpush1.msra.mxu0 0.0
    %2022 = vmatprep.subr.mxu0 0.0
    %2023 = vmatpush1.msra.mxu0 0.0
    %2024 = vmatprep.subr.mxu0 0.0
    %2025 = vmatpush1.msra.mxu0 0.0
    %2026 = vmatprep.subr.mxu0 0.0
    %2027 = vmatpush1.msra.mxu0 0.0
    %2028 = vmatprep.subr.mxu0 0.0
    %2029 = vmatpush1.msra.mxu0 0.0
    %2030 = vmatprep.subr.mxu0 0.0
    %2031 = vmatpush1.msra.mxu0 0.0
    %2032 = vmatprep.subr.mxu0 0.0
    %2033 = vmatpush1.msra.mxu0 0.0
    %2034 = vmatprep.subr.mxu0 0.0
    %2035 = vmatpush1.msra.mxu0 %v293
    %2036 = vmatprep.subr.mxu0 0.0
    %2037 = vmatpush1.msra.mxu0 %v291
    %2038 = vmatprep.subr.mxu0 0.0
    %2039 = vmatpush1.msra.mxu0 %v289
    %2040 = vmatprep.subr.mxu0 0.0
    %2041 = vmatpush1.msra.mxu0 %v287
    %2042 = vmatprep.subr.mxu0 0.0
    %2043 = vmatpush1.msra.mxu0 %v285
    %2044 = vmatprep.subr.mxu0 0.0
    %2045 = vmatpush1.msra.mxu0 %v283
    %2046 = vmatprep.subr.mxu0 0.0
    %2047 = vmatpush1.msra.mxu0 %v281
    %2048 = vmatprep.subr.mxu0 0.0
    %2049 = vmatpush1.msra.mxu0 %v279
    %2050 = vmatprep.subr.mxu0 0.0
    %2051 = vmatpush2.msra.mxu0 0.0
    %2052 = vmatprep.subr.mxu0 0.0
    %2053 = vmatpush2.msra.mxu0 0.0
    %2054 = vmatprep.subr.mxu0 0.0
    %2055 = vmatpush2.msra.mxu0 0.0
    %2056 = vmatprep.subr.mxu0 0.0
    %2057 = vmatpush2.msra.mxu0 0.0
    %2058 = vmatprep.subr.mxu0 0.0
    %2059 = vmatpush2.msra.mxu0 0.0
    %2060 = vmatprep.subr.mxu0 0.0
    %2061 = vmatpush2.msra.mxu0 0.0
    %2062 = vmatprep.subr.mxu0 0.0
    %2063 = vmatpush2.msra.mxu0 0.0
    %2064 = vmatprep.subr.mxu0 0.0
    %2065 = vmatpush2.msra.mxu0 0.0
    %2066 = vmatprep.subr.mxu0 0.0
    %2067 = vmatpush2.msra.mxu0 0.0
    %2068 = vmatprep.subr.mxu0 0.0
    %2069 = vmatpush2.msra.mxu0 0.0
    %2070 = vmatprep.subr.mxu0 0.0
    %2071 = vmatpush2.msra.mxu0 0.0
    %2072 = vmatprep.subr.mxu0 0.0
    %2073 = vmatpush2.msra.mxu0 0.0
    %2074 = vmatprep.subr.mxu0 0.0
    %2075 = vmatpush2.msra.mxu0 0.0
    %2076 = vmatprep.subr.mxu0 0.0
    %2077 = vmatpush2.msra.mxu0 0.0
    %2078 = vmatprep.subr.mxu0 0.0
    %2079 = vmatpush2.msra.mxu0 0.0
    %2080 = vmatprep.subr.mxu0 0.0
    %2081 = vmatpush2.msra.mxu0 0.0
    %2082 = vmatprep.mubr.f32.mxu0 0.0
    %2083 = vmatmul.mubr.f32.gmra.mxu0 %v1936
    %v2084 = vpop.f32.mrf.mxu0
    %v2085 = vadd.f32 0.0, %v2084
    %v2086 = vpop.f32.mrf.mxu0
    %2087 = vdwg.mxu0
    %v2089 = vrot.slane %v2085, 6
    %v2091 = vadd.f32 %v1926, %v2089
    %v2092 = vxor.u32 %v2091, 2147483648
    %v2093 = vmul.f32 %v2092, 1.442695
    %v2094 = vpow.pop %v2093
    %v2095 = vadd.f32 %v2094, 1.0
    %v2096 = vrcp.pop %v2095
    %v2097 = vmul.f32 1.0, %v2096
    %2098 = vmatprep.subr.mxu0 0.0
    %2099 = vmatpush1.msra.mxu0 0.0
    %2100 = vmatprep.subr.mxu0 0.0
    %2101 = vmatpush1.msra.mxu0 0.0
    %2102 = vmatprep.subr.mxu0 0.0
    %2103 = vmatpush1.msra.mxu0 0.0
    %2104 = vmatprep.subr.mxu0 0.0
    %2105 = vmatpush1.msra.mxu0 0.0
    %2106 = vmatprep.subr.mxu0 0.0
    %2107 = vmatpush1.msra.mxu0 0.0
    %2108 = vmatprep.subr.mxu0 0.0
    %2109 = vmatpush1.msra.mxu0 0.0
    %2110 = vmatprep.subr.mxu0 0.0
    %2111 = vmatpush1.msra.mxu0 0.0
    %2112 = vmatprep.subr.mxu0 0.0
    %2113 = vmatpush1.msra.mxu0 0.0
    %2114 = vmatprep.subr.mxu0 0.0
    %2115 = vmatpush1.msra.mxu0 %v162
    %2116 = vmatprep.subr.mxu0 0.0
    %2117 = vmatpush1.msra.mxu0 %v160
    %2118 = vmatprep.subr.mxu0 0.0
    %2119 = vmatpush1.msra.mxu0 %v158
    %2120 = vmatprep.subr.mxu0 0.0
    %2121 = vmatpush1.msra.mxu0 %v156
    %2122 = vmatprep.subr.mxu0 0.0
    %2123 = vmatpush1.msra.mxu0 %v154
    %2124 = vmatprep.subr.mxu0 0.0
    %2125 = vmatpush1.msra.mxu0 %v152
    %2126 = vmatprep.subr.mxu0 0.0
    %2127 = vmatpush1.msra.mxu0 %v150
    %2128 = vmatprep.subr.mxu0 0.0
    %2129 = vmatpush1.msra.mxu0 %v148
    %2130 = vmatprep.subr.mxu0 0.0
    %2131 = vmatpush2.msra.mxu0 0.0
    %2132 = vmatprep.subr.mxu0 0.0
    %2133 = vmatpush2.msra.mxu0 0.0
    %2134 = vmatprep.subr.mxu0 0.0
    %2135 = vmatpush2.msra.mxu0 0.0
    %2136 = vmatprep.subr.mxu0 0.0
    %2137 = vmatpush2.msra.mxu0 0.0
    %2138 = vmatprep.subr.mxu0 0.0
    %2139 = vmatpush2.msra.mxu0 0.0
    %2140 = vmatprep.subr.mxu0 0.0
    %2141 = vmatpush2.msra.mxu0 0.0
    %2142 = vmatprep.subr.mxu0 0.0
    %2143 = vmatpush2.msra.mxu0 0.0
    %2144 = vmatprep.subr.mxu0 0.0
    %2145 = vmatpush2.msra.mxu0 0.0
    %2146 = vmatprep.subr.mxu0 0.0
    %2147 = vmatpush2.msra.mxu0 0.0
    %2148 = vmatprep.subr.mxu0 0.0
    %2149 = vmatpush2.msra.mxu0 0.0
    %2150 = vmatprep.subr.mxu0 0.0
    %2151 = vmatpush2.msra.mxu0 0.0
    %2152 = vmatprep.subr.mxu0 0.0
    %2153 = vmatpush2.msra.mxu0 0.0
    %2154 = vmatprep.subr.mxu0 0.0
    %2155 = vmatpush2.msra.mxu0 0.0
    %2156 = vmatprep.subr.mxu0 0.0
    %2157 = vmatpush2.msra.mxu0 0.0
    %2158 = vmatprep.subr.mxu0 0.0
    %2159 = vmatpush2.msra.mxu0 0.0
    %2160 = vmatprep.subr.mxu0 0.0
    %2161 = vmatpush2.msra.mxu0 0.0
    %2162 = vmatprep.mubr.f32.mxu0 0.0
    %2163 = vmatmul.mubr.f32.gmra.mxu0 %v1936
    %v2164 = vpop.f32.mrf.mxu0
    %v2165 = vadd.f32 0.0, %v2164
    %v2166 = vpop.f32.mrf.mxu0
    %2167 = vdwg.mxu0
    %v2169 = vrot.slane %v2165, 6
    %v2171 = vadd.f32 %v1930, %v2169
    %v2172 = vtanh.pop %v2171
    %2173 = vmatprep.subr.mxu0 0.0
    %2174 = vmatpush1.msra.mxu0 0.0
    %2175 = vmatprep.subr.mxu0 0.0
    %2176 = vmatpush1.msra.mxu0 0.0
    %2177 = vmatprep.subr.mxu0 0.0
    %2178 = vmatpush1.msra.mxu0 0.0
    %2179 = vmatprep.subr.mxu0 0.0
    %2180 = vmatpush1.msra.mxu0 0.0
    %2181 = vmatprep.subr.mxu0 0.0
    %2182 = vmatpush1.msra.mxu0 0.0
    %2183 = vmatprep.subr.mxu0 0.0
    %2184 = vmatpush1.msra.mxu0 0.0
    %2185 = vmatprep.subr.mxu0 0.0
    %2186 = vmatpush1.msra.mxu0 0.0
    %2187 = vmatprep.subr.mxu0 0.0
    %2188 = vmatpush1.msra.mxu0 0.0
    %2189 = vmatprep.subr.mxu0 0.0
    %2190 = vmatpush1.msra.mxu0 %v474
    %2191 = vmatprep.subr.mxu0 0.0
    %2192 = vmatpush1.msra.mxu0 %v472
    %2193 = vmatprep.subr.mxu0 0.0
    %2194 = vmatpush1.msra.mxu0 %v470
    %2195 = vmatprep.subr.mxu0 0.0
    %2196 = vmatpush1.msra.mxu0 %v468
    %2197 = vmatprep.subr.mxu0 0.0
    %2198 = vmatpush1.msra.mxu0 %v466
    %2199 = vmatprep.subr.mxu0 0.0
    %2200 = vmatpush1.msra.mxu0 %v464
    %2201 = vmatprep.subr.mxu0 0.0
    %2202 = vmatpush1.msra.mxu0 %v462
    %2203 = vmatprep.subr.mxu0 0.0
    %2204 = vmatpush1.msra.mxu0 %v460
    %2205 = vmatprep.subr.mxu0 0.0
    %2206 = vmatpush2.msra.mxu0 0.0
    %2207 = vmatprep.subr.mxu0 0.0
    %2208 = vmatpush2.msra.mxu0 0.0
    %2209 = vmatprep.subr.mxu0 0.0
    %2210 = vmatpush2.msra.mxu0 0.0
    %2211 = vmatprep.subr.mxu0 0.0
    %2212 = vmatpush2.msra.mxu0 0.0
    %2213 = vmatprep.subr.mxu0 0.0
    %2214 = vmatpush2.msra.mxu0 0.0
    %2215 = vmatprep.subr.mxu0 0.0
    %2216 = vmatpush2.msra.mxu0 0.0
    %2217 = vmatprep.subr.mxu0 0.0
    %2218 = vmatpush2.msra.mxu0 0.0
    %2219 = vmatprep.subr.mxu0 0.0
    %2220 = vmatpush2.msra.mxu0 0.0
    %2221 = vmatprep.subr.mxu0 0.0
    %2222 = vmatpush2.msra.mxu0 0.0
    %2223 = vmatprep.subr.mxu0 0.0
    %2224 = vmatpush2.msra.mxu0 0.0
    %2225 = vmatprep.subr.mxu0 0.0
    %2226 = vmatpush2.msra.mxu0 0.0
    %2227 = vmatprep.subr.mxu0 0.0
    %2228 = vmatpush2.msra.mxu0 0.0
    %2229 = vmatprep.subr.mxu0 0.0
    %2230 = vmatpush2.msra.mxu0 0.0
    %2231 = vmatprep.subr.mxu0 0.0
    %2232 = vmatpush2.msra.mxu0 0.0
    %2233 = vmatprep.subr.mxu0 0.0
    %2234 = vmatpush2.msra.mxu0 0.0
    %2235 = vmatprep.subr.mxu0 0.0
    %2236 = vmatpush2.msra.mxu0 0.0
    %2237 = vmatprep.mubr.f32.mxu0 0.0
    %2238 = vmatmul.mubr.f32.gmra.mxu0 %v1936
    %v2239 = vpop.f32.mrf.mxu0
    %v2240 = vadd.f32 0.0, %v2239
    %v2241 = vpop.f32.mrf.mxu0
    %2242 = vdwg.mxu0
    %v2244 = vrot.slane %v2240, 6
    %v2246 = vadd.f32 %v1934, %v2244
    %v2247 = vxor.u32 %v2246, 2147483648
    %v2248 = vmul.f32 %v2247, 1.442695
    %v2249 = vpow.pop %v2248
    %v2250 = vadd.f32 %v2249, 1.0
    %v2251 = vrcp.pop %v2250
    %v2252 = vmul.f32 1.0, %v2251
    %v2254 = vrot.slane %v1915, 6
    %v2256 = vmul.f32 %v2097, %v2254
    %v2257 = vmul.f32 %v2017, %v2172
    %v2258 = vadd.f32 %v2256, %v2257
    %v2259 = vtanh.pop %v2258
    %v2260 = vmul.f32 %v2252, %v2259
    %v2262 = vrot.slane %v2260, 2
    %v2264 = vmax.f32 %v1918, %v2262
    %v2265 = vrot.slane %v42, 2
    %v2267 = vmax.f32 %v1919, %v2265
    %v2268 = vsel %vm189, %v2262, 0
    %2270 = vmatprep.subr.mxu0 0.0
    %2271 = vmatpush1.msra.mxu0 0.0
    %2272 = vmatprep.subr.mxu0 0.0
    %2273 = vmatpush1.msra.mxu0 0.0
    %2274 = vmatprep.subr.mxu0 0.0
    %2275 = vmatpush1.msra.mxu0 0.0
    %2276 = vmatprep.subr.mxu0 0.0
    %2277 = vmatpush1.msra.mxu0 0.0
    %2278 = vmatprep.subr.mxu0 0.0
    %2279 = vmatpush1.msra.mxu0 0.0
    %2280 = vmatprep.subr.mxu0 0.0
    %2281 = vmatpush1.msra.mxu0 0.0
    %2282 = vmatprep.subr.mxu0 0.0
    %2283 = vmatpush1.msra.mxu0 0.0
    %2284 = vmatprep.subr.mxu0 0.0
    %2285 = vmatpush1.msra.mxu0 0.0
    %2286 = vmatprep.subr.mxu0 0.0
    %2287 = vmatpush1.msra.mxu0 %v161
    %2288 = vmatprep.subr.mxu0 0.0
    %2289 = vmatpush1.msra.mxu0 %v159
    %2290 = vmatprep.subr.mxu0 0.0
    %2291 = vmatpush1.msra.mxu0 %v157
    %2292 = vmatprep.subr.mxu0 0.0
    %2293 = vmatpush1.msra.mxu0 %v155
    %2294 = vmatprep.subr.mxu0 0.0
    %2295 = vmatpush1.msra.mxu0 %v153
    %2296 = vmatprep.subr.mxu0 0.0
    %2297 = vmatpush1.msra.mxu0 %v151
    %2298 = vmatprep.subr.mxu0 0.0
    %2299 = vmatpush1.msra.mxu0 %v149
    %2300 = vmatprep.subr.mxu0 0.0
    %2301 = vmatpush1.msra.mxu0 %v147
    %2302 = vmatprep.subr.mxu0 0.0
    %2303 = vmatpush2.msra.mxu0 0.0
    %2304 = vmatprep.subr.mxu0 0.0
    %2305 = vmatpush2.msra.mxu0 0.0
    %2306 = vmatprep.subr.mxu0 0.0
    %2307 = vmatpush2.msra.mxu0 0.0
    %2308 = vmatprep.subr.mxu0 0.0
    %2309 = vmatpush2.msra.mxu0 0.0
    %2310 = vmatprep.subr.mxu0 0.0
    %2311 = vmatpush2.msra.mxu0 0.0
    %2312 = vmatprep.subr.mxu0 0.0
    %2313 = vmatpush2.msra.mxu0 0.0
    %2314 = vmatprep.subr.mxu0 0.0
    %2315 = vmatpush2.msra.mxu0 0.0
    %2316 = vmatprep.subr.mxu0 0.0
    %2317 = vmatpush2.msra.mxu0 0.0
    %2318 = vmatprep.subr.mxu0 0.0
    %2319 = vmatpush2.msra.mxu0 0.0
    %2320 = vmatprep.subr.mxu0 0.0
    %2321 = vmatpush2.msra.mxu0 0.0
    %2322 = vmatprep.subr.mxu0 0.0
    %2323 = vmatpush2.msra.mxu0 0.0
    %2324 = vmatprep.subr.mxu0 0.0
    %2325 = vmatpush2.msra.mxu0 0.0
    %2326 = vmatprep.subr.mxu0 0.0
    %2327 = vmatpush2.msra.mxu0 0.0
    %2328 = vmatprep.subr.mxu0 0.0
    %2329 = vmatpush2.msra.mxu0 0.0
    %2330 = vmatprep.subr.mxu0 0.0
    %2331 = vmatpush2.msra.mxu0 0.0
    %2332 = vmatprep.subr.mxu0 0.0
    %2333 = vmatpush2.msra.mxu0 0.0
    %2334 = vmatprep.mubr.f32.mxu0 0.0
    %2335 = vmatmul.mubr.f32.gmra.mxu0 %v2268
    %v2336 = vpop.f32.mrf.mxu0
    %v2337 = vadd.f32 0.0, %v2336
    %v2338 = vpop.f32.mrf.mxu0
    %2339 = vdwg.mxu0
    %v2341 = vrot.slane %v2337, 4
    %v2343 = vadd.f32 %v1584, %v2341
    %v2344 = vxor.u32 %v2343, 2147483648
    %v2345 = vmul.f32 %v2344, 1.442695
    %v2346 = vpow.pop %v2345
    %v2347 = vadd.f32 %v2346, 1.0
    %v2348 = vrcp.pop %v2347
    %v2349 = vmul.f32 1.0, %v2348
    %2350 = vmatprep.subr.mxu0 0.0
    %2351 = vmatpush1.msra.mxu0 0.0
    %2352 = vmatprep.subr.mxu0 0.0
    %2353 = vmatpush1.msra.mxu0 0.0
    %2354 = vmatprep.subr.mxu0 0.0
    %2355 = vmatpush1.msra.mxu0 0.0
    %2356 = vmatprep.subr.mxu0 0.0
    %2357 = vmatpush1.msra.mxu0 0.0
    %2358 = vmatprep.subr.mxu0 0.0
    %2359 = vmatpush1.msra.mxu0 0.0
    %2360 = vmatprep.subr.mxu0 0.0
    %2361 = vmatpush1.msra.mxu0 0.0
    %2362 = vmatprep.subr.mxu0 0.0
    %2363 = vmatpush1.msra.mxu0 0.0
    %2364 = vmatprep.subr.mxu0 0.0
    %2365 = vmatpush1.msra.mxu0 0.0
    %2366 = vmatprep.subr.mxu0 0.0
    %2367 = vmatpush1.msra.mxu0 %v293
    %2368 = vmatprep.subr.mxu0 0.0
    %2369 = vmatpush1.msra.mxu0 %v291
    %2370 = vmatprep.subr.mxu0 0.0
    %2371 = vmatpush1.msra.mxu0 %v289
    %2372 = vmatprep.subr.mxu0 0.0
    %2373 = vmatpush1.msra.mxu0 %v287
    %2374 = vmatprep.subr.mxu0 0.0
    %2375 = vmatpush1.msra.mxu0 %v285
    %2376 = vmatprep.subr.mxu0 0.0
    %2377 = vmatpush1.msra.mxu0 %v283
    %2378 = vmatprep.subr.mxu0 0.0
    %2379 = vmatpush1.msra.mxu0 %v281
    %2380 = vmatprep.subr.mxu0 0.0
    %2381 = vmatpush1.msra.mxu0 %v279
    %2382 = vmatprep.subr.mxu0 0.0
    %2383 = vmatpush2.msra.mxu0 0.0
    %2384 = vmatprep.subr.mxu0 0.0
    %2385 = vmatpush2.msra.mxu0 0.0
    %2386 = vmatprep.subr.mxu0 0.0
    %2387 = vmatpush2.msra.mxu0 0.0
    %2388 = vmatprep.subr.mxu0 0.0
    %2389 = vmatpush2.msra.mxu0 0.0
    %2390 = vmatprep.subr.mxu0 0.0
    %2391 = vmatpush2.msra.mxu0 0.0
    %2392 = vmatprep.subr.mxu0 0.0
    %2393 = vmatpush2.msra.mxu0 0.0
    %2394 = vmatprep.subr.mxu0 0.0
    %2395 = vmatpush2.msra.mxu0 0.0
    %2396 = vmatprep.subr.mxu0 0.0
    %2397 = vmatpush2.msra.mxu0 0.0
    %2398 = vmatprep.subr.mxu0 0.0
    %2399 = vmatpush2.msra.mxu0 0.0
    %2400 = vmatprep.subr.mxu0 0.0
    %2401 = vmatpush2.msra.mxu0 0.0
    %2402 = vmatprep.subr.mxu0 0.0
    %2403 = vmatpush2.msra.mxu0 0.0
    %2404 = vmatprep.subr.mxu0 0.0
    %2405 = vmatpush2.msra.mxu0 0.0
    %2406 = vmatprep.subr.mxu0 0.0
    %2407 = vmatpush2.msra.mxu0 0.0
    %2408 = vmatprep.subr.mxu0 0.0
    %2409 = vmatpush2.msra.mxu0 0.0
    %2410 = vmatprep.subr.mxu0 0.0
    %2411 = vmatpush2.msra.mxu0 0.0
    %2412 = vmatprep.subr.mxu0 0.0
    %2413 = vmatpush2.msra.mxu0 0.0
    %2414 = vmatprep.mubr.f32.mxu0 0.0
    %2415 = vmatmul.mubr.f32.gmra.mxu0 %v2268
    %v2416 = vpop.f32.mrf.mxu0
    %v2417 = vadd.f32 0.0, %v2416
    %v2418 = vpop.f32.mrf.mxu0
    %2419 = vdwg.mxu0
    %v2421 = vrot.slane %v2417, 4
    %v2423 = vadd.f32 %v1590, %v2421
    %v2424 = vxor.u32 %v2423, 2147483648
    %v2425 = vmul.f32 %v2424, 1.442695
    %v2426 = vpow.pop %v2425
    %v2427 = vadd.f32 %v2426, 1.0
    %v2428 = vrcp.pop %v2427
    %v2429 = vmul.f32 1.0, %v2428
    %2430 = vmatprep.subr.mxu0 0.0
    %2431 = vmatpush1.msra.mxu0 0.0
    %2432 = vmatprep.subr.mxu0 0.0
    %2433 = vmatpush1.msra.mxu0 0.0
    %2434 = vmatprep.subr.mxu0 0.0
    %2435 = vmatpush1.msra.mxu0 0.0
    %2436 = vmatprep.subr.mxu0 0.0
    %2437 = vmatpush1.msra.mxu0 0.0
    %2438 = vmatprep.subr.mxu0 0.0
    %2439 = vmatpush1.msra.mxu0 0.0
    %2440 = vmatprep.subr.mxu0 0.0
    %2441 = vmatpush1.msra.mxu0 0.0
    %2442 = vmatprep.subr.mxu0 0.0
    %2443 = vmatpush1.msra.mxu0 0.0
    %2444 = vmatprep.subr.mxu0 0.0
    %2445 = vmatpush1.msra.mxu0 0.0
    %2446 = vmatprep.subr.mxu0 0.0
    %2447 = vmatpush1.msra.mxu0 %v162
    %2448 = vmatprep.subr.mxu0 0.0
    %2449 = vmatpush1.msra.mxu0 %v160
    %2450 = vmatprep.subr.mxu0 0.0
    %2451 = vmatpush1.msra.mxu0 %v158
    %2452 = vmatprep.subr.mxu0 0.0
    %2453 = vmatpush1.msra.mxu0 %v156
    %2454 = vmatprep.subr.mxu0 0.0
    %2455 = vmatpush1.msra.mxu0 %v154
    %2456 = vmatprep.subr.mxu0 0.0
    %2457 = vmatpush1.msra.mxu0 %v152
    %2458 = vmatprep.subr.mxu0 0.0
    %2459 = vmatpush1.msra.mxu0 %v150
    %2460 = vmatprep.subr.mxu0 0.0
    %2461 = vmatpush1.msra.mxu0 %v148
    %2462 = vmatprep.subr.mxu0 0.0
    %2463 = vmatpush2.msra.mxu0 0.0
    %2464 = vmatprep.subr.mxu0 0.0
    %2465 = vmatpush2.msra.mxu0 0.0
    %2466 = vmatprep.subr.mxu0 0.0
    %2467 = vmatpush2.msra.mxu0 0.0
    %2468 = vmatprep.subr.mxu0 0.0
    %2469 = vmatpush2.msra.mxu0 0.0
    %2470 = vmatprep.subr.mxu0 0.0
    %2471 = vmatpush2.msra.mxu0 0.0
    %2472 = vmatprep.subr.mxu0 0.0
    %2473 = vmatpush2.msra.mxu0 0.0
    %2474 = vmatprep.subr.mxu0 0.0
    %2475 = vmatpush2.msra.mxu0 0.0
    %2476 = vmatprep.subr.mxu0 0.0
    %2477 = vmatpush2.msra.mxu0 0.0
    %2478 = vmatprep.subr.mxu0 0.0
    %2479 = vmatpush2.msra.mxu0 0.0
    %2480 = vmatprep.subr.mxu0 0.0
    %2481 = vmatpush2.msra.mxu0 0.0
    %2482 = vmatprep.subr.mxu0 0.0
    %2483 = vmatpush2.msra.mxu0 0.0
    %2484 = vmatprep.subr.mxu0 0.0
    %2485 = vmatpush2.msra.mxu0 0.0
    %2486 = vmatprep.subr.mxu0 0.0
    %2487 = vmatpush2.msra.mxu0 0.0
    %2488 = vmatprep.subr.mxu0 0.0
    %2489 = vmatpush2.msra.mxu0 0.0
    %2490 = vmatprep.subr.mxu0 0.0
    %2491 = vmatpush2.msra.mxu0 0.0
    %2492 = vmatprep.subr.mxu0 0.0
    %2493 = vmatpush2.msra.mxu0 0.0
    %2494 = vmatprep.mubr.f32.mxu0 0.0
    %2495 = vmatmul.mubr.f32.gmra.mxu0 %v2268
    %v2496 = vpop.f32.mrf.mxu0
    %v2497 = vadd.f32 0.0, %v2496
    %v2498 = vpop.f32.mrf.mxu0
    %2499 = vdwg.mxu0
    %v2501 = vrot.slane %v2497, 4
    %v2503 = vadd.f32 %v1597, %v2501
    %v2504 = vtanh.pop %v2503
    %2505 = vmatprep.subr.mxu0 0.0
    %2506 = vmatpush1.msra.mxu0 0.0
    %2507 = vmatprep.subr.mxu0 0.0
    %2508 = vmatpush1.msra.mxu0 0.0
    %2509 = vmatprep.subr.mxu0 0.0
    %2510 = vmatpush1.msra.mxu0 0.0
    %2511 = vmatprep.subr.mxu0 0.0
    %2512 = vmatpush1.msra.mxu0 0.0
    %2513 = vmatprep.subr.mxu0 0.0
    %2514 = vmatpush1.msra.mxu0 0.0
    %2515 = vmatprep.subr.mxu0 0.0
    %2516 = vmatpush1.msra.mxu0 0.0
    %2517 = vmatprep.subr.mxu0 0.0
    %2518 = vmatpush1.msra.mxu0 0.0
    %2519 = vmatprep.subr.mxu0 0.0
    %2520 = vmatpush1.msra.mxu0 0.0
    %2521 = vmatprep.subr.mxu0 0.0
    %2522 = vmatpush1.msra.mxu0 %v474
    %2523 = vmatprep.subr.mxu0 0.0
    %2524 = vmatpush1.msra.mxu0 %v472
    %2525 = vmatprep.subr.mxu0 0.0
    %2526 = vmatpush1.msra.mxu0 %v470
    %2527 = vmatprep.subr.mxu0 0.0
    %2528 = vmatpush1.msra.mxu0 %v468
    %2529 = vmatprep.subr.mxu0 0.0
    %2530 = vmatpush1.msra.mxu0 %v466
    %2531 = vmatprep.subr.mxu0 0.0
    %2532 = vmatpush1.msra.mxu0 %v464
    %2533 = vmatprep.subr.mxu0 0.0
    %2534 = vmatpush1.msra.mxu0 %v462
    %2535 = vmatprep.subr.mxu0 0.0
    %2536 = vmatpush1.msra.mxu0 %v460
    %2537 = vmatprep.subr.mxu0 0.0
    %2538 = vmatpush2.msra.mxu0 0.0
    %2539 = vmatprep.subr.mxu0 0.0
    %2540 = vmatpush2.msra.mxu0 0.0
    %2541 = vmatprep.subr.mxu0 0.0
    %2542 = vmatpush2.msra.mxu0 0.0
    %2543 = vmatprep.subr.mxu0 0.0
    %2544 = vmatpush2.msra.mxu0 0.0
    %2545 = vmatprep.subr.mxu0 0.0
    %2546 = vmatpush2.msra.mxu0 0.0
    %2547 = vmatprep.subr.mxu0 0.0
    %2548 = vmatpush2.msra.mxu0 0.0
    %2549 = vmatprep.subr.mxu0 0.0
    %2550 = vmatpush2.msra.mxu0 0.0
    %2551 = vmatprep.subr.mxu0 0.0
    %2552 = vmatpush2.msra.mxu0 0.0
    %2553 = vmatprep.subr.mxu0 0.0
    %2554 = vmatpush2.msra.mxu0 0.0
    %2555 = vmatprep.subr.mxu0 0.0
    %2556 = vmatpush2.msra.mxu0 0.0
    %2557 = vmatprep.subr.mxu0 0.0
    %2558 = vmatpush2.msra.mxu0 0.0
    %2559 = vmatprep.subr.mxu0 0.0
    %2560 = vmatpush2.msra.mxu0 0.0
    %2561 = vmatprep.subr.mxu0 0.0
    %2562 = vmatpush2.msra.mxu0 0.0
    %2563 = vmatprep.subr.mxu0 0.0
    %2564 = vmatpush2.msra.mxu0 0.0
    %2565 = vmatprep.subr.mxu0 0.0
    %2566 = vmatpush2.msra.mxu0 0.0
    %2567 = vmatprep.subr.mxu0 0.0
    %2568 = vmatpush2.msra.mxu0 0.0
    %2569 = vmatprep.mubr.f32.mxu0 0.0
    %2570 = vmatmul.mubr.f32.gmra.mxu0 %v2268
    %v2571 = vpop.f32.mrf.mxu0
    %v2572 = vadd.f32 0.0, %v2571
    %v2573 = vpop.f32.mrf.mxu0
    %2574 = vdwg.mxu0
    %v2576 = vrot.slane %v2572, 4
    %v2578 = vadd.f32 %v1604, %v2576
    %v2579 = vxor.u32 %v2578, 2147483648
    %v2580 = vmul.f32 %v2579, 1.442695
    %v2581 = vpow.pop %v2580
    %v2582 = vadd.f32 %v2581, 1.0
    %v2583 = vrcp.pop %v2582
    %v2584 = vmul.f32 1.0, %v2583
    %v2586 = vrot.slane %v2258, 6
    %v2588 = vmul.f32 %v2429, %v2586
    %v2589 = vmul.f32 %v2349, %v2504
    %v2590 = vadd.f32 %v2588, %v2589
    %v2591 = vtanh.pop %v2590
    %v2592 = vmul.f32 %v2584, %v2591
    %v2594 = vrot.slane %v2592, 4
    %v2596 = vmax.f32 %v2264, %v2594
    %v2597 = vrot.slane %v42, 4
    %v2599 = vmax.f32 %v2267, %v2597
    %v2600 = vsel %vm189, %v2594, 0
    %2602 = vmatprep.subr.mxu0 0.0
    %2603 = vmatpush1.msra.mxu0 0.0
    %2604 = vmatprep.subr.mxu0 0.0
    %2605 = vmatpush1.msra.mxu0 0.0
    %2606 = vmatprep.subr.mxu0 0.0
    %2607 = vmatpush1.msra.mxu0 0.0
    %2608 = vmatprep.subr.mxu0 0.0
    %2609 = vmatpush1.msra.mxu0 0.0
    %2610 = vmatprep.subr.mxu0 0.0
    %2611 = vmatpush1.msra.mxu0 0.0
    %2612 = vmatprep.subr.mxu0 0.0
    %2613 = vmatpush1.msra.mxu0 0.0
    %2614 = vmatprep.subr.mxu0 0.0
    %2615 = vmatpush1.msra.mxu0 0.0
    %2616 = vmatprep.subr.mxu0 0.0
    %2617 = vmatpush1.msra.mxu0 0.0
    %2618 = vmatprep.subr.mxu0 0.0
    %2619 = vmatpush1.msra.mxu0 %v161
    %2620 = vmatprep.subr.mxu0 0.0
    %2621 = vmatpush1.msra.mxu0 %v159
    %2622 = vmatprep.subr.mxu0 0.0
    %2623 = vmatpush1.msra.mxu0 %v157
    %2624 = vmatprep.subr.mxu0 0.0
    %2625 = vmatpush1.msra.mxu0 %v155
    %2626 = vmatprep.subr.mxu0 0.0
    %2627 = vmatpush1.msra.mxu0 %v153
    %2628 = vmatprep.subr.mxu0 0.0
    %2629 = vmatpush1.msra.mxu0 %v151
    %2630 = vmatprep.subr.mxu0 0.0
    %2631 = vmatpush1.msra.mxu0 %v149
    %2632 = vmatprep.subr.mxu0 0.0
    %2633 = vmatpush1.msra.mxu0 %v147
    %2634 = vmatprep.subr.mxu0 0.0
    %2635 = vmatpush2.msra.mxu0 0.0
    %2636 = vmatprep.subr.mxu0 0.0
    %2637 = vmatpush2.msra.mxu0 0.0
    %2638 = vmatprep.subr.mxu0 0.0
    %2639 = vmatpush2.msra.mxu0 0.0
    %2640 = vmatprep.subr.mxu0 0.0
    %2641 = vmatpush2.msra.mxu0 0.0
    %2642 = vmatprep.subr.mxu0 0.0
    %2643 = vmatpush2.msra.mxu0 0.0
    %2644 = vmatprep.subr.mxu0 0.0
    %2645 = vmatpush2.msra.mxu0 0.0
    %2646 = vmatprep.subr.mxu0 0.0
    %2647 = vmatpush2.msra.mxu0 0.0
    %2648 = vmatprep.subr.mxu0 0.0
    %2649 = vmatpush2.msra.mxu0 0.0
    %2650 = vmatprep.subr.mxu0 0.0
    %2651 = vmatpush2.msra.mxu0 0.0
    %2652 = vmatprep.subr.mxu0 0.0
    %2653 = vmatpush2.msra.mxu0 0.0
    %2654 = vmatprep.subr.mxu0 0.0
    %2655 = vmatpush2.msra.mxu0 0.0
    %2656 = vmatprep.subr.mxu0 0.0
    %2657 = vmatpush2.msra.mxu0 0.0
    %2658 = vmatprep.subr.mxu0 0.0
    %2659 = vmatpush2.msra.mxu0 0.0
    %2660 = vmatprep.subr.mxu0 0.0
    %2661 = vmatpush2.msra.mxu0 0.0
    %2662 = vmatprep.subr.mxu0 0.0
    %2663 = vmatpush2.msra.mxu0 0.0
    %2664 = vmatprep.subr.mxu0 0.0
    %2665 = vmatpush2.msra.mxu0 0.0
    %2666 = vmatprep.mubr.f32.mxu0 0.0
    %2667 = vmatmul.mubr.f32.gmra.mxu0 %v2600
    %v2668 = vpop.f32.mrf.mxu0
    %v2669 = vadd.f32 0.0, %v2668
    %v2670 = vpop.f32.mrf.mxu0
    %2671 = vdwg.mxu0
    %v2673 = vrot.slane %v2669, 2
    %v2675 = vadd.f32 %v1924, %v2673
    %v2676 = vxor.u32 %v2675, 2147483648
    %v2677 = vmul.f32 %v2676, 1.442695
    %v2678 = vpow.pop %v2677
    %v2679 = vadd.f32 %v2678, 1.0
    %v2680 = vrcp.pop %v2679
    %v2681 = vmul.f32 1.0, %v2680
    %2682 = vmatprep.subr.mxu0 0.0
    %2683 = vmatpush1.msra.mxu0 0.0
    %2684 = vmatprep.subr.mxu0 0.0
    %2685 = vmatpush1.msra.mxu0 0.0
    %2686 = vmatprep.subr.mxu0 0.0
    %2687 = vmatpush1.msra.mxu0 0.0
    %2688 = vmatprep.subr.mxu0 0.0
    %2689 = vmatpush1.msra.mxu0 0.0
    %2690 = vmatprep.subr.mxu0 0.0
    %2691 = vmatpush1.msra.mxu0 0.0
    %2692 = vmatprep.subr.mxu0 0.0
    %2693 = vmatpush1.msra.mxu0 0.0
    %2694 = vmatprep.subr.mxu0 0.0
    %2695 = vmatpush1.msra.mxu0 0.0
    %2696 = vmatprep.subr.mxu0 0.0
    %2697 = vmatpush1.msra.mxu0 0.0
    %2698 = vmatprep.subr.mxu0 0.0
    %2699 = vmatpush1.msra.mxu0 %v293
    %2700 = vmatprep.subr.mxu0 0.0
    %2701 = vmatpush1.msra.mxu0 %v291
    %2702 = vmatprep.subr.mxu0 0.0
    %2703 = vmatpush1.msra.mxu0 %v289
    %2704 = vmatprep.subr.mxu0 0.0
    %2705 = vmatpush1.msra.mxu0 %v287
    %2706 = vmatprep.subr.mxu0 0.0
    %2707 = vmatpush1.msra.mxu0 %v285
    %2708 = vmatprep.subr.mxu0 0.0
    %2709 = vmatpush1.msra.mxu0 %v283
    %2710 = vmatprep.subr.mxu0 0.0
    %2711 = vmatpush1.msra.mxu0 %v281
    %2712 = vmatprep.subr.mxu0 0.0
    %2713 = vmatpush1.msra.mxu0 %v279
    %2714 = vmatprep.subr.mxu0 0.0
    %2715 = vmatpush2.msra.mxu0 0.0
    %2716 = vmatprep.subr.mxu0 0.0
    %2717 = vmatpush2.msra.mxu0 0.0
    %2718 = vmatprep.subr.mxu0 0.0
    %2719 = vmatpush2.msra.mxu0 0.0
    %2720 = vmatprep.subr.mxu0 0.0
    %2721 = vmatpush2.msra.mxu0 0.0
    %2722 = vmatprep.subr.mxu0 0.0
    %2723 = vmatpush2.msra.mxu0 0.0
    %2724 = vmatprep.subr.mxu0 0.0
    %2725 = vmatpush2.msra.mxu0 0.0
    %2726 = vmatprep.subr.mxu0 0.0
    %2727 = vmatpush2.msra.mxu0 0.0
    %2728 = vmatprep.subr.mxu0 0.0
    %2729 = vmatpush2.msra.mxu0 0.0
    %2730 = vmatprep.subr.mxu0 0.0
    %2731 = vmatpush2.msra.mxu0 0.0
    %2732 = vmatprep.subr.mxu0 0.0
    %2733 = vmatpush2.msra.mxu0 0.0
    %2734 = vmatprep.subr.mxu0 0.0
    %2735 = vmatpush2.msra.mxu0 0.0
    %2736 = vmatprep.subr.mxu0 0.0
    %2737 = vmatpush2.msra.mxu0 0.0
    %2738 = vmatprep.subr.mxu0 0.0
    %2739 = vmatpush2.msra.mxu0 0.0
    %2740 = vmatprep.subr.mxu0 0.0
    %2741 = vmatpush2.msra.mxu0 0.0
    %2742 = vmatprep.subr.mxu0 0.0
    %2743 = vmatpush2.msra.mxu0 0.0
    %2744 = vmatprep.subr.mxu0 0.0
    %2745 = vmatpush2.msra.mxu0 0.0
    %2746 = vmatprep.mubr.f32.mxu0 0.0
    %2747 = vmatmul.mubr.f32.gmra.mxu0 %v2600
    %v2748 = vpop.f32.mrf.mxu0
    %v2749 = vadd.f32 0.0, %v2748
    %v2750 = vpop.f32.mrf.mxu0
    %2751 = vdwg.mxu0
    %v2753 = vrot.slane %v2749, 2
    %v2755 = vadd.f32 %v1926, %v2753
    %v2756 = vxor.u32 %v2755, 2147483648
    %v2757 = vmul.f32 %v2756, 1.442695
    %v2758 = vpow.pop %v2757
    %v2759 = vadd.f32 %v2758, 1.0
    %v2760 = vrcp.pop %v2759
    %v2761 = vmul.f32 1.0, %v2760
    %2762 = vmatprep.subr.mxu0 0.0
    %2763 = vmatpush1.msra.mxu0 0.0
    %2764 = vmatprep.subr.mxu0 0.0
    %2765 = vmatpush1.msra.mxu0 0.0
    %2766 = vmatprep.subr.mxu0 0.0
    %2767 = vmatpush1.msra.mxu0 0.0
    %2768 = vmatprep.subr.mxu0 0.0
    %2769 = vmatpush1.msra.mxu0 0.0
    %2770 = vmatprep.subr.mxu0 0.0
    %2771 = vmatpush1.msra.mxu0 0.0
    %2772 = vmatprep.subr.mxu0 0.0
    %2773 = vmatpush1.msra.mxu0 0.0
    %2774 = vmatprep.subr.mxu0 0.0
    %2775 = vmatpush1.msra.mxu0 0.0
    %2776 = vmatprep.subr.mxu0 0.0
    %2777 = vmatpush1.msra.mxu0 0.0
    %2778 = vmatprep.subr.mxu0 0.0
    %2779 = vmatpush1.msra.mxu0 %v162
    %2780 = vmatprep.subr.mxu0 0.0
    %2781 = vmatpush1.msra.mxu0 %v160
    %2782 = vmatprep.subr.mxu0 0.0
    %2783 = vmatpush1.msra.mxu0 %v158
    %2784 = vmatprep.subr.mxu0 0.0
    %2785 = vmatpush1.msra.mxu0 %v156
    %2786 = vmatprep.subr.mxu0 0.0
    %2787 = vmatpush1.msra.mxu0 %v154
    %2788 = vmatprep.subr.mxu0 0.0
    %2789 = vmatpush1.msra.mxu0 %v152
    %2790 = vmatprep.subr.mxu0 0.0
    %2791 = vmatpush1.msra.mxu0 %v150
    %2792 = vmatprep.subr.mxu0 0.0
    %2793 = vmatpush1.msra.mxu0 %v148
    %2794 = vmatprep.subr.mxu0 0.0
    %2795 = vmatpush2.msra.mxu0 0.0
    %2796 = vmatprep.subr.mxu0 0.0
    %2797 = vmatpush2.msra.mxu0 0.0
    %2798 = vmatprep.subr.mxu0 0.0
    %2799 = vmatpush2.msra.mxu0 0.0
    %2800 = vmatprep.subr.mxu0 0.0
    %2801 = vmatpush2.msra.mxu0 0.0
    %2802 = vmatprep.subr.mxu0 0.0
    %2803 = vmatpush2.msra.mxu0 0.0
    %2804 = vmatprep.subr.mxu0 0.0
    %2805 = vmatpush2.msra.mxu0 0.0
    %2806 = vmatprep.subr.mxu0 0.0
    %2807 = vmatpush2.msra.mxu0 0.0
    %2808 = vmatprep.subr.mxu0 0.0
    %2809 = vmatpush2.msra.mxu0 0.0
    %2810 = vmatprep.subr.mxu0 0.0
    %2811 = vmatpush2.msra.mxu0 0.0
    %2812 = vmatprep.subr.mxu0 0.0
    %2813 = vmatpush2.msra.mxu0 0.0
    %2814 = vmatprep.subr.mxu0 0.0
    %2815 = vmatpush2.msra.mxu0 0.0
    %2816 = vmatprep.subr.mxu0 0.0
    %2817 = vmatpush2.msra.mxu0 0.0
    %2818 = vmatprep.subr.mxu0 0.0
    %2819 = vmatpush2.msra.mxu0 0.0
    %2820 = vmatprep.subr.mxu0 0.0
    %2821 = vmatpush2.msra.mxu0 0.0
    %2822 = vmatprep.subr.mxu0 0.0
    %2823 = vmatpush2.msra.mxu0 0.0
    %2824 = vmatprep.subr.mxu0 0.0
    %2825 = vmatpush2.msra.mxu0 0.0
    %2826 = vmatprep.mubr.f32.mxu0 0.0
    %2827 = vmatmul.mubr.f32.gmra.mxu0 %v2600
    %v2828 = vpop.f32.mrf.mxu0
    %v2829 = vadd.f32 0.0, %v2828
    %v2830 = vpop.f32.mrf.mxu0
    %2831 = vdwg.mxu0
    %v2833 = vrot.slane %v2829, 2
    %v2835 = vadd.f32 %v1930, %v2833
    %v2836 = vtanh.pop %v2835
    %2837 = vmatprep.subr.mxu0 0.0
    %2838 = vmatpush1.msra.mxu0 0.0
    %2839 = vmatprep.subr.mxu0 0.0
    %2840 = vmatpush1.msra.mxu0 0.0
    %2841 = vmatprep.subr.mxu0 0.0
    %2842 = vmatpush1.msra.mxu0 0.0
    %2843 = vmatprep.subr.mxu0 0.0
    %2844 = vmatpush1.msra.mxu0 0.0
    %2845 = vmatprep.subr.mxu0 0.0
    %2846 = vmatpush1.msra.mxu0 0.0
    %2847 = vmatprep.subr.mxu0 0.0
    %2848 = vmatpush1.msra.mxu0 0.0
    %2849 = vmatprep.subr.mxu0 0.0
    %2850 = vmatpush1.msra.mxu0 0.0
    %2851 = vmatprep.subr.mxu0 0.0
    %2852 = vmatpush1.msra.mxu0 0.0
    %2853 = vmatprep.subr.mxu0 0.0
    %2854 = vmatpush1.msra.mxu0 %v474
    %2855 = vmatprep.subr.mxu0 0.0
    %2856 = vmatpush1.msra.mxu0 %v472
    %2857 = vmatprep.subr.mxu0 0.0
    %2858 = vmatpush1.msra.mxu0 %v470
    %2859 = vmatprep.subr.mxu0 0.0
    %2860 = vmatpush1.msra.mxu0 %v468
    %2861 = vmatprep.subr.mxu0 0.0
    %2862 = vmatpush1.msra.mxu0 %v466
    %2863 = vmatprep.subr.mxu0 0.0
    %2864 = vmatpush1.msra.mxu0 %v464
    %2865 = vmatprep.subr.mxu0 0.0
    %2866 = vmatpush1.msra.mxu0 %v462
    %2867 = vmatprep.subr.mxu0 0.0
    %2868 = vmatpush1.msra.mxu0 %v460
    %2869 = vmatprep.subr.mxu0 0.0
    %2870 = vmatpush2.msra.mxu0 0.0
    %2871 = vmatprep.subr.mxu0 0.0
    %2872 = vmatpush2.msra.mxu0 0.0
    %2873 = vmatprep.subr.mxu0 0.0
    %2874 = vmatpush2.msra.mxu0 0.0
    %2875 = vmatprep.subr.mxu0 0.0
    %2876 = vmatpush2.msra.mxu0 0.0
    %2877 = vmatprep.subr.mxu0 0.0
    %2878 = vmatpush2.msra.mxu0 0.0
    %2879 = vmatprep.subr.mxu0 0.0
    %2880 = vmatpush2.msra.mxu0 0.0
    %2881 = vmatprep.subr.mxu0 0.0
    %2882 = vmatpush2.msra.mxu0 0.0
    %2883 = vmatprep.subr.mxu0 0.0
    %2884 = vmatpush2.msra.mxu0 0.0
    %2885 = vmatprep.subr.mxu0 0.0
    %2886 = vmatpush2.msra.mxu0 0.0
    %2887 = vmatprep.subr.mxu0 0.0
    %2888 = vmatpush2.msra.mxu0 0.0
    %2889 = vmatprep.subr.mxu0 0.0
    %2890 = vmatpush2.msra.mxu0 0.0
    %2891 = vmatprep.subr.mxu0 0.0
    %2892 = vmatpush2.msra.mxu0 0.0
    %2893 = vmatprep.subr.mxu0 0.0
    %2894 = vmatpush2.msra.mxu0 0.0
    %2895 = vmatprep.subr.mxu0 0.0
    %2896 = vmatpush2.msra.mxu0 0.0
    %2897 = vmatprep.subr.mxu0 0.0
    %2898 = vmatpush2.msra.mxu0 0.0
    %2899 = vmatprep.subr.mxu0 0.0
    %2900 = vmatpush2.msra.mxu0 0.0
    %2901 = vmatprep.mubr.f32.mxu0 0.0
    %2902 = vmatmul.mubr.f32.gmra.mxu0 %v2600
    %v2903 = vpop.f32.mrf.mxu0
    %v2904 = vadd.f32 0.0, %v2903
    %v2905 = vpop.f32.mrf.mxu0
    %2906 = vdwg.mxu0
    %v2908 = vrot.slane %v2904, 2
    %v2910 = vadd.f32 %v1934, %v2908
    %v2911 = vxor.u32 %v2910, 2147483648
    %v2912 = vmul.f32 %v2911, 1.442695
    %v2913 = vpow.pop %v2912
    %v2914 = vadd.f32 %v2913, 1.0
    %v2915 = vrcp.pop %v2914
    %v2916 = vmul.f32 1.0, %v2915
    %v2918 = vrot.slane %v2590, 6
    %v2920 = vmul.f32 %v2761, %v2918
    %v2921 = vmul.f32 %v2681, %v2836
    %v2922 = vadd.f32 %v2920, %v2921
    %v2923 = vtanh.pop %v2922
    %v2924 = vmul.f32 %v2916, %v2923
    %v2926 = vrot.slane %v2924, 6
    %v2928 = vmax.f32 %v2596, %v2926
    %v2929 = vrot.slane %v42, 6
    %v2931 = vmax.f32 %v2599, %v2929
    %v2932 = vld [vmem:[#allocation2] sm:$0xff]
    %v2933 = vld [vmem:[#allocation2 + $0x8] sm:$0xff]
    %v2934 = vld [vmem:[#allocation2 + $0x10] sm:$0xff]
    %v2935 = vld [vmem:[#allocation2 + $0x18] sm:$0xff]
    %v2936 = vld [vmem:[%s5] sm:$0xff]
    %v2937 = vld [vmem:[%s5 + $0x8] sm:$0xff]
    %v2938 = vld [vmem:[%s5 + $0x10] sm:$0xff]
    %v2939 = vld [vmem:[%s5 + $0x18] sm:$0xff]
    %v2940 = vld [vmem:[%s5 + $0x20] sm:$0xff]
    %v2941 = vld [vmem:[%s5 + $0x28] sm:$0xff]
    %v2942 = vld [vmem:[%s5 + $0x30] sm:$0xff]
    %v2943 = vld [vmem:[%s5 + $0x38] sm:$0xff]
    %v2945 = vsel %vm189, %v2928, 0
    %2947 = vmatprep.subr.mxu0 0.0
    %2948 = vmatpush1.msra.mxu0 0.0
    %2949 = vmatprep.subr.mxu0 0.0
    %2950 = vmatpush1.msra.mxu0 0.0
    %2951 = vmatprep.subr.mxu0 0.0
    %2952 = vmatpush1.msra.mxu0 0.0
    %2953 = vmatprep.subr.mxu0 0.0
    %2954 = vmatpush1.msra.mxu0 0.0
    %2955 = vmatprep.subr.mxu0 0.0
    %2956 = vmatpush1.msra.mxu0 0.0
    %2957 = vmatprep.subr.mxu0 0.0
    %2958 = vmatpush1.msra.mxu0 0.0
    %2959 = vmatprep.subr.mxu0 0.0
    %2960 = vmatpush1.msra.mxu0 0.0
    %2961 = vmatprep.subr.mxu0 0.0
    %2962 = vmatpush1.msra.mxu0 0.0
    %2963 = vmatprep.subr.mxu0 0.0
    %2964 = vmatpush1.msra.mxu0 %v2943
    %2965 = vmatprep.subr.mxu0 0.0
    %2966 = vmatpush1.msra.mxu0 %v2942
    %2967 = vmatprep.subr.mxu0 0.0
    %2968 = vmatpush1.msra.mxu0 %v2941
    %2969 = vmatprep.subr.mxu0 0.0
    %2970 = vmatpush1.msra.mxu0 %v2940
    %2971 = vmatprep.subr.mxu0 0.0
    %2972 = vmatpush1.msra.mxu0 %v2939
    %2973 = vmatprep.subr.mxu0 0.0
    %2974 = vmatpush1.msra.mxu0 %v2938
    %2975 = vmatprep.subr.mxu0 0.0
    %2976 = vmatpush1.msra.mxu0 %v2937
    %2977 = vmatprep.subr.mxu0 0.0
    %2978 = vmatpush1.msra.mxu0 %v2936
    %2979 = vmatprep.subr.mxu0 0.0
    %2980 = vmatpush2.msra.mxu0 0.0
    %2981 = vmatprep.subr.mxu0 0.0
    %2982 = vmatpush2.msra.mxu0 0.0
    %2983 = vmatprep.subr.mxu0 0.0
    %2984 = vmatpush2.msra.mxu0 0.0
    %2985 = vmatprep.subr.mxu0 0.0
    %2986 = vmatpush2.msra.mxu0 0.0
    %2987 = vmatprep.subr.mxu0 0.0
    %2988 = vmatpush2.msra.mxu0 0.0
    %2989 = vmatprep.subr.mxu0 0.0
    %2990 = vmatpush2.msra.mxu0 0.0
    %2991 = vmatprep.subr.mxu0 0.0
    %2992 = vmatpush2.msra.mxu0 0.0
    %2993 = vmatprep.subr.mxu0 0.0
    %2994 = vmatpush2.msra.mxu0 0.0
    %2995 = vmatprep.subr.mxu0 0.0
    %2996 = vmatpush2.msra.mxu0 0.0
    %2997 = vmatprep.subr.mxu0 0.0
    %2998 = vmatpush2.msra.mxu0 0.0
    %2999 = vmatprep.subr.mxu0 0.0
    %3000 = vmatpush2.msra.mxu0 0.0
    %3001 = vmatprep.subr.mxu0 0.0
    %3002 = vmatpush2.msra.mxu0 0.0
    %3003 = vmatprep.subr.mxu0 0.0
    %3004 = vmatpush2.msra.mxu0 0.0
    %3005 = vmatprep.subr.mxu0 0.0
    %3006 = vmatpush2.msra.mxu0 0.0
    %3007 = vmatprep.subr.mxu0 0.0
    %3008 = vmatpush2.msra.mxu0 0.0
    %3009 = vmatprep.subr.mxu0 0.0
    %3010 = vmatpush2.msra.mxu0 0.0
    %3011 = vmatprep.mubr.f32.mxu0 0.0
    %3012 = vmatmul.mubr.f32.gmra.mxu0 %v2945
    %v3013 = vpop.f32.mrf.mxu0
    %v3014 = vadd.f32 0.0, %v3013
    %v3015 = vpop.f32.mrf.mxu0
    %3016 = vdwg.mxu0
    %v3018 = vsel %vm63, %v2931, 0
    %3020 = vmatprep.subr.mxu0 0.0
    %3021 = vmatpush1.msra.mxu0 0.0
    %3022 = vmatprep.subr.mxu0 0.0
    %3023 = vmatpush1.msra.mxu0 0.0
    %3024 = vmatprep.subr.mxu0 0.0
    %3025 = vmatpush1.msra.mxu0 0.0
    %3026 = vmatprep.subr.mxu0 0.0
    %3027 = vmatpush1.msra.mxu0 0.0
    %3028 = vmatprep.subr.mxu0 0.0
    %3029 = vmatpush1.msra.mxu0 0.0
    %3030 = vmatprep.subr.mxu0 0.0
    %3031 = vmatpush1.msra.mxu0 0.0
    %3032 = vmatprep.subr.mxu0 0.0
    %3033 = vmatpush1.msra.mxu0 0.0
    %3034 = vmatprep.subr.mxu0 0.0
    %3035 = vmatpush1.msra.mxu0 0.0
    %3036 = vmatprep.subr.mxu0 0.0
    %3037 = vmatpush1.msra.mxu0 0.0
    %3038 = vmatprep.subr.mxu0 0.0
    %3039 = vmatpush1.msra.mxu0 0.0
    %3040 = vmatprep.subr.mxu0 0.0
    %3041 = vmatpush1.msra.mxu0 0.0
    %3042 = vmatprep.subr.mxu0 0.0
    %3043 = vmatpush1.msra.mxu0 0.0
    %3044 = vmatprep.subr.mxu0 0.0
    %3045 = vmatpush1.msra.mxu0 %v2935
    %3046 = vmatprep.subr.mxu0 0.0
    %3047 = vmatpush1.msra.mxu0 %v2934
    %3048 = vmatprep.subr.mxu0 0.0
    %3049 = vmatpush1.msra.mxu0 %v2933
    %3050 = vmatprep.subr.mxu0 0.0
    %3051 = vmatpush1.msra.mxu0 %v2932
    %3052 = vmatprep.subr.mxu0 0.0
    %3053 = vmatpush2.msra.mxu0 0.0
    %3054 = vmatprep.subr.mxu0 0.0
    %3055 = vmatpush2.msra.mxu0 0.0
    %3056 = vmatprep.subr.mxu0 0.0
    %3057 = vmatpush2.msra.mxu0 0.0
    %3058 = vmatprep.subr.mxu0 0.0
    %3059 = vmatpush2.msra.mxu0 0.0
    %3060 = vmatprep.subr.mxu0 0.0
    %3061 = vmatpush2.msra.mxu0 0.0
    %3062 = vmatprep.subr.mxu0 0.0
    %3063 = vmatpush2.msra.mxu0 0.0
    %3064 = vmatprep.subr.mxu0 0.0
    %3065 = vmatpush2.msra.mxu0 0.0
    %3066 = vmatprep.subr.mxu0 0.0
    %3067 = vmatpush2.msra.mxu0 0.0
    %3068 = vmatprep.subr.mxu0 0.0
    %3069 = vmatpush2.msra.mxu0 0.0
    %3070 = vmatprep.subr.mxu0 0.0
    %3071 = vmatpush2.msra.mxu0 0.0
    %3072 = vmatprep.subr.mxu0 0.0
    %3073 = vmatpush2.msra.mxu0 0.0
    %3074 = vmatprep.subr.mxu0 0.0
    %3075 = vmatpush2.msra.mxu0 0.0
    %3076 = vmatprep.subr.mxu0 0.0
    %3077 = vmatpush2.msra.mxu0 0.0
    %3078 = vmatprep.subr.mxu0 0.0
    %3079 = vmatpush2.msra.mxu0 0.0
    %3080 = vmatprep.subr.mxu0 0.0
    %3081 = vmatpush2.msra.mxu0 0.0
    %3082 = vmatprep.subr.mxu0 0.0
    %3083 = vmatpush2.msra.mxu0 0.0
    %3084 = vmatprep.mubr.f32.mxu0 0.0
    %3085 = vmatmul.mubr.f32.gmra.mxu0 %v3018
    %v3086 = vpop.f32.mrf.mxu0
    %v3087 = vadd.f32 %v3014, %v3086
    %v3088 = vpop.f32.mrf.mxu0
    %3089 = vdwg.mxu0
    %v3090 = vld [vmem:[%s6] sm:$0x1]
    %v3092 = vlaneseq
    %v3093 = vshrl.u32 %v3092, 7
    %v3094 = vsub.s32 0, %v3093
    %v3095 = vrot.slane %v3090, %v3094
    %v3097 = vadd.f32 %v3087, %v3095
    %3098 = vst [vmem:[#allocation5] sm:$0x3] %v3097
    // Predicated region
    $region34: #{text_rcnn_forward.1} parent=1 // pred_check
      _
    $region35: #{text_rcnn_forward.1} parent=1 // pred_check_branch
      %3100 = sbr.rel (0) target = $region37
    $region36: #{text_rcnn_forward.1} parent=1 // pred_region
      %s3102 = ssub.s32 32, 32
      %3103 = vsyncadd [#allocation4], %s3102
      %s3105 = sshll.u32 [#allocation5], 4
      %s3106 = int_to_ptr.vmem [resolvable:$true] %s3105
      %3108 = dma.vmem_to_hbm [thread:$0]  %s3106, 32, %s7, [#allocation4]
    $region37: #{text_rcnn_forward.1} parent=1 // pred_fallthru
      _
    // Predicated region
    $region38: #{text_rcnn_forward.1} parent=1 // pred_check
      _
    $region39: #{text_rcnn_forward.1} parent=1 // pred_check_branch
      %3110 = sbr.rel (0) target = $region41
    $region40: #{text_rcnn_forward.1} parent=1 // pred_region
      %3111 = dma.done [#allocation4], 32
    $region41: #{text_rcnn_forward.1} parent=1 // pred_fallthru
      _
    %3112 = vsyncpa [#allocation3], 1
    %3113 = vsyncpa [#allocation4], 1

</llo_original>
